<compile_context>
chip_gen: v5e
topology: v5e:2x2
jax: 0.10.0
libtpu: 0.0.40
codegen_flags: <defaults>
</compile_context>

<pallas_src>
import jax
import jax.numpy as jnp
from jax.experimental import pallas as pl
from jax.experimental.pallas import tpu as pltpu


def two_task_kernel(x_ref, cw_ref, cb_ref, wh_ref, bh_ref, out_ref,
                    xpad_ref, col_ref):
    # x_ref:    (Bt, H, W, Cin)      bf16  unpadded NHWC images for this step
    # cw_ref:   (9*Cin, F)           bf16  3x3 conv weights, tap-major im2col rows
    # cb_ref:   (1, F)               f32   conv bias
    # wh_ref:   (F, Npad)            bf16  [fc1_w | fc2_w | zero-pad] fused heads
    # bh_ref:   (1, Npad)            f32   [fc1_b | fc2_b | zero-pad]
    # out_ref:  (Bt, 1, Npad)        f32   lane-dense score slab
    # xpad_ref: (Bt, H+2, W+2, Cin)  bf16  VMEM scratch: zero-padded image
    # col_ref:  (Bt*H*W, 9*Cin)      bf16  VMEM scratch: im2col patch matrix
    Bt, H, W, Cin = x_ref.shape
    F = cw_ref.shape[1]
    Npad = out_ref.shape[2]

    # ---- zero-pad in VMEM (re-zeroed every step: safe under megacore sharding) ----
    xpad_ref[...] = jnp.zeros(xpad_ref.shape, xpad_ref.dtype)
    xpad_ref[:, pl.ds(1, H), pl.ds(1, W), :] = x_ref[...]

    # ---- im2col in VMEM: 9 shifted slices -> columns of (Bt*H*W, 9*Cin) ----
    for tap in range(9):                       # unrolled at trace time, static offsets
        ky, kx = divmod(tap, 3)
        xs = xpad_ref[:, pl.ds(ky, H), pl.ds(kx, W), :]          # (Bt, H, W, Cin)
        col_ref[:, pl.ds(tap * Cin, Cin)] = xs.reshape(Bt * H * W, Cin)

    # ---- 3x3 conv as ONE MXU matmul, K = 9*Cin, f32 accumulation ----
    # TODO(synk): for wide backbones (F >= 256) tile F with an extra "arbitrary"
    # grid axis / VMEM accumulator to avoid vreg spills.
    conv = jnp.dot(col_ref[...], cw_ref[...],
                   preferred_element_type=jnp.float32)           # (Bt*H*W, F)
    conv = jnp.maximum(conv + cb_ref[...], 0.0)                  # bias + ReLU (f32)

    # ---- global average pool: f32 sum over H*W, compile-time scale ----
    feat = jnp.sum(conv.reshape(Bt, H * W, F), axis=1) * (1.0 / (H * W))  # (Bt, F)

    # ---- fused two-task heads: one bf16 (Bt,F)x(F,Npad) matmul, f32 epilogue ----
    scores = jnp.dot(feat.astype(jnp.bfloat16), wh_ref[...],
                     preferred_element_type=jnp.float32) + bh_ref[...]    # (Bt, Npad)
    out_ref[...] = scores.reshape(Bt, 1, Npad)


def _pick_batch_tile(B):
    # Biggest Bt in {8,4,2,1} that divides B while keeping >= 2 grid steps
    # (v7x has 2 TensorCores; a 1-step grid would idle one of them).
    for bt in (8, 4, 2, 1):
        if B % bt == 0 and B // bt >= 2:
            return bt
    return B


def two_task_forward(x_nchw, conv_w, conv_b, fc1_w, fc1_b, fc2_w, fc2_b):
    B, Cin, H, W = x_nchw.shape
    F = conv_w.shape[-1]
    C = fc1_w.shape[-1]
    assert conv_w.shape[0] == 9 * Cin
    assert fc2_w.shape[-1] == C, "cat on dim 2 requires num_classes1 == num_classes2"

    bt = _pick_batch_tile(B)
    Npad = ((2 * C + 127) // 128) * 128        # lane-dense (unmasked) output stores

    # ---- glue: NCHW -> NHWC + bf16; padding happens inside the kernel (VMEM) ----
    # NOTE: accepting NHWC input directly would drop this transpose HBM copy too.
    x = jnp.transpose(x_nchw, (0, 2, 3, 1)).astype(jnp.bfloat16)        # (B,H,W,Cin)
    cw = conv_w.astype(jnp.bfloat16)                                    # (9*Cin, F)
    cb = conv_b.reshape(1, F).astype(jnp.float32)
    # fused, zero-padded heads: columns [0:C]=fc1, [C:2C]=fc2, rest zero
    wh = jnp.zeros((F, Npad), jnp.float32)
    wh = wh.at[:, :C].set(fc1_w).at[:, C:2 * C].set(fc2_w).astype(jnp.bfloat16)
    bh = jnp.zeros((1, Npad), jnp.float32)
    bh = bh.at[0, :C].set(fc1_b).at[0, C:2 * C].set(fc2_b)

    out = pl.pallas_call(
        two_task_kernel,
        out_shape=jax.ShapeDtypeStruct((B, 1, Npad), jnp.float32),
        grid_spec=pltpu.PrefetchScalarGridSpec(
            num_scalar_prefetch=0,
            grid=(B // bt,),                              # Bt images per grid step
            in_specs=[
                pl.BlockSpec((bt, H, W, Cin), lambda b: (b, 0, 0, 0)),
                pl.BlockSpec((9 * Cin, F), lambda b: (0, 0)),
                pl.BlockSpec((1, F), lambda b: (0, 0)),
                pl.BlockSpec((F, Npad), lambda b: (0, 0)),
                pl.BlockSpec((1, Npad), lambda b: (0, 0)),
            ],
            out_specs=pl.BlockSpec((bt, 1, Npad), lambda b: (b, 0, 0)),
            scratch_shapes=[
                pltpu.VMEM((bt, H + 2, W + 2, Cin), jnp.bfloat16),   # padded image
                pltpu.VMEM((bt * H * W, 9 * Cin), jnp.bfloat16),     # im2col patches
            ]),
        compiler_params=pltpu.CompilerParams(
            dimension_semantics=("parallel",),            # shards batch on v7x's 2 TCs
            vmem_limit_bytes=48 * 1024 * 1024),           # safe under v7x's 64 MiB VMEM
    )(x, cw, cb, wh, bh)

    # (B,1,Npad) -> (B,2C) -> (B,2,C) -> (B,C,2)
    # == torch.cat((fc1(x).unsqueeze(2), fc2(x).unsqueeze(2)), 2)
    return jnp.transpose(out[:, 0, :2 * C].reshape(B, 2, C), (0, 2, 1))


def xavier_uniform(key, fan_in, fan_out):
    limit = jnp.sqrt(6.0 / (fan_in + fan_out))
    return jax.random.uniform(key, (fan_in, fan_out),
                              minval=-limit, maxval=limit, dtype=jnp.float32)


if __name__ == "__main__":
    # small shapes consistent with the forward pass
    B, Cin, H, W = 2, 4, 16, 16
    feature_size = 32          # channels out of the backbone
    num_classes = 8            # num_classes1 == num_classes2

    key = jax.random.PRNGKey(0)
    k_x, k_cw, k_cb, k_w1, k_w2 = jax.random.split(key, 5)

    x = jax.random.normal(k_x, (B, Cin, H, W), dtype=jnp.float32)

    # backbone conv weights in im2col layout (9*Cin, F); bias (F,)
    conv_w = jax.random.normal(k_cw, (9 * Cin, feature_size), dtype=jnp.float32) * 0.1
    conv_b = jax.random.normal(k_cb, (feature_size,), dtype=jnp.float32) * 0.01

    # fc heads: xavier_uniform weights (stored as W^T, (F, C)), zero bias
    fc1_w = xavier_uniform(k_w1, feature_size, num_classes)
    fc1_b = jnp.zeros((num_classes,), dtype=jnp.float32)
    fc2_w = xavier_uniform(k_w2, feature_size, num_classes)
    fc2_b = jnp.zeros((num_classes,), dtype=jnp.float32)

    scores = two_task_forward(x, conv_w, conv_b, fc1_w, fc1_b, fc2_w, fc2_b)
    scores = jax.block_until_ready(scores)
    assert scores.shape == (B, num_classes, 2), scores.shape

    # pure-JAX reference (mirrors the kernel's bf16 rounding of matmul operands)
    xh = jnp.transpose(x, (0, 2, 3, 1)).astype(jnp.bfloat16).astype(jnp.float32)
    xp = jnp.pad(xh, ((0, 0), (1, 1), (1, 1), (0, 0)))
    pt = jnp.stack([xp[:, ky:ky + H, kx:kx + W, :]
                    for ky in range(3) for kx in range(3)], axis=3)
    pt = pt.reshape(B, H * W, 9 * Cin)
    cw_r = conv_w.astype(jnp.bfloat16).astype(jnp.float32)
    conv_ref = jnp.maximum(jnp.einsum('bpk,kf->bpf', pt, cw_r) + conv_b, 0.0)
    feat_ref = jnp.mean(conv_ref, axis=1)
    feat_b = feat_ref.astype(jnp.bfloat16).astype(jnp.float32)
    w1b = fc1_w.astype(jnp.bfloat16).astype(jnp.float32)
    w2b = fc2_w.astype(jnp.bfloat16).astype(jnp.float32)
    s1 = feat_b @ w1b + fc1_b
    s2 = feat_b @ w2b + fc2_b
    ref = jnp.stack([s1, s2], axis=2)
    assert jnp.allclose(scores, ref, atol=5e-3, rtol=5e-3), (
        float(jnp.max(jnp.abs(scores - ref))))

    print("KERNEL_OK")
</pallas_src>

<mosaic_0001>
module attributes {stable_mosaic.version = 11 : i64} {
  func.func @two_task_kernel(%arg0: i32, %arg1: memref<1x16x16x4xbf16, #tpu.memory_space<vmem>>, %arg2: memref<36x32xbf16, #tpu.memory_space<vmem>>, %arg3: memref<1x32xf32, #tpu.memory_space<vmem>>, %arg4: memref<32x128xbf16, #tpu.memory_space<vmem>>, %arg5: memref<1x128xf32, #tpu.memory_space<vmem>>, %arg6: memref<1x1x128xf32, #tpu.memory_space<vmem>>, %arg7: memref<1x18x18x4xbf16, #tpu.memory_space<vmem>>, %arg8: memref<256x36xbf16, #tpu.memory_space<vmem>>) attributes {dimension_semantics = [#tpu.dimension_semantics<parallel>], iteration_bounds = array<i64: 2>, scalar_prefetch = 0 : i64, scratch_operands = 2 : i64, tpu.core_type = #tpu.core_type<tc>, window_params = [{transform_indices = @transform_0, window_bounds = array<i64: 1, 16, 16, 4>}, {pipeline_mode = #tpu.pipeline_mode<synchronous>, transform_indices = @transform_1, window_bounds = array<i64: 36, 32>}, {pipeline_mode = #tpu.pipeline_mode<synchronous>, transform_indices = @transform_2, window_bounds = array<i64: 1, 32>}, {pipeline_mode = #tpu.pipeline_mode<synchronous>, transform_indices = @transform_3, window_bounds = array<i64: 32, 128>}, {pipeline_mode = #tpu.pipeline_mode<synchronous>, transform_indices = @transform_4, window_bounds = array<i64: 1, 128>}, {transform_indices = @transform_5, window_bounds = array<i64: 1, 1, 128>}]} {
    %cst = arith.constant 0.000000e+00 : bf16
    %0 = vector.broadcast %cst : bf16 to vector<1x18x18x4xbf16>
    %c0 = arith.constant 0 : index
    %c0_0 = arith.constant 0 : index
    %c0_1 = arith.constant 0 : index
    %c0_2 = arith.constant 0 : index
    %1 = vector.load %arg7[%c0, %c0_0, %c0_1, %c0_2] : memref<1x18x18x4xbf16, #tpu.memory_space<vmem>>, vector<1x18x18x4xbf16>
    tpu.vector_store %arg7[%c0, %c0_0, %c0_1, %c0_2], %0 {strides = array<i32>} : memref<1x18x18x4xbf16, #tpu.memory_space<vmem>>, vector<1x18x18x4xbf16>,
    %c0_3 = arith.constant 0 : index
    %c0_4 = arith.constant 0 : index
    %c0_5 = arith.constant 0 : index
    %c0_6 = arith.constant 0 : index
    %2 = vector.load %arg1[%c0_3, %c0_4, %c0_5, %c0_6] : memref<1x16x16x4xbf16, #tpu.memory_space<vmem>>, vector<1x16x16x4xbf16>
    %c0_7 = arith.constant 0 : index
    %c1 = arith.constant 1 : index
    %c1_8 = arith.constant 1 : index
    %c0_9 = arith.constant 0 : index
    %3 = vector.load %arg7[%c0_7, %c1, %c1_8, %c0_9] : memref<1x18x18x4xbf16, #tpu.memory_space<vmem>>, vector<1x16x16x4xbf16>
    tpu.vector_store %arg7[%c0_7, %c1, %c1_8, %c0_9], %2 {strides = array<i32>} : memref<1x18x18x4xbf16, #tpu.memory_space<vmem>>, vector<1x16x16x4xbf16>,
    %c0_10 = arith.constant 0 : index
    %c0_11 = arith.constant 0 : index
    %c0_12 = arith.constant 0 : index
    %c0_13 = arith.constant 0 : index
    %4 = vector.load %arg7[%c0_10, %c0_11, %c0_12, %c0_13] : memref<1x18x18x4xbf16, #tpu.memory_space<vmem>>, vector<1x16x16x4xbf16>
    %5 = vector.shape_cast %4 : vector<1x16x16x4xbf16> to vector<256x4xbf16>
    %c0_14 = arith.constant 0 : index
    %c0_15 = arith.constant 0 : index
    %6 = vector.load %arg8[%c0_14, %c0_15] : memref<256x36xbf16, #tpu.memory_space<vmem>>, vector<256x4xbf16>
    tpu.vector_store %arg8[%c0_14, %c0_15], %5 {strides = array<i32>} : memref<256x36xbf16, #tpu.memory_space<vmem>>, vector<256x4xbf16>,
    %c0_16 = arith.constant 0 : index
    %c0_17 = arith.constant 0 : index
    %c1_18 = arith.constant 1 : index
    %c0_19 = arith.constant 0 : index
    %7 = vector.load %arg7[%c0_16, %c0_17, %c1_18, %c0_19] : memref<1x18x18x4xbf16, #tpu.memory_space<vmem>>, vector<1x16x16x4xbf16>
    %8 = vector.shape_cast %7 : vector<1x16x16x4xbf16> to vector<256x4xbf16>
    %c0_20 = arith.constant 0 : index
    %c4 = arith.constant 4 : index
    %9 = vector.load %arg8[%c0_20, %c4] : memref<256x36xbf16, #tpu.memory_space<vmem>>, vector<256x4xbf16>
    tpu.vector_store %arg8[%c0_20, %c4], %8 {strides = array<i32>} : memref<256x36xbf16, #tpu.memory_space<vmem>>, vector<256x4xbf16>,
    %c0_21 = arith.constant 0 : index
    %c0_22 = arith.constant 0 : index
    %c2 = arith.constant 2 : index
    %c0_23 = arith.constant 0 : index
    %10 = vector.load %arg7[%c0_21, %c0_22, %c2, %c0_23] : memref<1x18x18x4xbf16, #tpu.memory_space<vmem>>, vector<1x16x16x4xbf16>
    %11 = vector.shape_cast %10 : vector<1x16x16x4xbf16> to vector<256x4xbf16>
    %c0_24 = arith.constant 0 : index
    %c8 = arith.constant 8 : index
    %12 = vector.load %arg8[%c0_24, %c8] : memref<256x36xbf16, #tpu.memory_space<vmem>>, vector<256x4xbf16>
    tpu.vector_store %arg8[%c0_24, %c8], %11 {strides = array<i32>} : memref<256x36xbf16, #tpu.memory_space<vmem>>, vector<256x4xbf16>,
    %c0_25 = arith.constant 0 : index
    %c1_26 = arith.constant 1 : index
    %c0_27 = arith.constant 0 : index
    %c0_28 = arith.constant 0 : index
    %13 = vector.load %arg7[%c0_25, %c1_26, %c0_27, %c0_28] : memref<1x18x18x4xbf16, #tpu.memory_space<vmem>>, vector<1x16x16x4xbf16>
    %14 = vector.shape_cast %13 : vector<1x16x16x4xbf16> to vector<256x4xbf16>
    %c0_29 = arith.constant 0 : index
    %c12 = arith.constant 12 : index
    %15 = vector.load %arg8[%c0_29, %c12] : memref<256x36xbf16, #tpu.memory_space<vmem>>, vector<256x4xbf16>
    tpu.vector_store %arg8[%c0_29, %c12], %14 {strides = array<i32>} : memref<256x36xbf16, #tpu.memory_space<vmem>>, vector<256x4xbf16>,
    %c0_30 = arith.constant 0 : index
    %c1_31 = arith.constant 1 : index
    %c1_32 = arith.constant 1 : index
    %c0_33 = arith.constant 0 : index
    %16 = vector.load %arg7[%c0_30, %c1_31, %c1_32, %c0_33] : memref<1x18x18x4xbf16, #tpu.memory_space<vmem>>, vector<1x16x16x4xbf16>
    %17 = vector.shape_cast %16 : vector<1x16x16x4xbf16> to vector<256x4xbf16>
    %c0_34 = arith.constant 0 : index
    %c16 = arith.constant 16 : index
    %18 = vector.load %arg8[%c0_34, %c16] : memref<256x36xbf16, #tpu.memory_space<vmem>>, vector<256x4xbf16>
    tpu.vector_store %arg8[%c0_34, %c16], %17 {strides = array<i32>} : memref<256x36xbf16, #tpu.memory_space<vmem>>, vector<256x4xbf16>,
    %c0_35 = arith.constant 0 : index
    %c1_36 = arith.constant 1 : index
    %c2_37 = arith.constant 2 : index
    %c0_38 = arith.constant 0 : index
    %19 = vector.load %arg7[%c0_35, %c1_36, %c2_37, %c0_38] : memref<1x18x18x4xbf16, #tpu.memory_space<vmem>>, vector<1x16x16x4xbf16>
    %20 = vector.shape_cast %19 : vector<1x16x16x4xbf16> to vector<256x4xbf16>
    %c0_39 = arith.constant 0 : index
    %c20 = arith.constant 20 : index
    %21 = vector.load %arg8[%c0_39, %c20] : memref<256x36xbf16, #tpu.memory_space<vmem>>, vector<256x4xbf16>
    tpu.vector_store %arg8[%c0_39, %c20], %20 {strides = array<i32>} : memref<256x36xbf16, #tpu.memory_space<vmem>>, vector<256x4xbf16>,
    %c0_40 = arith.constant 0 : index
    %c2_41 = arith.constant 2 : index
    %c0_42 = arith.constant 0 : index
    %c0_43 = arith.constant 0 : index
    %22 = vector.load %arg7[%c0_40, %c2_41, %c0_42, %c0_43] : memref<1x18x18x4xbf16, #tpu.memory_space<vmem>>, vector<1x16x16x4xbf16>
    %23 = vector.shape_cast %22 : vector<1x16x16x4xbf16> to vector<256x4xbf16>
    %c0_44 = arith.constant 0 : index
    %c24 = arith.constant 24 : index
    %24 = vector.load %arg8[%c0_44, %c24] : memref<256x36xbf16, #tpu.memory_space<vmem>>, vector<256x4xbf16>
    tpu.vector_store %arg8[%c0_44, %c24], %23 {strides = array<i32>} : memref<256x36xbf16, #tpu.memory_space<vmem>>, vector<256x4xbf16>,
    %c0_45 = arith.constant 0 : index
    %c2_46 = arith.constant 2 : index
    %c1_47 = arith.constant 1 : index
    %c0_48 = arith.constant 0 : index
    %25 = vector.load %arg7[%c0_45, %c2_46, %c1_47, %c0_48] : memref<1x18x18x4xbf16, #tpu.memory_space<vmem>>, vector<1x16x16x4xbf16>
    %26 = vector.shape_cast %25 : vector<1x16x16x4xbf16> to vector<256x4xbf16>
    %c0_49 = arith.constant 0 : index
    %c28 = arith.constant 28 : index
    %27 = vector.load %arg8[%c0_49, %c28] : memref<256x36xbf16, #tpu.memory_space<vmem>>, vector<256x4xbf16>
    tpu.vector_store %arg8[%c0_49, %c28], %26 {strides = array<i32>} : memref<256x36xbf16, #tpu.memory_space<vmem>>, vector<256x4xbf16>,
    %c0_50 = arith.constant 0 : index
    %c2_51 = arith.constant 2 : index
    %c2_52 = arith.constant 2 : index
    %c0_53 = arith.constant 0 : index
    %28 = vector.load %arg7[%c0_50, %c2_51, %c2_52, %c0_53] : memref<1x18x18x4xbf16, #tpu.memory_space<vmem>>, vector<1x16x16x4xbf16>
    %29 = vector.shape_cast %28 : vector<1x16x16x4xbf16> to vector<256x4xbf16>
    %c0_54 = arith.constant 0 : index
    %c32 = arith.constant 32 : index
    %30 = vector.load %arg8[%c0_54, %c32] : memref<256x36xbf16, #tpu.memory_space<vmem>>, vector<256x4xbf16>
    tpu.vector_store %arg8[%c0_54, %c32], %29 {strides = array<i32>} : memref<256x36xbf16, #tpu.memory_space<vmem>>, vector<256x4xbf16>,
    %c0_55 = arith.constant 0 : index
    %c0_56 = arith.constant 0 : index
    %31 = vector.load %arg8[%c0_55, %c0_56] : memref<256x36xbf16, #tpu.memory_space<vmem>>, vector<256x36xbf16>
    %c0_57 = arith.constant 0 : index
    %c0_58 = arith.constant 0 : index
    %32 = vector.load %arg2[%c0_57, %c0_58] : memref<36x32xbf16, #tpu.memory_space<vmem>>, vector<36x32xbf16>
    %cst_59 = arith.constant dense<0.000000e+00> : vector<256x32xf32>
    %33 = tpu.matmul %31, %32, %cst_59 {dimension_numbers = #tpu.dot_dimension_numbers<[1], [0], [0], [1], [0, 0, 1, 1], [], []>} : vector<256x36xbf16>, vector<36x32xbf16>, vector<256x32xf32> -> vector<256x32xf32>
    %c0_60 = arith.constant 0 : index
    %c0_61 = arith.constant 0 : index
    %34 = vector.load %arg3[%c0_60, %c0_61] : memref<1x32xf32, #tpu.memory_space<vmem>>, vector<1x32xf32>
    %35 = vector.broadcast %34 : vector<1x32xf32> to vector<256x32xf32>
    %36 = arith.addf %33, %35 : vector<256x32xf32>
    %cst_62 = arith.constant 0.000000e+00 : f32
    %37 = vector.broadcast %cst_62 : f32 to vector<256x32xf32>
    %38 = arith.maximumf %36, %37 : vector<256x32xf32>
    %39 = vector.shape_cast %38 : vector<256x32xf32> to vector<1x256x32xf32>
    %cst_63 = arith.constant dense<0.000000e+00> : vector<1x32xf32>
    %40 = vector.multi_reduction <add>, %39, %cst_63 [1] : vector<1x256x32xf32> to vector<1x32xf32>
    %cst_64 = arith.constant 3.906250e-03 : f32
    %41 = vector.broadcast %cst_64 : f32 to vector<1x32xf32>
    %42 = arith.mulf %40, %41 : vector<1x32xf32>
    %43 = arith.truncf %42 : vector<1x32xf32> to vector<1x32xbf16>
    %c0_65 = arith.constant 0 : index
    %c0_66 = arith.constant 0 : index
    %44 = vector.load %arg4[%c0_65, %c0_66] : memref<32x128xbf16, #tpu.memory_space<vmem>>, vector<32x128xbf16>
    %cst_67 = arith.constant dense<0.000000e+00> : vector<1x128xf32>
    %45 = tpu.matmul %43, %44, %cst_67 {dimension_numbers = #tpu.dot_dimension_numbers<[1], [0], [0], [1], [0, 0, 1, 1], [], []>} : vector<1x32xbf16>, vector<32x128xbf16>, vector<1x128xf32> -> vector<1x128xf32>
    %c0_68 = arith.constant 0 : index
    %c0_69 = arith.constant 0 : index
    %46 = vector.load %arg5[%c0_68, %c0_69] : memref<1x128xf32, #tpu.memory_space<vmem>>, vector<1x128xf32>
    %47 = arith.addf %45, %46 : vector<1x128xf32>
    %48 = vector.shape_cast %47 : vector<1x128xf32> to vector<1x1x128xf32>
    %c0_70 = arith.constant 0 : index
    %c0_71 = arith.constant 0 : index
    %c0_72 = arith.constant 0 : index
    %49 = vector.load %arg6[%c0_70, %c0_71, %c0_72] : memref<1x1x128xf32, #tpu.memory_space<vmem>>, vector<1x1x128xf32>
    tpu.vector_store %arg6[%c0_70, %c0_71, %c0_72], %48 {strides = array<i32>} : memref<1x1x128xf32, #tpu.memory_space<vmem>>, vector<1x1x128xf32>,
    return
  }
  func.func @transform_0(%arg0: i32) -> (i32, i32, i32, i32) {
    %c0_i32 = arith.constant 0 : i32
    %c0_i32_0 = arith.constant 0 : i32
    %c0_i32_1 = arith.constant 0 : i32
    %c0_i32_2 = arith.constant 0 : i32
    return %arg0, %c0_i32, %c0_i32_0, %c0_i32_1 : i32, i32, i32, i32
  }
  func.func @transform_1(%arg0: i32) -> (i32, i32) {
    %c0_i32 = arith.constant 0 : i32
    %c0_i32_0 = arith.constant 0 : i32
    %c0_i32_1 = arith.constant 0 : i32
    return %c0_i32, %c0_i32_0 : i32, i32
  }
  func.func @transform_2(%arg0: i32) -> (i32, i32) {
    %c0_i32 = arith.constant 0 : i32
    %c0_i32_0 = arith.constant 0 : i32
    %c0_i32_1 = arith.constant 0 : i32
    return %c0_i32, %c0_i32_0 : i32, i32
  }
  func.func @transform_3(%arg0: i32) -> (i32, i32) {
    %c0_i32 = arith.constant 0 : i32
    %c0_i32_0 = arith.constant 0 : i32
    %c0_i32_1 = arith.constant 0 : i32
    return %c0_i32, %c0_i32_0 : i32, i32
  }
  func.func @transform_4(%arg0: i32) -> (i32, i32) {
    %c0_i32 = arith.constant 0 : i32
    %c0_i32_0 = arith.constant 0 : i32
    %c0_i32_1 = arith.constant 0 : i32
    return %c0_i32, %c0_i32_0 : i32, i32
  }
  func.func @transform_5(%arg0: i32) -> (i32, i32, i32) {
    %c0_i32 = arith.constant 0 : i32
    %c0_i32_0 = arith.constant 0 : i32
    %c0_i32_1 = arith.constant 0 : i32
    return %arg0, %c0_i32, %c0_i32_0 : i32, i32, i32
  }
}

</mosaic_0001>

<llo_original>
// kernel: tpu_custom_call.1
$region0: #{tpu_custom_call.1}
  #allocation0 [shape = 'u32[]', space=smem, size = 0x4, offset = 0x4, fixed_abs, tag = 'smem constant byte address 0x4 - core index']
  #allocation1 [shape = 'u32[72,128]{1,0:T(1,128)}', space=vmem, size = 0x9000, scoped, tag = 'internal scratch']
  #allocation2 [shape = 'bf16[1,18,18,4]{3,2,1,0:T(8,128)(2,1)}', space=vmem, size = 0x1b000, scoped, tag = 'scratch operand']
  #allocation3 [shape = 'bf16[256,36]{1,0:T(8,128)(2,1)}', space=vmem, size = 0x10000, scoped, tag = 'scratch operand']
  %s0 = inlined_call_operand.vmem [shape: bf16[2,16,16,4], index: 0, kind: input, shape index: {}]
  %s1 = inlined_call_operand.vmem [shape: bf16[36,32], index: 1, kind: input, shape index: {}]
  %s2 = inlined_call_operand.vmem [shape: f32[1,32], index: 2, kind: input, shape index: {}]
  %s3 = inlined_call_operand.vmem [shape: bf16[32,128], index: 3, kind: input, shape index: {}]
  %s4 = inlined_call_operand.vmem [shape: f32[1,128], index: 4, kind: input, shape index: {}]
  %s5 = inlined_call_operand.hbm [shape: f32[2,1,128], index: 5, kind: output, shape index: {}]
  %s6 = sld [smem:[#allocation0]]
  $region53: #{tpu_custom_call.1} parent=0
    _
  %s8 = ssub.s32 1, %s6
  %s9 = scalar_select 0, %s8, %s6
  $region1: #{tpu_custom_call.1} parent=0
    #allocation4 [shape = 'u8[1024]{0}', space=vmem, size = 0x400, scoped, tag = 'output window, operand 0']
    #allocation5 [shape = 's32[2]{0}', space=sflag, size = 0x8, scoped, tag = 'scoped memory for tpu_custom_call.1']
    %10 = vsyncpa [#allocation5], 0
    %s11 = scalar_lea.sflag [#allocation5], 1
    %12 = vsyncpa %s11, 0
    loop: start=0, step=1, limit=4
    $region2: #{tpu_custom_call.1} parent=1 // loop_pre_header
      _
    $region3: #{tpu_custom_call.1} parent=1 // loop_header
      %s14 = sphi 0, %s18
      %p15 = scmp.ge.s32.totalorder %s14, 4
      %s24 = sphi 0, %s26
      %s27 = sphi 0, %s24
      %s28 = sphi 0, %s27
      %s44 = sphi 0, %s28
      %s48 = sphi 0, %s48
      %s50 = sphi 0, %s48
      %s51 = sphi 0, %s50
      %s65 = sphi 0, %s51
      %s69 = sphi 0, %s69
      %s71 = sphi 0, %s69
      %s72 = sphi 0, %s71
      %s86 = sphi 0, %s72
      %s90 = sphi 0, %s90
      %s92 = sphi 0, %s90
      %s93 = sphi 0, %s92
      %s107 = sphi 0, %s93
      %s111 = sphi 0, %s111
      %s113 = sphi 0, %s111
      %s114 = sphi 0, %s113
      %s128 = sphi 0, %s114
      %s134 = sphi 0, %s136
      %s137 = sphi 0, %s134
      %s138 = sphi 0, %s137
      %s154 = sphi 0, %s138
    $region4: #{tpu_custom_call.1} parent=1 // loop_header_branch
      %17 = sbr.rel (%p15) target = $region8
    $region5: #{tpu_custom_call.1} parent=1 // loop_body
      %s19 = ssub.s32 %s14, 1
      %s20 = ssub.s32 %s14, 2
      %s21 = sadd.s32 %s14, 1
      %s22 = ssub.s32 %s14, %s21
      %p23 = scmp.eq.s32.totalorder %s22, 0
      %s25 = sadd.s32 %s24, 1
      %s26 = scalar_select %p23, %s24, %s25
      %p29 = pneg %p23
      %p30 = scmp.eq.s32.totalorder %s14, 1
      %p31 = por %p29, %p30
      %p32 = scmp.ne.s32.totalorder %s24, %s27
      %p33 = scmp.eq.s32.totalorder %s14, 0
      %p34 = por %p32, %p33
      %p35 = scmp.ne.s32.totalorder %s24, %s27
      %p36 = scmp.eq.s32.totalorder %s19, 1
      %p37 = por %p35, %p36
      %p38 = scmp.ne.s32.totalorder %s27, %s28
      %p39 = scmp.eq.s32.totalorder %s19, 0
      %p40 = por %p38, %p39
      %p41 = scmp.ne.s32.totalorder %s27, %s28
      %p42 = scmp.eq.s32.totalorder %s20, 1
      %p43 = por %p41, %p42
      %p45 = scmp.ne.s32.totalorder %s28, %s44
      %p46 = scmp.eq.s32.totalorder %s20, 0
      %p47 = por %p45, %p46
      %s49 = sadd.s32 %s48, 1
      %p52 = scmp.eq.s32.totalorder %s14, 1
      %p53 = scmp.ne.s32.totalorder %s48, %s50
      %p54 = scmp.eq.s32.totalorder %s14, 0
      %p55 = por %p53, %p54
      %p56 = scmp.ne.s32.totalorder %s48, %s50
      %p57 = scmp.eq.s32.totalorder %s19, 1
      %p58 = por %p56, %p57
      %p59 = scmp.ne.s32.totalorder %s50, %s51
      %p60 = scmp.eq.s32.totalorder %s19, 0
      %p61 = por %p59, %p60
      %p62 = scmp.ne.s32.totalorder %s50, %s51
      %p63 = scmp.eq.s32.totalorder %s20, 1
      %p64 = por %p62, %p63
      %p66 = scmp.ne.s32.totalorder %s51, %s65
      %p67 = scmp.eq.s32.totalorder %s20, 0
      %p68 = por %p66, %p67
      %s70 = sadd.s32 %s69, 1
      %p73 = scmp.eq.s32.totalorder %s14, 1
      %p74 = scmp.ne.s32.totalorder %s69, %s71
      %p75 = scmp.eq.s32.totalorder %s14, 0
      %p76 = por %p74, %p75
      %p77 = scmp.ne.s32.totalorder %s69, %s71
      %p78 = scmp.eq.s32.totalorder %s19, 1
      %p79 = por %p77, %p78
      %p80 = scmp.ne.s32.totalorder %s71, %s72
      %p81 = scmp.eq.s32.totalorder %s19, 0
      %p82 = por %p80, %p81
      %p83 = scmp.ne.s32.totalorder %s71, %s72
      %p84 = scmp.eq.s32.totalorder %s20, 1
      %p85 = por %p83, %p84
      %p87 = scmp.ne.s32.totalorder %s72, %s86
      %p88 = scmp.eq.s32.totalorder %s20, 0
      %p89 = por %p87, %p88
      %s91 = sadd.s32 %s90, 1
      %p94 = scmp.eq.s32.totalorder %s14, 1
      %p95 = scmp.ne.s32.totalorder %s90, %s92
      %p96 = scmp.eq.s32.totalorder %s14, 0
      %p97 = por %p95, %p96
      %p98 = scmp.ne.s32.totalorder %s90, %s92
      %p99 = scmp.eq.s32.totalorder %s19, 1
      %p100 = por %p98, %p99
      %p101 = scmp.ne.s32.totalorder %s92, %s93
      %p102 = scmp.eq.s32.totalorder %s19, 0
      %p103 = por %p101, %p102
      %p104 = scmp.ne.s32.totalorder %s92, %s93
      %p105 = scmp.eq.s32.totalorder %s20, 1
      %p106 = por %p104, %p105
      %p108 = scmp.ne.s32.totalorder %s93, %s107
      %p109 = scmp.eq.s32.totalorder %s20, 0
      %p110 = por %p108, %p109
      %s112 = sadd.s32 %s111, 1
      %p115 = scmp.eq.s32.totalorder %s14, 1
      %p116 = scmp.ne.s32.totalorder %s111, %s113
      %p117 = scmp.eq.s32.totalorder %s14, 0
      %p118 = por %p116, %p117
      %p119 = scmp.ne.s32.totalorder %s111, %s113
      %p120 = scmp.eq.s32.totalorder %s19, 1
      %p121 = por %p119, %p120
      %p122 = scmp.ne.s32.totalorder %s113, %s114
      %p123 = scmp.eq.s32.totalorder %s19, 0
      %p124 = por %p122, %p123
      %p125 = scmp.ne.s32.totalorder %s113, %s114
      %p126 = scmp.eq.s32.totalorder %s20, 1
      %p127 = por %p125, %p126
      %p129 = scmp.ne.s32.totalorder %s114, %s128
      %p130 = scmp.eq.s32.totalorder %s20, 0
      %p131 = por %p129, %p130
      %s132 = ssub.s32 %s14, %s21
      %p133 = scmp.eq.s32.totalorder %s132, 0
      %s135 = sadd.s32 %s134, 1
      %s136 = scalar_select %p133, %s134, %s135
      %p139 = pneg %p133
      %p140 = scmp.eq.s32.totalorder %s14, 1
      %p141 = por %p139, %p140
      %p142 = scmp.ne.s32.totalorder %s134, %s137
      %p143 = scmp.eq.s32.totalorder %s14, 0
      %p144 = por %p142, %p143
      %p145 = scmp.ne.s32.totalorder %s134, %s137
      %p146 = scmp.eq.s32.totalorder %s19, 1
      %p147 = por %p145, %p146
      %p148 = scmp.ne.s32.totalorder %s137, %s138
      %p149 = scmp.eq.s32.totalorder %s19, 0
      %p150 = por %p148, %p149
      %p151 = scmp.ne.s32.totalorder %s137, %s138
      %p152 = scmp.eq.s32.totalorder %s20, 1
      %p153 = por %p151, %p152
      %p155 = scmp.ne.s32.totalorder %s138, %s154
      %p156 = scmp.eq.s32.totalorder %s20, 0
      %p157 = por %p155, %p156
      %p158 = scmp.le.s32.totalorder 1, %s14
      %p159 = scmp.lt.s32.totalorder %s14, 3
      %p160 = pnand %p158, %p159
      %p161 = pneg %p160
      // Predicated region
      $region9: #{tpu_custom_call.1} parent=5 // pred_check
        _
      $region10: #{tpu_custom_call.1} parent=5 // pred_check_branch
        %163 = sbr.rel (%p160) target = $region12
      $region11: #{tpu_custom_call.1} parent=5 // pred_region
        %s164 = ssub.s32 %s14, 1
        // Predicated region
        $region13: #{tpu_custom_call.1} parent=11 // pred_check
          %p165 = pneg %p61
        $region14: #{tpu_custom_call.1} parent=11 // pred_check_branch
          %167 = sbr.rel (%p165) target = $region16
        $region15: #{tpu_custom_call.1} parent=11 // pred_region
          _
        $region16: #{tpu_custom_call.1} parent=11 // pred_fallthru
          _
        // Predicated region
        $region17: #{tpu_custom_call.1} parent=11 // pred_check
          %p168 = pneg %p82
        $region18: #{tpu_custom_call.1} parent=11 // pred_check_branch
          %170 = sbr.rel (%p168) target = $region20
        $region19: #{tpu_custom_call.1} parent=11 // pred_region
          _
        $region20: #{tpu_custom_call.1} parent=11 // pred_fallthru
          _
        // Predicated region
        $region21: #{tpu_custom_call.1} parent=11 // pred_check
          %p171 = pneg %p103
        $region22: #{tpu_custom_call.1} parent=11 // pred_check_branch
          %173 = sbr.rel (%p171) target = $region24
        $region23: #{tpu_custom_call.1} parent=11 // pred_region
          _
        $region24: #{tpu_custom_call.1} parent=11 // pred_fallthru
          _
        // Predicated region
        $region25: #{tpu_custom_call.1} parent=11 // pred_check
          %p174 = pneg %p124
        $region26: #{tpu_custom_call.1} parent=11 // pred_check_branch
          %176 = sbr.rel (%p174) target = $region28
        $region27: #{tpu_custom_call.1} parent=11 // pred_region
          _
        $region28: #{tpu_custom_call.1} parent=11 // pred_fallthru
          _
      $region12: #{tpu_custom_call.1} parent=5 // pred_fallthru
        _
      %p177 = scmp.lt.s32.totalorder %s14, 2
      // Predicated region
      $region29: #{tpu_custom_call.1} parent=5 // pred_check
        %p178 = pneg %p177
      $region30: #{tpu_custom_call.1} parent=5 // pred_check_branch
        %180 = sbr.rel (%p178) target = $region32
      $region31: #{tpu_custom_call.1} parent=5 // pred_region
        // Predicated region
        $region33: #{tpu_custom_call.1} parent=31 // pred_check
          %p181 = pneg %p34
        $region34: #{tpu_custom_call.1} parent=31 // pred_check_branch
          %183 = sbr.rel (%p181) target = $region36
        $region35: #{tpu_custom_call.1} parent=31 // pred_region
          %p184 = scmp.lt.s32.totalorder %s14, 1
          %s185 = scalar_select %p184, %s14, 1
          %s186 = smul.addr %s185, 32
          %s187 = smul.addr %s186, 4
          %s188 = scalar_lea.vmem %s0, %s187
        $region36: #{tpu_custom_call.1} parent=31 // pred_fallthru
          _
      $region32: #{tpu_custom_call.1} parent=5 // pred_fallthru
        _
      %p189 = scmp.le.s32.totalorder 1, %s14
      %p190 = scmp.lt.s32.totalorder %s14, 3
      %p191 = pnand %p189, %p190
      %p192 = pneg %p191
      // Predicated region
      $region37: #{tpu_custom_call.1} parent=5 // pred_check
        _
      $region38: #{tpu_custom_call.1} parent=5 // pred_check_branch
        %194 = sbr.rel (%p191) target = $region40
      $region39: #{tpu_custom_call.1} parent=5 // pred_region
        %s195 = ssub.s32 %s14, 1
        %p196 = scmp.lt.s32.totalorder %s19, 1
        %s197 = scalar_select %p196, %s19, 1
        %s198 = smul.addr %s197, 32
        %s199 = smul.addr %s198, 4
        %s200 = scalar_lea.vmem %s0, %s199
        %p201 = pneg %p40
        %p202 = pneg %p37
        %p203 = pneg %p61
        %p204 = pneg %p58
        %p205 = pneg %p82
        %p206 = pneg %p79
        %p207 = pneg %p103
        %p208 = pneg %p100
        %p209 = pneg %p124
        %p210 = pneg %p121
        %p211 = pneg %p150
        %p212 = pneg %p147
        %s213 = sand.u32 %s137, 1
        %s214 = scalar_lea.sflag [#allocation5], %s213
        %s215 = sand.u32 %s137, 1
        %s216 = scalar_lea.vmem [#allocation4], %s215
        %p217 = scmp.lt.s32.totalorder %s19, 1
        %s218 = scalar_select %p217, %s19, 1
        %s219 = smul.addr %s218, 32
        %s220 = smul.addr %s219, 4
        %s221 = scalar_lea.vmem %s0, %s220
        %vm223 = vcmask 27648
        %224 = vst.msk [vmem:[#allocation2] sm:$0xf] %vm223, 0
        %225 = vst.msk [vmem:[#allocation2 + $0x4] sm:$0xf] %vm223, 0
        %vm226 = vcmask 24576
        %227 = vst.msk [vmem:[#allocation2 + $0x8] sm:$0x1] %vm226, 0
        %228 = vst.msk [vmem:[#allocation2 + $0xc] sm:$0xf] %vm223, 0
        %229 = vst.msk [vmem:[#allocation2 + $0x10] sm:$0xf] %vm223, 0
        %230 = vst.msk [vmem:[#allocation2 + $0x14] sm:$0x1] %vm226, 0
        %231 = vst.msk [vmem:[#allocation2 + $0x18] sm:$0xf] %vm223, 0
        %232 = vst.msk [vmem:[#allocation2 + $0x1c] sm:$0xf] %vm223, 0
        %233 = vst.msk [vmem:[#allocation2 + $0x20] sm:$0x1] %vm226, 0
        %234 = vst.msk [vmem:[#allocation2 + $0x24] sm:$0xf] %vm223, 0
        %235 = vst.msk [vmem:[#allocation2 + $0x28] sm:$0xf] %vm223, 0
        %236 = vst.msk [vmem:[#allocation2 + $0x2c] sm:$0x1] %vm226, 0
        %237 = vst.msk [vmem:[#allocation2 + $0x30] sm:$0xf] %vm223, 0
        %238 = vst.msk [vmem:[#allocation2 + $0x34] sm:$0xf] %vm223, 0
        %239 = vst.msk [vmem:[#allocation2 + $0x38] sm:$0x1] %vm226, 0
        %240 = vst.msk [vmem:[#allocation2 + $0x3c] sm:$0xf] %vm223, 0
        %241 = vst.msk [vmem:[#allocation2 + $0x40] sm:$0xf] %vm223, 0
        %242 = vst.msk [vmem:[#allocation2 + $0x44] sm:$0x1] %vm226, 0
        %243 = vst.msk [vmem:[#allocation2 + $0x48] sm:$0xf] %vm223, 0
        %244 = vst.msk [vmem:[#allocation2 + $0x4c] sm:$0xf] %vm223, 0
        %245 = vst.msk [vmem:[#allocation2 + $0x50] sm:$0x1] %vm226, 0
        %246 = vst.msk [vmem:[#allocation2 + $0x54] sm:$0xf] %vm223, 0
        %247 = vst.msk [vmem:[#allocation2 + $0x58] sm:$0xf] %vm223, 0
        %248 = vst.msk [vmem:[#allocation2 + $0x5c] sm:$0x1] %vm226, 0
        %249 = vst.msk [vmem:[#allocation2 + $0x60] sm:$0xf] %vm223, 0
        %250 = vst.msk [vmem:[#allocation2 + $0x64] sm:$0xf] %vm223, 0
        %251 = vst.msk [vmem:[#allocation2 + $0x68] sm:$0x1] %vm226, 0
        %252 = vst.msk [vmem:[#allocation2 + $0x6c] sm:$0xf] %vm223, 0
        %253 = vst.msk [vmem:[#allocation2 + $0x70] sm:$0xf] %vm223, 0
        %254 = vst.msk [vmem:[#allocation2 + $0x74] sm:$0x1] %vm226, 0
        %255 = vst.msk [vmem:[#allocation2 + $0x78] sm:$0xf] %vm223, 0
        %256 = vst.msk [vmem:[#allocation2 + $0x7c] sm:$0xf] %vm223, 0
        %257 = vst.msk [vmem:[#allocation2 + $0x80] sm:$0x1] %vm226, 0
        %258 = vst.msk [vmem:[#allocation2 + $0x84] sm:$0xf] %vm223, 0
        %259 = vst.msk [vmem:[#allocation2 + $0x88] sm:$0xf] %vm223, 0
        %260 = vst.msk [vmem:[#allocation2 + $0x8c] sm:$0x1] %vm226, 0
        %261 = vst.msk [vmem:[#allocation2 + $0x90] sm:$0xf] %vm223, 0
        %262 = vst.msk [vmem:[#allocation2 + $0x94] sm:$0xf] %vm223, 0
        %263 = vst.msk [vmem:[#allocation2 + $0x98] sm:$0x1] %vm226, 0
        %264 = vst.msk [vmem:[#allocation2 + $0x9c] sm:$0xf] %vm223, 0
        %265 = vst.msk [vmem:[#allocation2 + $0xa0] sm:$0xf] %vm223, 0
        %266 = vst.msk [vmem:[#allocation2 + $0xa4] sm:$0x1] %vm226, 0
        %267 = vst.msk [vmem:[#allocation2 + $0xa8] sm:$0xf] %vm223, 0
        %268 = vst.msk [vmem:[#allocation2 + $0xac] sm:$0xf] %vm223, 0
        %269 = vst.msk [vmem:[#allocation2 + $0xb0] sm:$0x1] %vm226, 0
        %270 = vst.msk [vmem:[#allocation2 + $0xb4] sm:$0xf] %vm223, 0
        %271 = vst.msk [vmem:[#allocation2 + $0xb8] sm:$0xf] %vm223, 0
        %272 = vst.msk [vmem:[#allocation2 + $0xbc] sm:$0x1] %vm226, 0
        %273 = vst.msk [vmem:[#allocation2 + $0xc0] sm:$0xf] %vm223, 0
        %274 = vst.msk [vmem:[#allocation2 + $0xc4] sm:$0xf] %vm223, 0
        %275 = vst.msk [vmem:[#allocation2 + $0xc8] sm:$0x1] %vm226, 0
        %276 = vst.msk [vmem:[#allocation2 + $0xcc] sm:$0xf] %vm223, 0
        %277 = vst.msk [vmem:[#allocation2 + $0xd0] sm:$0xf] %vm223, 0
        %278 = vst.msk [vmem:[#allocation2 + $0xd4] sm:$0x1] %vm226, 0
        %v279 = vld [vmem:[%s221] sm:$0xf]
        %v280 = vld [vmem:[%s221 + $0x4] sm:$0xf]
        %v281 = vld [vmem:[%s221 + $0x8] sm:$0xf]
        %v282 = vld [vmem:[%s221 + $0xc] sm:$0xf]
        %v283 = vld [vmem:[%s221 + $0x10] sm:$0xf]
        %v284 = vld [vmem:[%s221 + $0x14] sm:$0xf]
        %v285 = vld [vmem:[%s221 + $0x18] sm:$0xf]
        %v286 = vld [vmem:[%s221 + $0x1c] sm:$0xf]
        %v287 = vld [vmem:[%s221 + $0x20] sm:$0xf]
        %v288 = vld [vmem:[%s221 + $0x24] sm:$0xf]
        %v289 = vld [vmem:[%s221 + $0x28] sm:$0xf]
        %v290 = vld [vmem:[%s221 + $0x2c] sm:$0xf]
        %v291 = vld [vmem:[%s221 + $0x30] sm:$0xf]
        %v292 = vld [vmem:[%s221 + $0x34] sm:$0xf]
        %v293 = vld [vmem:[%s221 + $0x38] sm:$0xf]
        %v294 = vld [vmem:[%s221 + $0x3c] sm:$0xf]
        %v295 = vld [vmem:[%s221 + $0x40] sm:$0xf]
        %v296 = vld [vmem:[%s221 + $0x44] sm:$0xf]
        %v297 = vld [vmem:[%s221 + $0x48] sm:$0xf]
        %v298 = vld [vmem:[%s221 + $0x4c] sm:$0xf]
        %v299 = vld [vmem:[%s221 + $0x50] sm:$0xf]
        %v300 = vld [vmem:[%s221 + $0x54] sm:$0xf]
        %v301 = vld [vmem:[%s221 + $0x58] sm:$0xf]
        %v302 = vld [vmem:[%s221 + $0x5c] sm:$0xf]
        %v303 = vld [vmem:[%s221 + $0x60] sm:$0xf]
        %v304 = vld [vmem:[%s221 + $0x64] sm:$0xf]
        %v305 = vld [vmem:[%s221 + $0x68] sm:$0xf]
        %v306 = vld [vmem:[%s221 + $0x6c] sm:$0xf]
        %v307 = vld [vmem:[%s221 + $0x70] sm:$0xf]
        %v308 = vld [vmem:[%s221 + $0x74] sm:$0xf]
        %v309 = vld [vmem:[%s221 + $0x78] sm:$0xf]
        %v310 = vld [vmem:[%s221 + $0x7c] sm:$0xf]
        %vm311 = vsmask.f32 256
        %vm312 = vsmask.f32 4368
        %vm313 = vmor %vm311, %vm312
        %v315 = vshrl.u32 %v279, 16
        %v317 = vrot.slane %v315, 7
        %v318 = vshll.u32 %v279, 16
        %v320 = vor.u32 %v317, %v318
        %v321 = vrot.slane %v317, 4
        %v323 = vshrl.u32 %v280, 16
        %v325 = vrot.slane %v323, 7
        %v326 = vshll.u32 %v280, 16
        %v328 = vor.u32 %v325, %v326
        %v329 = vsel %vm313, %v321, %v328
        %v330 = vrot.slane %v325, 4
        %v332 = vshrl.u32 %v281, 16
        %v334 = vrot.slane %v332, 7
        %v335 = vshll.u32 %v281, 16
        %v337 = vor.u32 %v334, %v335
        %v338 = vrot.slane %v334, 4
        %v340 = vshrl.u32 %v282, 16
        %v342 = vrot.slane %v340, 7
        %v343 = vshll.u32 %v282, 16
        %v345 = vor.u32 %v342, %v343
        %v346 = vsel %vm313, %v338, %v345
        %v347 = vrot.slane %v342, 4
        %v349 = vshrl.u32 %v283, 16
        %v351 = vrot.slane %v349, 7
        %v352 = vshll.u32 %v283, 16
        %v354 = vor.u32 %v351, %v352
        %v355 = vrot.slane %v351, 4
        %v357 = vshrl.u32 %v284, 16
        %v359 = vrot.slane %v357, 7
        %v360 = vshll.u32 %v284, 16
        %v362 = vor.u32 %v359, %v360
        %v363 = vsel %vm313, %v355, %v362
        %v364 = vrot.slane %v359, 4
        %v366 = vshrl.u32 %v285, 16
        %v368 = vrot.slane %v366, 7
        %v369 = vshll.u32 %v285, 16
        %v371 = vor.u32 %v368, %v369
        %v372 = vrot.slane %v368, 4
        %v374 = vshrl.u32 %v286, 16
        %v376 = vrot.slane %v374, 7
        %v377 = vshll.u32 %v286, 16
        %v379 = vor.u32 %v376, %v377
        %v380 = vsel %vm313, %v372, %v379
        %v381 = vrot.slane %v376, 4
        %v383 = vshrl.u32 %v287, 16
        %v385 = vrot.slane %v383, 7
        %v386 = vshll.u32 %v287, 16
        %v388 = vor.u32 %v385, %v386
        %v389 = vrot.slane %v385, 4
        %v391 = vshrl.u32 %v288, 16
        %v393 = vrot.slane %v391, 7
        %v394 = vshll.u32 %v288, 16
        %v396 = vor.u32 %v393, %v394
        %v397 = vsel %vm313, %v389, %v396
        %v398 = vrot.slane %v393, 4
        %v400 = vshrl.u32 %v289, 16
        %v402 = vrot.slane %v400, 7
        %v403 = vshll.u32 %v289, 16
        %v405 = vor.u32 %v402, %v403
        %v406 = vrot.slane %v402, 4
        %v408 = vshrl.u32 %v290, 16
        %v410 = vrot.slane %v408, 7
        %v411 = vshll.u32 %v290, 16
        %v413 = vor.u32 %v410, %v411
        %v414 = vsel %vm313, %v406, %v413
        %v415 = vrot.slane %v410, 4
        %v417 = vshrl.u32 %v291, 16
        %v419 = vrot.slane %v417, 7
        %v420 = vshll.u32 %v291, 16
        %v422 = vor.u32 %v419, %v420
        %v423 = vrot.slane %v419, 4
        %v425 = vshrl.u32 %v292, 16
        %v427 = vrot.slane %v425, 7
        %v428 = vshll.u32 %v292, 16
        %v430 = vor.u32 %v427, %v428
        %v431 = vsel %vm313, %v423, %v430
        %v432 = vrot.slane %v427, 4
        %v434 = vshrl.u32 %v293, 16
        %v436 = vrot.slane %v434, 7
        %v437 = vshll.u32 %v293, 16
        %v439 = vor.u32 %v436, %v437
        %v440 = vrot.slane %v436, 4
        %v442 = vshrl.u32 %v294, 16
        %v444 = vrot.slane %v442, 7
        %v445 = vshll.u32 %v294, 16
        %v447 = vor.u32 %v444, %v445
        %v448 = vsel %vm313, %v440, %v447
        %v449 = vrot.slane %v444, 4
        %v451 = vshrl.u32 %v295, 16
        %v453 = vrot.slane %v451, 7
        %v454 = vshll.u32 %v295, 16
        %v456 = vor.u32 %v453, %v454
        %v457 = vrot.slane %v453, 4
        %v459 = vshrl.u32 %v296, 16
        %v461 = vrot.slane %v459, 7
        %v462 = vshll.u32 %v296, 16
        %v464 = vor.u32 %v461, %v462
        %v465 = vsel %vm313, %v457, %v464
        %v466 = vrot.slane %v461, 4
        %v468 = vshrl.u32 %v297, 16
        %v470 = vrot.slane %v468, 7
        %v471 = vshll.u32 %v297, 16
        %v473 = vor.u32 %v470, %v471
        %v474 = vrot.slane %v470, 4
        %v476 = vshrl.u32 %v298, 16
        %v478 = vrot.slane %v476, 7
        %v479 = vshll.u32 %v298, 16
        %v481 = vor.u32 %v478, %v479
        %v482 = vsel %vm313, %v474, %v481
        %v483 = vrot.slane %v478, 4
        %v485 = vshrl.u32 %v299, 16
        %v487 = vrot.slane %v485, 7
        %v488 = vshll.u32 %v299, 16
        %v490 = vor.u32 %v487, %v488
        %v491 = vrot.slane %v487, 4
        %v493 = vshrl.u32 %v300, 16
        %v495 = vrot.slane %v493, 7
        %v496 = vshll.u32 %v300, 16
        %v498 = vor.u32 %v495, %v496
        %v499 = vsel %vm313, %v491, %v498
        %v500 = vrot.slane %v495, 4
        %v502 = vshrl.u32 %v301, 16
        %v504 = vrot.slane %v502, 7
        %v505 = vshll.u32 %v301, 16
        %v507 = vor.u32 %v504, %v505
        %v508 = vrot.slane %v504, 4
        %v510 = vshrl.u32 %v302, 16
        %v512 = vrot.slane %v510, 7
        %v513 = vshll.u32 %v302, 16
        %v515 = vor.u32 %v512, %v513
        %v516 = vsel %vm313, %v508, %v515
        %v517 = vrot.slane %v512, 4
        %v519 = vshrl.u32 %v303, 16
        %v521 = vrot.slane %v519, 7
        %v522 = vshll.u32 %v303, 16
        %v524 = vor.u32 %v521, %v522
        %v525 = vrot.slane %v521, 4
        %v527 = vshrl.u32 %v304, 16
        %v529 = vrot.slane %v527, 7
        %v530 = vshll.u32 %v304, 16
        %v532 = vor.u32 %v529, %v530
        %v533 = vsel %vm313, %v525, %v532
        %v534 = vrot.slane %v529, 4
        %v536 = vshrl.u32 %v305, 16
        %v538 = vrot.slane %v536, 7
        %v539 = vshll.u32 %v305, 16
        %v541 = vor.u32 %v538, %v539
        %v542 = vrot.slane %v538, 4
        %v544 = vshrl.u32 %v306, 16
        %v546 = vrot.slane %v544, 7
        %v547 = vshll.u32 %v306, 16
        %v549 = vor.u32 %v546, %v547
        %v550 = vsel %vm313, %v542, %v549
        %v551 = vrot.slane %v546, 4
        %v553 = vshrl.u32 %v307, 16
        %v555 = vrot.slane %v553, 7
        %v556 = vshll.u32 %v307, 16
        %v558 = vor.u32 %v555, %v556
        %v559 = vrot.slane %v555, 4
        %v561 = vshrl.u32 %v308, 16
        %v563 = vrot.slane %v561, 7
        %v564 = vshll.u32 %v308, 16
        %v566 = vor.u32 %v563, %v564
        %v567 = vsel %vm313, %v559, %v566
        %v568 = vrot.slane %v563, 4
        %v570 = vshrl.u32 %v309, 16
        %v572 = vrot.slane %v570, 7
        %v573 = vshll.u32 %v309, 16
        %v575 = vor.u32 %v572, %v573
        %v576 = vrot.slane %v572, 4
        %v578 = vshrl.u32 %v310, 16
        %v580 = vrot.slane %v578, 7
        %v581 = vshll.u32 %v310, 16
        %v583 = vor.u32 %v580, %v581
        %v584 = vsel %vm313, %v576, %v583
        %v585 = vrot.slane %v580, 4
        %s634 = scalar_lea.vmem [#allocation2], 12
        %vm635 = vcmask 27648
        %vm636 = vsmask.f32 7938
        %vm637 = vmand %vm635, %vm636
        %v638 = vld [vmem:[%s634] sm:$0xf]
        %v639 = vsel %vm637, %v320, %v638
        %640 = vst [vmem:[%s634] sm:$0xf] %v639
        %641 = vst.msk [vmem:[%s634 + $0x4] sm:$0xf] %vm223, %v329
        %vm642 = vcmask 24576
        %vm643 = vmand %vm642, %vm311
        %v644 = vld [vmem:[%s634 + $0x8] sm:$0x1]
        %v645 = vsel %vm643, %v330, %v644
        %646 = vst [vmem:[%s634 + $0x8] sm:$0x1] %v645
        %v647 = vld [vmem:[%s634 + $0xc] sm:$0xf]
        %v648 = vsel %vm637, %v337, %v647
        %649 = vst [vmem:[%s634 + $0xc] sm:$0xf] %v648
        %650 = vst.msk [vmem:[%s634 + $0x10] sm:$0xf] %vm223, %v346
        %v651 = vld [vmem:[%s634 + $0x14] sm:$0x1]
        %v652 = vsel %vm643, %v347, %v651
        %653 = vst [vmem:[%s634 + $0x14] sm:$0x1] %v652
        %v654 = vld [vmem:[%s634 + $0x18] sm:$0xf]
        %v655 = vsel %vm637, %v354, %v654
        %656 = vst [vmem:[%s634 + $0x18] sm:$0xf] %v655
        %657 = vst.msk [vmem:[%s634 + $0x1c] sm:$0xf] %vm223, %v363
        %v658 = vld [vmem:[%s634 + $0x20] sm:$0x1]
        %v659 = vsel %vm643, %v364, %v658
        %660 = vst [vmem:[%s634 + $0x20] sm:$0x1] %v659
        %v661 = vld [vmem:[%s634 + $0x24] sm:$0xf]
        %v662 = vsel %vm637, %v371, %v661
        %663 = vst [vmem:[%s634 + $0x24] sm:$0xf] %v662
        %664 = vst.msk [vmem:[%s634 + $0x28] sm:$0xf] %vm223, %v380
        %v665 = vld [vmem:[%s634 + $0x2c] sm:$0x1]
        %v666 = vsel %vm643, %v381, %v665
        %667 = vst [vmem:[%s634 + $0x2c] sm:$0x1] %v666
        %v668 = vld [vmem:[%s634 + $0x30] sm:$0xf]
        %v669 = vsel %vm637, %v388, %v668
        %670 = vst [vmem:[%s634 + $0x30] sm:$0xf] %v669
        %671 = vst.msk [vmem:[%s634 + $0x34] sm:$0xf] %vm223, %v397
        %v672 = vld [vmem:[%s634 + $0x38] sm:$0x1]
        %v673 = vsel %vm643, %v398, %v672
        %674 = vst [vmem:[%s634 + $0x38] sm:$0x1] %v673
        %v675 = vld [vmem:[%s634 + $0x3c] sm:$0xf]
        %v676 = vsel %vm637, %v405, %v675
        %677 = vst [vmem:[%s634 + $0x3c] sm:$0xf] %v676
        %678 = vst.msk [vmem:[%s634 + $0x40] sm:$0xf] %vm223, %v414
        %v679 = vld [vmem:[%s634 + $0x44] sm:$0x1]
        %v680 = vsel %vm643, %v415, %v679
        %681 = vst [vmem:[%s634 + $0x44] sm:$0x1] %v680
        %v682 = vld [vmem:[%s634 + $0x48] sm:$0xf]
        %v683 = vsel %vm637, %v422, %v682
        %684 = vst [vmem:[%s634 + $0x48] sm:$0xf] %v683
        %685 = vst.msk [vmem:[%s634 + $0x4c] sm:$0xf] %vm223, %v431
        %v686 = vld [vmem:[%s634 + $0x50] sm:$0x1]
        %v687 = vsel %vm643, %v432, %v686
        %688 = vst [vmem:[%s634 + $0x50] sm:$0x1] %v687
        %v689 = vld [vmem:[%s634 + $0x54] sm:$0xf]
        %v690 = vsel %vm637, %v439, %v689
        %691 = vst [vmem:[%s634 + $0x54] sm:$0xf] %v690
        %692 = vst.msk [vmem:[%s634 + $0x58] sm:$0xf] %vm223, %v448
        %v693 = vld [vmem:[%s634 + $0x5c] sm:$0x1]
        %v694 = vsel %vm643, %v449, %v693
        %695 = vst [vmem:[%s634 + $0x5c] sm:$0x1] %v694
        %v696 = vld [vmem:[%s634 + $0x60] sm:$0xf]
        %v697 = vsel %vm637, %v456, %v696
        %698 = vst [vmem:[%s634 + $0x60] sm:$0xf] %v697
        %699 = vst.msk [vmem:[%s634 + $0x64] sm:$0xf] %vm223, %v465
        %v700 = vld [vmem:[%s634 + $0x68] sm:$0x1]
        %v701 = vsel %vm643, %v466, %v700
        %702 = vst [vmem:[%s634 + $0x68] sm:$0x1] %v701
        %v703 = vld [vmem:[%s634 + $0x6c] sm:$0xf]
        %v704 = vsel %vm637, %v473, %v703
        %705 = vst [vmem:[%s634 + $0x6c] sm:$0xf] %v704
        %706 = vst.msk [vmem:[%s634 + $0x70] sm:$0xf] %vm223, %v482
        %v707 = vld [vmem:[%s634 + $0x74] sm:$0x1]
        %v708 = vsel %vm643, %v483, %v707
        %709 = vst [vmem:[%s634 + $0x74] sm:$0x1] %v708
        %v710 = vld [vmem:[%s634 + $0x78] sm:$0xf]
        %v711 = vsel %vm637, %v490, %v710
        %712 = vst [vmem:[%s634 + $0x78] sm:$0xf] %v711
        %713 = vst.msk [vmem:[%s634 + $0x7c] sm:$0xf] %vm223, %v499
        %v714 = vld [vmem:[%s634 + $0x80] sm:$0x1]
        %v715 = vsel %vm643, %v500, %v714
        %716 = vst [vmem:[%s634 + $0x80] sm:$0x1] %v715
        %v717 = vld [vmem:[%s634 + $0x84] sm:$0xf]
        %v718 = vsel %vm637, %v507, %v717
        %719 = vst [vmem:[%s634 + $0x84] sm:$0xf] %v718
        %720 = vst.msk [vmem:[%s634 + $0x88] sm:$0xf] %vm223, %v516
        %v721 = vld [vmem:[%s634 + $0x8c] sm:$0x1]
        %v722 = vsel %vm643, %v517, %v721
        %723 = vst [vmem:[%s634 + $0x8c] sm:$0x1] %v722
        %v724 = vld [vmem:[%s634 + $0x90] sm:$0xf]
        %v725 = vsel %vm637, %v524, %v724
        %726 = vst [vmem:[%s634 + $0x90] sm:$0xf] %v725
        %727 = vst.msk [vmem:[%s634 + $0x94] sm:$0xf] %vm223, %v533
        %v728 = vld [vmem:[%s634 + $0x98] sm:$0x1]
        %v729 = vsel %vm643, %v534, %v728
        %730 = vst [vmem:[%s634 + $0x98] sm:$0x1] %v729
        %v731 = vld [vmem:[%s634 + $0x9c] sm:$0xf]
        %v732 = vsel %vm637, %v541, %v731
        %733 = vst [vmem:[%s634 + $0x9c] sm:$0xf] %v732
        %734 = vst.msk [vmem:[%s634 + $0xa0] sm:$0xf] %vm223, %v550
        %v735 = vld [vmem:[%s634 + $0xa4] sm:$0x1]
        %v736 = vsel %vm643, %v551, %v735
        %737 = vst [vmem:[%s634 + $0xa4] sm:$0x1] %v736
        %v738 = vld [vmem:[%s634 + $0xa8] sm:$0xf]
        %v739 = vsel %vm637, %v558, %v738
        %740 = vst [vmem:[%s634 + $0xa8] sm:$0xf] %v739
        %741 = vst.msk [vmem:[%s634 + $0xac] sm:$0xf] %vm223, %v567
        %v742 = vld [vmem:[%s634 + $0xb0] sm:$0x1]
        %v743 = vsel %vm643, %v568, %v742
        %744 = vst [vmem:[%s634 + $0xb0] sm:$0x1] %v743
        %v745 = vld [vmem:[%s634 + $0xb4] sm:$0xf]
        %v746 = vsel %vm637, %v575, %v745
        %747 = vst [vmem:[%s634 + $0xb4] sm:$0xf] %v746
        %748 = vst.msk [vmem:[%s634 + $0xb8] sm:$0xf] %vm223, %v584
        %v749 = vld [vmem:[%s634 + $0xbc] sm:$0x1]
        %v750 = vsel %vm643, %v585, %v749
        %751 = vst [vmem:[%s634 + $0xbc] sm:$0x1] %v750
        %v752 = vld [vmem:[#allocation2] sm:$0xf]
        %v753 = vld [vmem:[#allocation2 + $0x4] sm:$0xf]
        %v754 = vld [vmem:[#allocation2 + $0xc] sm:$0xf]
        %v755 = vld [vmem:[#allocation2 + $0x10] sm:$0xf]
        %v756 = vld [vmem:[#allocation2 + $0x18] sm:$0xf]
        %v757 = vld [vmem:[#allocation2 + $0x1c] sm:$0xf]
        %v758 = vld [vmem:[#allocation2 + $0x24] sm:$0xf]
        %v759 = vld [vmem:[#allocation2 + $0x28] sm:$0xf]
        %v760 = vld [vmem:[#allocation2 + $0x30] sm:$0xf]
        %v761 = vld [vmem:[#allocation2 + $0x34] sm:$0xf]
        %v762 = vld [vmem:[#allocation2 + $0x3c] sm:$0xf]
        %v763 = vld [vmem:[#allocation2 + $0x40] sm:$0xf]
        %v764 = vld [vmem:[#allocation2 + $0x48] sm:$0xf]
        %v765 = vld [vmem:[#allocation2 + $0x4c] sm:$0xf]
        %v766 = vld [vmem:[#allocation2 + $0x54] sm:$0xf]
        %v767 = vld [vmem:[#allocation2 + $0x58] sm:$0xf]
        %v768 = vld [vmem:[#allocation2 + $0x60] sm:$0xf]
        %v769 = vld [vmem:[#allocation2 + $0x64] sm:$0xf]
        %v770 = vld [vmem:[#allocation2 + $0x6c] sm:$0xf]
        %v771 = vld [vmem:[#allocation2 + $0x70] sm:$0xf]
        %v772 = vld [vmem:[#allocation2 + $0x78] sm:$0xf]
        %v773 = vld [vmem:[#allocation2 + $0x7c] sm:$0xf]
        %v774 = vld [vmem:[#allocation2 + $0x84] sm:$0xf]
        %v775 = vld [vmem:[#allocation2 + $0x88] sm:$0xf]
        %v776 = vld [vmem:[#allocation2 + $0x90] sm:$0xf]
        %v777 = vld [vmem:[#allocation2 + $0x94] sm:$0xf]
        %v778 = vld [vmem:[#allocation2 + $0x9c] sm:$0xf]
        %v779 = vld [vmem:[#allocation2 + $0xa0] sm:$0xf]
        %v780 = vld [vmem:[#allocation2 + $0xa8] sm:$0xf]
        %v781 = vld [vmem:[#allocation2 + $0xac] sm:$0xf]
        %v782 = vld [vmem:[#allocation2 + $0xb4] sm:$0xf]
        %v783 = vld [vmem:[#allocation2 + $0xb8] sm:$0xf]
        %784 = vst.msk [vmem:[#allocation3] sm:$0xf] %vm223, %v752
        %785 = vst.msk [vmem:[#allocation3 + $0x4] sm:$0xf] %vm223, %v753
        %786 = vst.msk [vmem:[#allocation3 + $0x8] sm:$0xf] %vm223, %v754
        %787 = vst.msk [vmem:[#allocation3 + $0xc] sm:$0xf] %vm223, %v755
        %788 = vst.msk [vmem:[#allocation3 + $0x10] sm:$0xf] %vm223, %v756
        %789 = vst.msk [vmem:[#allocation3 + $0x14] sm:$0xf] %vm223, %v757
        %790 = vst.msk [vmem:[#allocation3 + $0x18] sm:$0xf] %vm223, %v758
        %791 = vst.msk [vmem:[#allocation3 + $0x1c] sm:$0xf] %vm223, %v759
        %792 = vst.msk [vmem:[#allocation3 + $0x20] sm:$0xf] %vm223, %v760
        %793 = vst.msk [vmem:[#allocation3 + $0x24] sm:$0xf] %vm223, %v761
        %794 = vst.msk [vmem:[#allocation3 + $0x28] sm:$0xf] %vm223, %v762
        %795 = vst.msk [vmem:[#allocation3 + $0x2c] sm:$0xf] %vm223, %v763
        %796 = vst.msk [vmem:[#allocation3 + $0x30] sm:$0xf] %vm223, %v764
        %797 = vst.msk [vmem:[#allocation3 + $0x34] sm:$0xf] %vm223, %v765
        %798 = vst.msk [vmem:[#allocation3 + $0x38] sm:$0xf] %vm223, %v766
        %799 = vst.msk [vmem:[#allocation3 + $0x3c] sm:$0xf] %vm223, %v767
        %800 = vst.msk [vmem:[#allocation3 + $0x40] sm:$0xf] %vm223, %v768
        %801 = vst.msk [vmem:[#allocation3 + $0x44] sm:$0xf] %vm223, %v769
        %802 = vst.msk [vmem:[#allocation3 + $0x48] sm:$0xf] %vm223, %v770
        %803 = vst.msk [vmem:[#allocation3 + $0x4c] sm:$0xf] %vm223, %v771
        %804 = vst.msk [vmem:[#allocation3 + $0x50] sm:$0xf] %vm223, %v772
        %805 = vst.msk [vmem:[#allocation3 + $0x54] sm:$0xf] %vm223, %v773
        %806 = vst.msk [vmem:[#allocation3 + $0x58] sm:$0xf] %vm223, %v774
        %807 = vst.msk [vmem:[#allocation3 + $0x5c] sm:$0xf] %vm223, %v775
        %808 = vst.msk [vmem:[#allocation3 + $0x60] sm:$0xf] %vm223, %v776
        %809 = vst.msk [vmem:[#allocation3 + $0x64] sm:$0xf] %vm223, %v777
        %810 = vst.msk [vmem:[#allocation3 + $0x68] sm:$0xf] %vm223, %v778
        %811 = vst.msk [vmem:[#allocation3 + $0x6c] sm:$0xf] %vm223, %v779
        %812 = vst.msk [vmem:[#allocation3 + $0x70] sm:$0xf] %vm223, %v780
        %813 = vst.msk [vmem:[#allocation3 + $0x74] sm:$0xf] %vm223, %v781
        %814 = vst.msk [vmem:[#allocation3 + $0x78] sm:$0xf] %vm223, %v782
        %815 = vst.msk [vmem:[#allocation3 + $0x7c] sm:$0xf] %vm223, %v783
        %v816 = vld [vmem:[#allocation2] sm:$0xf]
        %v817 = vld [vmem:[#allocation2 + $0x4] sm:$0xf]
        %v818 = vld [vmem:[#allocation2 + $0x8] sm:$0x1]
        %v819 = vld [vmem:[#allocation2 + $0xc] sm:$0xf]
        %v820 = vld [vmem:[#allocation2 + $0x10] sm:$0xf]
        %v821 = vld [vmem:[#allocation2 + $0x14] sm:$0x1]
        %v822 = vld [vmem:[#allocation2 + $0x18] sm:$0xf]
        %v823 = vld [vmem:[#allocation2 + $0x1c] sm:$0xf]
        %v824 = vld [vmem:[#allocation2 + $0x20] sm:$0x1]
        %v825 = vld [vmem:[#allocation2 + $0x24] sm:$0xf]
        %v826 = vld [vmem:[#allocation2 + $0x28] sm:$0xf]
        %v827 = vld [vmem:[#allocation2 + $0x2c] sm:$0x1]
        %v828 = vld [vmem:[#allocation2 + $0x30] sm:$0xf]
        %v829 = vld [vmem:[#allocation2 + $0x34] sm:$0xf]
        %v830 = vld [vmem:[#allocation2 + $0x38] sm:$0x1]
        %v831 = vld [vmem:[#allocation2 + $0x3c] sm:$0xf]
        %v832 = vld [vmem:[#allocation2 + $0x40] sm:$0xf]
        %v833 = vld [vmem:[#allocation2 + $0x44] sm:$0x1]
        %v834 = vld [vmem:[#allocation2 + $0x48] sm:$0xf]
        %v835 = vld [vmem:[#allocation2 + $0x4c] sm:$0xf]
        %v836 = vld [vmem:[#allocation2 + $0x50] sm:$0x1]
        %v837 = vld [vmem:[#allocation2 + $0x54] sm:$0xf]
        %v838 = vld [vmem:[#allocation2 + $0x58] sm:$0xf]
        %v839 = vld [vmem:[#allocation2 + $0x5c] sm:$0x1]
        %v840 = vld [vmem:[#allocation2 + $0x60] sm:$0xf]
        %v841 = vld [vmem:[#allocation2 + $0x64] sm:$0xf]
        %v842 = vld [vmem:[#allocation2 + $0x68] sm:$0x1]
        %v843 = vld [vmem:[#allocation2 + $0x6c] sm:$0xf]
        %v844 = vld [vmem:[#allocation2 + $0x70] sm:$0xf]
        %v845 = vld [vmem:[#allocation2 + $0x74] sm:$0x1]
        %v846 = vld [vmem:[#allocation2 + $0x78] sm:$0xf]
        %v847 = vld [vmem:[#allocation2 + $0x7c] sm:$0xf]
        %v848 = vld [vmem:[#allocation2 + $0x80] sm:$0x1]
        %v849 = vld [vmem:[#allocation2 + $0x84] sm:$0xf]
        %v850 = vld [vmem:[#allocation2 + $0x88] sm:$0xf]
        %v851 = vld [vmem:[#allocation2 + $0x8c] sm:$0x1]
        %v852 = vld [vmem:[#allocation2 + $0x90] sm:$0xf]
        %v853 = vld [vmem:[#allocation2 + $0x94] sm:$0xf]
        %v854 = vld [vmem:[#allocation2 + $0x98] sm:$0x1]
        %v855 = vld [vmem:[#allocation2 + $0x9c] sm:$0xf]
        %v856 = vld [vmem:[#allocation2 + $0xa0] sm:$0xf]
        %v857 = vld [vmem:[#allocation2 + $0xa4] sm:$0x1]
        %v858 = vld [vmem:[#allocation2 + $0xa8] sm:$0xf]
        %v859 = vld [vmem:[#allocation2 + $0xac] sm:$0xf]
        %v860 = vld [vmem:[#allocation2 + $0xb0] sm:$0x1]
        %v861 = vld [vmem:[#allocation2 + $0xb4] sm:$0xf]
        %v862 = vld [vmem:[#allocation2 + $0xb8] sm:$0xf]
        %v863 = vld [vmem:[#allocation2 + $0xbc] sm:$0x1]
        %vm864 = vsmask.f32 3328
        %vm865 = vsmask.f32 7440
        %vm866 = vmor %vm864, %vm865
        %v868 = vshrl.u32 %v816, 16
        %v870 = vrot.slane %v868, 4
        %v871 = vshll.u32 %v816, 16
        %v873 = vrot.slane %v871, 5
        %v874 = vor.u32 %v870, %v873
        %v875 = vrot.slane %v874, 4
        %v877 = vshll.u32 %v817, 16
        %v879 = vrot.slane %v877, 5
        %v880 = vsel %vm866, %v875, %v879
        %v881 = vshrl.u32 %v817, 16
        %v883 = vrot.slane %v881, 4
        %v884 = vor.u32 %v883, %v879
        %v885 = vrot.slane %v884, 4
        %v887 = vshll.u32 %v818, 16
        %v889 = vrot.slane %v887, 5
        %v890 = vsel %vm866, %v885, %v889
        %v892 = vshrl.u32 %v819, 16
        %v894 = vrot.slane %v892, 4
        %v895 = vshll.u32 %v819, 16
        %v897 = vrot.slane %v895, 5
        %v898 = vor.u32 %v894, %v897
        %v899 = vrot.slane %v898, 4
        %v901 = vshll.u32 %v820, 16
        %v903 = vrot.slane %v901, 5
        %v904 = vsel %vm866, %v899, %v903
        %v905 = vshrl.u32 %v820, 16
        %v907 = vrot.slane %v905, 4
        %v908 = vor.u32 %v907, %v903
        %v909 = vrot.slane %v908, 4
        %v911 = vshll.u32 %v821, 16
        %v913 = vrot.slane %v911, 5
        %v914 = vsel %vm866, %v909, %v913
        %v916 = vshrl.u32 %v822, 16
        %v918 = vrot.slane %v916, 4
        %v919 = vshll.u32 %v822, 16
        %v921 = vrot.slane %v919, 5
        %v922 = vor.u32 %v918, %v921
        %v923 = vrot.slane %v922, 4
        %v925 = vshll.u32 %v823, 16
        %v927 = vrot.slane %v925, 5
        %v928 = vsel %vm866, %v923, %v927
        %v929 = vshrl.u32 %v823, 16
        %v931 = vrot.slane %v929, 4
        %v932 = vor.u32 %v931, %v927
        %v933 = vrot.slane %v932, 4
        %v935 = vshll.u32 %v824, 16
        %v937 = vrot.slane %v935, 5
        %v938 = vsel %vm866, %v933, %v937
        %v940 = vshrl.u32 %v825, 16
        %v942 = vrot.slane %v940, 4
        %v943 = vshll.u32 %v825, 16
        %v945 = vrot.slane %v943, 5
        %v946 = vor.u32 %v942, %v945
        %v947 = vrot.slane %v946, 4
        %v949 = vshll.u32 %v826, 16
        %v951 = vrot.slane %v949, 5
        %v952 = vsel %vm866, %v947, %v951
        %v953 = vshrl.u32 %v826, 16
        %v955 = vrot.slane %v953, 4
        %v956 = vor.u32 %v955, %v951
        %v957 = vrot.slane %v956, 4
        %v959 = vshll.u32 %v827, 16
        %v961 = vrot.slane %v959, 5
        %v962 = vsel %vm866, %v957, %v961
        %v964 = vshrl.u32 %v828, 16
        %v966 = vrot.slane %v964, 4
        %v967 = vshll.u32 %v828, 16
        %v969 = vrot.slane %v967, 5
        %v970 = vor.u32 %v966, %v969
        %v971 = vrot.slane %v970, 4
        %v973 = vshll.u32 %v829, 16
        %v975 = vrot.slane %v973, 5
        %v976 = vsel %vm866, %v971, %v975
        %v977 = vshrl.u32 %v829, 16
        %v979 = vrot.slane %v977, 4
        %v980 = vor.u32 %v979, %v975
        %v981 = vrot.slane %v980, 4
        %v983 = vshll.u32 %v830, 16
        %v985 = vrot.slane %v983, 5
        %v986 = vsel %vm866, %v981, %v985
        %v988 = vshrl.u32 %v831, 16
        %v990 = vrot.slane %v988, 4
        %v991 = vshll.u32 %v831, 16
        %v993 = vrot.slane %v991, 5
        %v994 = vor.u32 %v990, %v993
        %v995 = vrot.slane %v994, 4
        %v997 = vshll.u32 %v832, 16
        %v999 = vrot.slane %v997, 5
        %v1000 = vsel %vm866, %v995, %v999
        %v1001 = vshrl.u32 %v832, 16
        %v1003 = vrot.slane %v1001, 4
        %v1004 = vor.u32 %v1003, %v999
        %v1005 = vrot.slane %v1004, 4
        %v1007 = vshll.u32 %v833, 16
        %v1009 = vrot.slane %v1007, 5
        %v1010 = vsel %vm866, %v1005, %v1009
        %v1012 = vshrl.u32 %v834, 16
        %v1014 = vrot.slane %v1012, 4
        %v1015 = vshll.u32 %v834, 16
        %v1017 = vrot.slane %v1015, 5
        %v1018 = vor.u32 %v1014, %v1017
        %v1019 = vrot.slane %v1018, 4
        %v1021 = vshll.u32 %v835, 16
        %v1023 = vrot.slane %v1021, 5
        %v1024 = vsel %vm866, %v1019, %v1023
        %v1025 = vshrl.u32 %v835, 16
        %v1027 = vrot.slane %v1025, 4
        %v1028 = vor.u32 %v1027, %v1023
        %v1029 = vrot.slane %v1028, 4
        %v1031 = vshll.u32 %v836, 16
        %v1033 = vrot.slane %v1031, 5
        %v1034 = vsel %vm866, %v1029, %v1033
        %v1036 = vshrl.u32 %v837, 16
        %v1038 = vrot.slane %v1036, 4
        %v1039 = vshll.u32 %v837, 16
        %v1041 = vrot.slane %v1039, 5
        %v1042 = vor.u32 %v1038, %v1041
        %v1043 = vrot.slane %v1042, 4
        %v1045 = vshll.u32 %v838, 16
        %v1047 = vrot.slane %v1045, 5
        %v1048 = vsel %vm866, %v1043, %v1047
        %v1049 = vshrl.u32 %v838, 16
        %v1051 = vrot.slane %v1049, 4
        %v1052 = vor.u32 %v1051, %v1047
        %v1053 = vrot.slane %v1052, 4
        %v1055 = vshll.u32 %v839, 16
        %v1057 = vrot.slane %v1055, 5
        %v1058 = vsel %vm866, %v1053, %v1057
        %v1060 = vshrl.u32 %v840, 16
        %v1062 = vrot.slane %v1060, 4
        %v1063 = vshll.u32 %v840, 16
        %v1065 = vrot.slane %v1063, 5
        %v1066 = vor.u32 %v1062, %v1065
        %v1067 = vrot.slane %v1066, 4
        %v1069 = vshll.u32 %v841, 16
        %v1071 = vrot.slane %v1069, 5
        %v1072 = vsel %vm866, %v1067, %v1071
        %v1073 = vshrl.u32 %v841, 16
        %v1075 = vrot.slane %v1073, 4
        %v1076 = vor.u32 %v1075, %v1071
        %v1077 = vrot.slane %v1076, 4
        %v1079 = vshll.u32 %v842, 16
        %v1081 = vrot.slane %v1079, 5
        %v1082 = vsel %vm866, %v1077, %v1081
        %v1084 = vshrl.u32 %v843, 16
        %v1086 = vrot.slane %v1084, 4
        %v1087 = vshll.u32 %v843, 16
        %v1089 = vrot.slane %v1087, 5
        %v1090 = vor.u32 %v1086, %v1089
        %v1091 = vrot.slane %v1090, 4
        %v1093 = vshll.u32 %v844, 16
        %v1095 = vrot.slane %v1093, 5
        %v1096 = vsel %vm866, %v1091, %v1095
        %v1097 = vshrl.u32 %v844, 16
        %v1099 = vrot.slane %v1097, 4
        %v1100 = vor.u32 %v1099, %v1095
        %v1101 = vrot.slane %v1100, 4
        %v1103 = vshll.u32 %v845, 16
        %v1105 = vrot.slane %v1103, 5
        %v1106 = vsel %vm866, %v1101, %v1105
        %v1108 = vshrl.u32 %v846, 16
        %v1110 = vrot.slane %v1108, 4
        %v1111 = vshll.u32 %v846, 16
        %v1113 = vrot.slane %v1111, 5
        %v1114 = vor.u32 %v1110, %v1113
        %v1115 = vrot.slane %v1114, 4
        %v1117 = vshll.u32 %v847, 16
        %v1119 = vrot.slane %v1117, 5
        %v1120 = vsel %vm866, %v1115, %v1119
        %v1121 = vshrl.u32 %v847, 16
        %v1123 = vrot.slane %v1121, 4
        %v1124 = vor.u32 %v1123, %v1119
        %v1125 = vrot.slane %v1124, 4
        %v1127 = vshll.u32 %v848, 16
        %v1129 = vrot.slane %v1127, 5
        %v1130 = vsel %vm866, %v1125, %v1129
        %v1132 = vshrl.u32 %v849, 16
        %v1134 = vrot.slane %v1132, 4
        %v1135 = vshll.u32 %v849, 16
        %v1137 = vrot.slane %v1135, 5
        %v1138 = vor.u32 %v1134, %v1137
        %v1139 = vrot.slane %v1138, 4
        %v1141 = vshll.u32 %v850, 16
        %v1143 = vrot.slane %v1141, 5
        %v1144 = vsel %vm866, %v1139, %v1143
        %v1145 = vshrl.u32 %v850, 16
        %v1147 = vrot.slane %v1145, 4
        %v1148 = vor.u32 %v1147, %v1143
        %v1149 = vrot.slane %v1148, 4
        %v1151 = vshll.u32 %v851, 16
        %v1153 = vrot.slane %v1151, 5
        %v1154 = vsel %vm866, %v1149, %v1153
        %v1156 = vshrl.u32 %v852, 16
        %v1158 = vrot.slane %v1156, 4
        %v1159 = vshll.u32 %v852, 16
        %v1161 = vrot.slane %v1159, 5
        %v1162 = vor.u32 %v1158, %v1161
        %v1163 = vrot.slane %v1162, 4
        %v1165 = vshll.u32 %v853, 16
        %v1167 = vrot.slane %v1165, 5
        %v1168 = vsel %vm866, %v1163, %v1167
        %v1169 = vshrl.u32 %v853, 16
        %v1171 = vrot.slane %v1169, 4
        %v1172 = vor.u32 %v1171, %v1167
        %v1173 = vrot.slane %v1172, 4
        %v1175 = vshll.u32 %v854, 16
        %v1177 = vrot.slane %v1175, 5
        %v1178 = vsel %vm866, %v1173, %v1177
        %v1180 = vshrl.u32 %v855, 16
        %v1182 = vrot.slane %v1180, 4
        %v1183 = vshll.u32 %v855, 16
        %v1185 = vrot.slane %v1183, 5
        %v1186 = vor.u32 %v1182, %v1185
        %v1187 = vrot.slane %v1186, 4
        %v1189 = vshll.u32 %v856, 16
        %v1191 = vrot.slane %v1189, 5
        %v1192 = vsel %vm866, %v1187, %v1191
        %v1193 = vshrl.u32 %v856, 16
        %v1195 = vrot.slane %v1193, 4
        %v1196 = vor.u32 %v1195, %v1191
        %v1197 = vrot.slane %v1196, 4
        %v1199 = vshll.u32 %v857, 16
        %v1201 = vrot.slane %v1199, 5
        %v1202 = vsel %vm866, %v1197, %v1201
        %v1204 = vshrl.u32 %v858, 16
        %v1206 = vrot.slane %v1204, 4
        %v1207 = vshll.u32 %v858, 16
        %v1209 = vrot.slane %v1207, 5
        %v1210 = vor.u32 %v1206, %v1209
        %v1211 = vrot.slane %v1210, 4
        %v1213 = vshll.u32 %v859, 16
        %v1215 = vrot.slane %v1213, 5
        %v1216 = vsel %vm866, %v1211, %v1215
        %v1217 = vshrl.u32 %v859, 16
        %v1219 = vrot.slane %v1217, 4
        %v1220 = vor.u32 %v1219, %v1215
        %v1221 = vrot.slane %v1220, 4
        %v1223 = vshll.u32 %v860, 16
        %v1225 = vrot.slane %v1223, 5
        %v1226 = vsel %vm866, %v1221, %v1225
        %v1228 = vshrl.u32 %v861, 16
        %v1230 = vrot.slane %v1228, 4
        %v1231 = vshll.u32 %v861, 16
        %v1233 = vrot.slane %v1231, 5
        %v1234 = vor.u32 %v1230, %v1233
        %v1235 = vrot.slane %v1234, 4
        %v1237 = vshll.u32 %v862, 16
        %v1239 = vrot.slane %v1237, 5
        %v1240 = vsel %vm866, %v1235, %v1239
        %v1241 = vshrl.u32 %v862, 16
        %v1243 = vrot.slane %v1241, 4
        %v1244 = vor.u32 %v1243, %v1239
        %v1245 = vrot.slane %v1244, 4
        %v1247 = vshll.u32 %v863, 16
        %v1249 = vrot.slane %v1247, 5
        %v1250 = vsel %vm866, %v1245, %v1249
        %1251 = vrot.lane.b32.xlu0 %v880, 4
        %v1252 = vpop.permute.xlu0 %1251
        %1253 = vrot.lane.b32.xlu0 %v890, 4
        %v1254 = vpop.permute.xlu0 %1253
        %1255 = vrot.lane.b32.xlu0 %v904, 4
        %v1256 = vpop.permute.xlu0 %1255
        %1257 = vrot.lane.b32.xlu0 %v914, 4
        %v1258 = vpop.permute.xlu0 %1257
        %1259 = vrot.lane.b32.xlu0 %v928, 4
        %v1260 = vpop.permute.xlu0 %1259
        %1261 = vrot.lane.b32.xlu0 %v938, 4
        %v1262 = vpop.permute.xlu0 %1261
        %1263 = vrot.lane.b32.xlu0 %v952, 4
        %v1264 = vpop.permute.xlu0 %1263
        %1265 = vrot.lane.b32.xlu0 %v962, 4
        %v1266 = vpop.permute.xlu0 %1265
        %1267 = vrot.lane.b32.xlu0 %v976, 4
        %v1268 = vpop.permute.xlu0 %1267
        %1269 = vrot.lane.b32.xlu0 %v986, 4
        %v1270 = vpop.permute.xlu0 %1269
        %1271 = vrot.lane.b32.xlu0 %v1000, 4
        %v1272 = vpop.permute.xlu0 %1271
        %1273 = vrot.lane.b32.xlu0 %v1010, 4
        %v1274 = vpop.permute.xlu0 %1273
        %1275 = vrot.lane.b32.xlu0 %v1024, 4
        %v1276 = vpop.permute.xlu0 %1275
        %1277 = vrot.lane.b32.xlu0 %v1034, 4
        %v1278 = vpop.permute.xlu0 %1277
        %1279 = vrot.lane.b32.xlu0 %v1048, 4
        %v1280 = vpop.permute.xlu0 %1279
        %1281 = vrot.lane.b32.xlu0 %v1058, 4
        %v1282 = vpop.permute.xlu0 %1281
        %1283 = vrot.lane.b32.xlu0 %v1072, 4
        %v1284 = vpop.permute.xlu0 %1283
        %1285 = vrot.lane.b32.xlu0 %v1082, 4
        %v1286 = vpop.permute.xlu0 %1285
        %1287 = vrot.lane.b32.xlu0 %v1096, 4
        %v1288 = vpop.permute.xlu0 %1287
        %1289 = vrot.lane.b32.xlu0 %v1106, 4
        %v1290 = vpop.permute.xlu0 %1289
        %1291 = vrot.lane.b32.xlu0 %v1120, 4
        %v1292 = vpop.permute.xlu0 %1291
        %1293 = vrot.lane.b32.xlu0 %v1130, 4
        %v1294 = vpop.permute.xlu0 %1293
        %1295 = vrot.lane.b32.xlu0 %v1144, 4
        %v1296 = vpop.permute.xlu0 %1295
        %1297 = vrot.lane.b32.xlu0 %v1154, 4
        %v1298 = vpop.permute.xlu0 %1297
        %1299 = vrot.lane.b32.xlu0 %v1168, 4
        %v1300 = vpop.permute.xlu0 %1299
        %1301 = vrot.lane.b32.xlu0 %v1178, 4
        %v1302 = vpop.permute.xlu0 %1301
        %1303 = vrot.lane.b32.xlu0 %v1192, 4
        %v1304 = vpop.permute.xlu0 %1303
        %1305 = vrot.lane.b32.xlu0 %v1202, 4
        %v1306 = vpop.permute.xlu0 %1305
        %1307 = vrot.lane.b32.xlu0 %v1216, 4
        %v1308 = vpop.permute.xlu0 %1307
        %1309 = vrot.lane.b32.xlu0 %v1226, 4
        %v1310 = vpop.permute.xlu0 %1309
        %1311 = vrot.lane.b32.xlu0 %v1240, 4
        %v1312 = vpop.permute.xlu0 %1311
        %1313 = vrot.lane.b32.xlu0 %v1250, 4
        %v1314 = vpop.permute.xlu0 %1313
        %vm1347 = vcmask 60448
        %1348 = vst.msk [vmem:[#allocation3] sm:$0xf] %vm1347, %v1252
        %1349 = vst.msk [vmem:[#allocation3 + $0x4] sm:$0xf] %vm1347, %v1254
        %1350 = vst.msk [vmem:[#allocation3 + $0x8] sm:$0xf] %vm1347, %v1256
        %1351 = vst.msk [vmem:[#allocation3 + $0xc] sm:$0xf] %vm1347, %v1258
        %1352 = vst.msk [vmem:[#allocation3 + $0x10] sm:$0xf] %vm1347, %v1260
        %1353 = vst.msk [vmem:[#allocation3 + $0x14] sm:$0xf] %vm1347, %v1262
        %1354 = vst.msk [vmem:[#allocation3 + $0x18] sm:$0xf] %vm1347, %v1264
        %1355 = vst.msk [vmem:[#allocation3 + $0x1c] sm:$0xf] %vm1347, %v1266
        %1356 = vst.msk [vmem:[#allocation3 + $0x20] sm:$0xf] %vm1347, %v1268
        %1357 = vst.msk [vmem:[#allocation3 + $0x24] sm:$0xf] %vm1347, %v1270
        %1358 = vst.msk [vmem:[#allocation3 + $0x28] sm:$0xf] %vm1347, %v1272
        %1359 = vst.msk [vmem:[#allocation3 + $0x2c] sm:$0xf] %vm1347, %v1274
        %1360 = vst.msk [vmem:[#allocation3 + $0x30] sm:$0xf] %vm1347, %v1276
        %1361 = vst.msk [vmem:[#allocation3 + $0x34] sm:$0xf] %vm1347, %v1278
        %1362 = vst.msk [vmem:[#allocation3 + $0x38] sm:$0xf] %vm1347, %v1280
        %1363 = vst.msk [vmem:[#allocation3 + $0x3c] sm:$0xf] %vm1347, %v1282
        %1364 = vst.msk [vmem:[#allocation3 + $0x40] sm:$0xf] %vm1347, %v1284
        %1365 = vst.msk [vmem:[#allocation3 + $0x44] sm:$0xf] %vm1347, %v1286
        %1366 = vst.msk [vmem:[#allocation3 + $0x48] sm:$0xf] %vm1347, %v1288
        %1367 = vst.msk [vmem:[#allocation3 + $0x4c] sm:$0xf] %vm1347, %v1290
        %1368 = vst.msk [vmem:[#allocation3 + $0x50] sm:$0xf] %vm1347, %v1292
        %1369 = vst.msk [vmem:[#allocation3 + $0x54] sm:$0xf] %vm1347, %v1294
        %1370 = vst.msk [vmem:[#allocation3 + $0x58] sm:$0xf] %vm1347, %v1296
        %1371 = vst.msk [vmem:[#allocation3 + $0x5c] sm:$0xf] %vm1347, %v1298
        %1372 = vst.msk [vmem:[#allocation3 + $0x60] sm:$0xf] %vm1347, %v1300
        %1373 = vst.msk [vmem:[#allocation3 + $0x64] sm:$0xf] %vm1347, %v1302
        %1374 = vst.msk [vmem:[#allocation3 + $0x68] sm:$0xf] %vm1347, %v1304
        %1375 = vst.msk [vmem:[#allocation3 + $0x6c] sm:$0xf] %vm1347, %v1306
        %1376 = vst.msk [vmem:[#allocation3 + $0x70] sm:$0xf] %vm1347, %v1308
        %1377 = vst.msk [vmem:[#allocation3 + $0x74] sm:$0xf] %vm1347, %v1310
        %1378 = vst.msk [vmem:[#allocation3 + $0x78] sm:$0xf] %vm1347, %v1312
        %1379 = vst.msk [vmem:[#allocation3 + $0x7c] sm:$0xf] %vm1347, %v1314
        %v1380 = vld [vmem:[#allocation2] sm:$0xe]
        %v1381 = vld [vmem:[#allocation2 + $0x4] sm:$0xf]
        %v1382 = vld [vmem:[#allocation2 + $0x8] sm:$0x1]
        %v1383 = vld [vmem:[#allocation2 + $0xc] sm:$0xe]
        %v1384 = vld [vmem:[#allocation2 + $0x10] sm:$0xf]
        %v1385 = vld [vmem:[#allocation2 + $0x14] sm:$0x1]
        %v1386 = vld [vmem:[#allocation2 + $0x18] sm:$0xe]
        %v1387 = vld [vmem:[#allocation2 + $0x1c] sm:$0xf]
        %v1388 = vld [vmem:[#allocation2 + $0x20] sm:$0x1]
        %v1389 = vld [vmem:[#allocation2 + $0x24] sm:$0xe]
        %v1390 = vld [vmem:[#allocation2 + $0x28] sm:$0xf]
        %v1391 = vld [vmem:[#allocation2 + $0x2c] sm:$0x1]
        %v1392 = vld [vmem:[#allocation2 + $0x30] sm:$0xe]
        %v1393 = vld [vmem:[#allocation2 + $0x34] sm:$0xf]
        %v1394 = vld [vmem:[#allocation2 + $0x38] sm:$0x1]
        %v1395 = vld [vmem:[#allocation2 + $0x3c] sm:$0xe]
        %v1396 = vld [vmem:[#allocation2 + $0x40] sm:$0xf]
        %v1397 = vld [vmem:[#allocation2 + $0x44] sm:$0x1]
        %v1398 = vld [vmem:[#allocation2 + $0x48] sm:$0xe]
        %v1399 = vld [vmem:[#allocation2 + $0x4c] sm:$0xf]
        %v1400 = vld [vmem:[#allocation2 + $0x50] sm:$0x1]
        %v1401 = vld [vmem:[#allocation2 + $0x54] sm:$0xe]
        %v1402 = vld [vmem:[#allocation2 + $0x58] sm:$0xf]
        %v1403 = vld [vmem:[#allocation2 + $0x5c] sm:$0x1]
        %v1404 = vld [vmem:[#allocation2 + $0x60] sm:$0xe]
        %v1405 = vld [vmem:[#allocation2 + $0x64] sm:$0xf]
        %v1406 = vld [vmem:[#allocation2 + $0x68] sm:$0x1]
        %v1407 = vld [vmem:[#allocation2 + $0x6c] sm:$0xe]
        %v1408 = vld [vmem:[#allocation2 + $0x70] sm:$0xf]
        %v1409 = vld [vmem:[#allocation2 + $0x74] sm:$0x1]
        %v1410 = vld [vmem:[#allocation2 + $0x78] sm:$0xe]
        %v1411 = vld [vmem:[#allocation2 + $0x7c] sm:$0xf]
        %v1412 = vld [vmem:[#allocation2 + $0x80] sm:$0x1]
        %v1413 = vld [vmem:[#allocation2 + $0x84] sm:$0xe]
        %v1414 = vld [vmem:[#allocation2 + $0x88] sm:$0xf]
        %v1415 = vld [vmem:[#allocation2 + $0x8c] sm:$0x1]
        %v1416 = vld [vmem:[#allocation2 + $0x90] sm:$0xe]
        %v1417 = vld [vmem:[#allocation2 + $0x94] sm:$0xf]
        %v1418 = vld [vmem:[#allocation2 + $0x98] sm:$0x1]
        %v1419 = vld [vmem:[#allocation2 + $0x9c] sm:$0xe]
        %v1420 = vld [vmem:[#allocation2 + $0xa0] sm:$0xf]
        %v1421 = vld [vmem:[#allocation2 + $0xa4] sm:$0x1]
        %v1422 = vld [vmem:[#allocation2 + $0xa8] sm:$0xe]
        %v1423 = vld [vmem:[#allocation2 + $0xac] sm:$0xf]
        %v1424 = vld [vmem:[#allocation2 + $0xb0] sm:$0x1]
        %v1425 = vld [vmem:[#allocation2 + $0xb4] sm:$0xe]
        %v1426 = vld [vmem:[#allocation2 + $0xb8] sm:$0xf]
        %v1427 = vld [vmem:[#allocation2 + $0xbc] sm:$0x1]
        %vm1476 = vcmask 1042432
        %vm1477 = vcmask 1046532
        %vm1478 = vmor %vm1476, %vm1477
        %v1479 = vrot.slane %v1380, 5
        %v1480 = vrot.slane %v1479, 4
        %v1481 = vrot.slane %v1381, 5
        %v1482 = vsel %vm1478, %v1480, %v1481
        %v1483 = vrot.slane %v1481, 4
        %v1484 = vrot.slane %v1382, 5
        %v1485 = vsel %vm1478, %v1483, %v1484
        %v1486 = vrot.slane %v1383, 5
        %v1487 = vrot.slane %v1486, 4
        %v1488 = vrot.slane %v1384, 5
        %v1489 = vsel %vm1478, %v1487, %v1488
        %v1490 = vrot.slane %v1488, 4
        %v1491 = vrot.slane %v1385, 5
        %v1492 = vsel %vm1478, %v1490, %v1491
        %v1493 = vrot.slane %v1386, 5
        %v1494 = vrot.slane %v1493, 4
        %v1495 = vrot.slane %v1387, 5
        %v1496 = vsel %vm1478, %v1494, %v1495
        %v1497 = vrot.slane %v1495, 4
        %v1498 = vrot.slane %v1388, 5
        %v1499 = vsel %vm1478, %v1497, %v1498
        %v1500 = vrot.slane %v1389, 5
        %v1501 = vrot.slane %v1500, 4
        %v1502 = vrot.slane %v1390, 5
        %v1503 = vsel %vm1478, %v1501, %v1502
        %v1504 = vrot.slane %v1502, 4
        %v1505 = vrot.slane %v1391, 5
        %v1506 = vsel %vm1478, %v1504, %v1505
        %v1507 = vrot.slane %v1392, 5
        %v1508 = vrot.slane %v1507, 4
        %v1509 = vrot.slane %v1393, 5
        %v1510 = vsel %vm1478, %v1508, %v1509
        %v1511 = vrot.slane %v1509, 4
        %v1512 = vrot.slane %v1394, 5
        %v1513 = vsel %vm1478, %v1511, %v1512
        %v1514 = vrot.slane %v1395, 5
        %v1515 = vrot.slane %v1514, 4
        %v1516 = vrot.slane %v1396, 5
        %v1517 = vsel %vm1478, %v1515, %v1516
        %v1518 = vrot.slane %v1516, 4
        %v1519 = vrot.slane %v1397, 5
        %v1520 = vsel %vm1478, %v1518, %v1519
        %v1521 = vrot.slane %v1398, 5
        %v1522 = vrot.slane %v1521, 4
        %v1523 = vrot.slane %v1399, 5
        %v1524 = vsel %vm1478, %v1522, %v1523
        %v1525 = vrot.slane %v1523, 4
        %v1526 = vrot.slane %v1400, 5
        %v1527 = vsel %vm1478, %v1525, %v1526
        %v1528 = vrot.slane %v1401, 5
        %v1529 = vrot.slane %v1528, 4
        %v1530 = vrot.slane %v1402, 5
        %v1531 = vsel %vm1478, %v1529, %v1530
        %v1532 = vrot.slane %v1530, 4
        %v1533 = vrot.slane %v1403, 5
        %v1534 = vsel %vm1478, %v1532, %v1533
        %v1535 = vrot.slane %v1404, 5
        %v1536 = vrot.slane %v1535, 4
        %v1537 = vrot.slane %v1405, 5
        %v1538 = vsel %vm1478, %v1536, %v1537
        %v1539 = vrot.slane %v1537, 4
        %v1540 = vrot.slane %v1406, 5
        %v1541 = vsel %vm1478, %v1539, %v1540
        %v1542 = vrot.slane %v1407, 5
        %v1543 = vrot.slane %v1542, 4
        %v1544 = vrot.slane %v1408, 5
        %v1545 = vsel %vm1478, %v1543, %v1544
        %v1546 = vrot.slane %v1544, 4
        %v1547 = vrot.slane %v1409, 5
        %v1548 = vsel %vm1478, %v1546, %v1547
        %v1549 = vrot.slane %v1410, 5
        %v1550 = vrot.slane %v1549, 4
        %v1551 = vrot.slane %v1411, 5
        %v1552 = vsel %vm1478, %v1550, %v1551
        %v1553 = vrot.slane %v1551, 4
        %v1554 = vrot.slane %v1412, 5
        %v1555 = vsel %vm1478, %v1553, %v1554
        %v1556 = vrot.slane %v1413, 5
        %v1557 = vrot.slane %v1556, 4
        %v1558 = vrot.slane %v1414, 5
        %v1559 = vsel %vm1478, %v1557, %v1558
        %v1560 = vrot.slane %v1558, 4
        %v1561 = vrot.slane %v1415, 5
        %v1562 = vsel %vm1478, %v1560, %v1561
        %v1563 = vrot.slane %v1416, 5
        %v1564 = vrot.slane %v1563, 4
        %v1565 = vrot.slane %v1417, 5
        %v1566 = vsel %vm1478, %v1564, %v1565
        %v1567 = vrot.slane %v1565, 4
        %v1568 = vrot.slane %v1418, 5
        %v1569 = vsel %vm1478, %v1567, %v1568
        %v1570 = vrot.slane %v1419, 5
        %v1571 = vrot.slane %v1570, 4
        %v1572 = vrot.slane %v1420, 5
        %v1573 = vsel %vm1478, %v1571, %v1572
        %v1574 = vrot.slane %v1572, 4
        %v1575 = vrot.slane %v1421, 5
        %v1576 = vsel %vm1478, %v1574, %v1575
        %v1577 = vrot.slane %v1422, 5
        %v1578 = vrot.slane %v1577, 4
        %v1579 = vrot.slane %v1423, 5
        %v1580 = vsel %vm1478, %v1578, %v1579
        %v1581 = vrot.slane %v1579, 4
        %v1582 = vrot.slane %v1424, 5
        %v1583 = vsel %vm1478, %v1581, %v1582
        %v1584 = vrot.slane %v1425, 5
        %v1585 = vrot.slane %v1584, 4
        %v1586 = vrot.slane %v1426, 5
        %v1587 = vsel %vm1478, %v1585, %v1586
        %v1588 = vrot.slane %v1586, 4
        %v1589 = vrot.slane %v1427, 5
        %v1590 = vsel %vm1478, %v1588, %v1589
        %1591 = vrot.lane.b32.xlu0 %v1482, 8
        %v1592 = vpop.permute.xlu0 %1591
        %1593 = vrot.lane.b32.xlu0 %v1485, 8
        %v1594 = vpop.permute.xlu0 %1593
        %1595 = vrot.lane.b32.xlu0 %v1489, 8
        %v1596 = vpop.permute.xlu0 %1595
        %1597 = vrot.lane.b32.xlu0 %v1492, 8
        %v1598 = vpop.permute.xlu0 %1597
        %1599 = vrot.lane.b32.xlu0 %v1496, 8
        %v1600 = vpop.permute.xlu0 %1599
        %1601 = vrot.lane.b32.xlu0 %v1499, 8
        %v1602 = vpop.permute.xlu0 %1601
        %1603 = vrot.lane.b32.xlu0 %v1503, 8
        %v1604 = vpop.permute.xlu0 %1603
        %1605 = vrot.lane.b32.xlu0 %v1506, 8
        %v1606 = vpop.permute.xlu0 %1605
        %1607 = vrot.lane.b32.xlu0 %v1510, 8
        %v1608 = vpop.permute.xlu0 %1607
        %1609 = vrot.lane.b32.xlu0 %v1513, 8
        %v1610 = vpop.permute.xlu0 %1609
        %1611 = vrot.lane.b32.xlu0 %v1517, 8
        %v1612 = vpop.permute.xlu0 %1611
        %1613 = vrot.lane.b32.xlu0 %v1520, 8
        %v1614 = vpop.permute.xlu0 %1613
        %1615 = vrot.lane.b32.xlu0 %v1524, 8
        %v1616 = vpop.permute.xlu0 %1615
        %1617 = vrot.lane.b32.xlu0 %v1527, 8
        %v1618 = vpop.permute.xlu0 %1617
        %1619 = vrot.lane.b32.xlu0 %v1531, 8
        %v1620 = vpop.permute.xlu0 %1619
        %1621 = vrot.lane.b32.xlu0 %v1534, 8
        %v1622 = vpop.permute.xlu0 %1621
        %1623 = vrot.lane.b32.xlu0 %v1538, 8
        %v1624 = vpop.permute.xlu0 %1623
        %1625 = vrot.lane.b32.xlu0 %v1541, 8
        %v1626 = vpop.permute.xlu0 %1625
        %1627 = vrot.lane.b32.xlu0 %v1545, 8
        %v1628 = vpop.permute.xlu0 %1627
        %1629 = vrot.lane.b32.xlu0 %v1548, 8
        %v1630 = vpop.permute.xlu0 %1629
        %1631 = vrot.lane.b32.xlu0 %v1552, 8
        %v1632 = vpop.permute.xlu0 %1631
        %1633 = vrot.lane.b32.xlu0 %v1555, 8
        %v1634 = vpop.permute.xlu0 %1633
        %1635 = vrot.lane.b32.xlu0 %v1559, 8
        %v1636 = vpop.permute.xlu0 %1635
        %1637 = vrot.lane.b32.xlu0 %v1562, 8
        %v1638 = vpop.permute.xlu0 %1637
        %1639 = vrot.lane.b32.xlu0 %v1566, 8
        %v1640 = vpop.permute.xlu0 %1639
        %1641 = vrot.lane.b32.xlu0 %v1569, 8
        %v1642 = vpop.permute.xlu0 %1641
        %1643 = vrot.lane.b32.xlu0 %v1573, 8
        %v1644 = vpop.permute.xlu0 %1643
        %1645 = vrot.lane.b32.xlu0 %v1576, 8
        %v1646 = vpop.permute.xlu0 %1645
        %1647 = vrot.lane.b32.xlu0 %v1580, 8
        %v1648 = vpop.permute.xlu0 %1647
        %1649 = vrot.lane.b32.xlu0 %v1583, 8
        %v1650 = vpop.permute.xlu0 %1649
        %1651 = vrot.lane.b32.xlu0 %v1587, 8
        %v1652 = vpop.permute.xlu0 %1651
        %1653 = vrot.lane.b32.xlu0 %v1590, 8
        %v1654 = vpop.permute.xlu0 %1653
        %vm1687 = vcmask 93248
        %1688 = vst.msk [vmem:[#allocation3] sm:$0xf] %vm1687, %v1592
        %1689 = vst.msk [vmem:[#allocation3 + $0x4] sm:$0xf] %vm1687, %v1594
        %1690 = vst.msk [vmem:[#allocation3 + $0x8] sm:$0xf] %vm1687, %v1596
        %1691 = vst.msk [vmem:[#allocation3 + $0xc] sm:$0xf] %vm1687, %v1598
        %1692 = vst.msk [vmem:[#allocation3 + $0x10] sm:$0xf] %vm1687, %v1600
        %1693 = vst.msk [vmem:[#allocation3 + $0x14] sm:$0xf] %vm1687, %v1602
        %1694 = vst.msk [vmem:[#allocation3 + $0x18] sm:$0xf] %vm1687, %v1604
        %1695 = vst.msk [vmem:[#allocation3 + $0x1c] sm:$0xf] %vm1687, %v1606
        %1696 = vst.msk [vmem:[#allocation3 + $0x20] sm:$0xf] %vm1687, %v1608
        %1697 = vst.msk [vmem:[#allocation3 + $0x24] sm:$0xf] %vm1687, %v1610
        %1698 = vst.msk [vmem:[#allocation3 + $0x28] sm:$0xf] %vm1687, %v1612
        %1699 = vst.msk [vmem:[#allocation3 + $0x2c] sm:$0xf] %vm1687, %v1614
        %1700 = vst.msk [vmem:[#allocation3 + $0x30] sm:$0xf] %vm1687, %v1616
        %1701 = vst.msk [vmem:[#allocation3 + $0x34] sm:$0xf] %vm1687, %v1618
        %1702 = vst.msk [vmem:[#allocation3 + $0x38] sm:$0xf] %vm1687, %v1620
        %1703 = vst.msk [vmem:[#allocation3 + $0x3c] sm:$0xf] %vm1687, %v1622
        %1704 = vst.msk [vmem:[#allocation3 + $0x40] sm:$0xf] %vm1687, %v1624
        %1705 = vst.msk [vmem:[#allocation3 + $0x44] sm:$0xf] %vm1687, %v1626
        %1706 = vst.msk [vmem:[#allocation3 + $0x48] sm:$0xf] %vm1687, %v1628
        %1707 = vst.msk [vmem:[#allocation3 + $0x4c] sm:$0xf] %vm1687, %v1630
        %1708 = vst.msk [vmem:[#allocation3 + $0x50] sm:$0xf] %vm1687, %v1632
        %1709 = vst.msk [vmem:[#allocation3 + $0x54] sm:$0xf] %vm1687, %v1634
        %1710 = vst.msk [vmem:[#allocation3 + $0x58] sm:$0xf] %vm1687, %v1636
        %1711 = vst.msk [vmem:[#allocation3 + $0x5c] sm:$0xf] %vm1687, %v1638
        %1712 = vst.msk [vmem:[#allocation3 + $0x60] sm:$0xf] %vm1687, %v1640
        %1713 = vst.msk [vmem:[#allocation3 + $0x64] sm:$0xf] %vm1687, %v1642
        %1714 = vst.msk [vmem:[#allocation3 + $0x68] sm:$0xf] %vm1687, %v1644
        %1715 = vst.msk [vmem:[#allocation3 + $0x6c] sm:$0xf] %vm1687, %v1646
        %1716 = vst.msk [vmem:[#allocation3 + $0x70] sm:$0xf] %vm1687, %v1648
        %1717 = vst.msk [vmem:[#allocation3 + $0x74] sm:$0xf] %vm1687, %v1650
        %1718 = vst.msk [vmem:[#allocation3 + $0x78] sm:$0xf] %vm1687, %v1652
        %1719 = vst.msk [vmem:[#allocation3 + $0x7c] sm:$0xf] %vm1687, %v1654
        %v1720 = vld [vmem:[%s634] sm:$0xf]
        %v1721 = vld [vmem:[%s634 + $0x4] sm:$0xf]
        %v1722 = vld [vmem:[%s634 + $0xc] sm:$0xf]
        %v1723 = vld [vmem:[%s634 + $0x10] sm:$0xf]
        %v1724 = vld [vmem:[%s634 + $0x18] sm:$0xf]
        %v1725 = vld [vmem:[%s634 + $0x1c] sm:$0xf]
        %v1726 = vld [vmem:[%s634 + $0x24] sm:$0xf]
        %v1727 = vld [vmem:[%s634 + $0x28] sm:$0xf]
        %v1728 = vld [vmem:[%s634 + $0x30] sm:$0xf]
        %v1729 = vld [vmem:[%s634 + $0x34] sm:$0xf]
        %v1730 = vld [vmem:[%s634 + $0x3c] sm:$0xf]
        %v1731 = vld [vmem:[%s634 + $0x40] sm:$0xf]
        %v1732 = vld [vmem:[%s634 + $0x48] sm:$0xf]
        %v1733 = vld [vmem:[%s634 + $0x4c] sm:$0xf]
        %v1734 = vld [vmem:[%s634 + $0x54] sm:$0xf]
        %v1735 = vld [vmem:[%s634 + $0x58] sm:$0xf]
        %v1736 = vld [vmem:[%s634 + $0x60] sm:$0xf]
        %v1737 = vld [vmem:[%s634 + $0x64] sm:$0xf]
        %v1738 = vld [vmem:[%s634 + $0x6c] sm:$0xf]
        %v1739 = vld [vmem:[%s634 + $0x70] sm:$0xf]
        %v1740 = vld [vmem:[%s634 + $0x78] sm:$0xf]
        %v1741 = vld [vmem:[%s634 + $0x7c] sm:$0xf]
        %v1742 = vld [vmem:[%s634 + $0x84] sm:$0xf]
        %v1743 = vld [vmem:[%s634 + $0x88] sm:$0xf]
        %v1744 = vld [vmem:[%s634 + $0x90] sm:$0xf]
        %v1745 = vld [vmem:[%s634 + $0x94] sm:$0xf]
        %v1746 = vld [vmem:[%s634 + $0x9c] sm:$0xf]
        %v1747 = vld [vmem:[%s634 + $0xa0] sm:$0xf]
        %v1748 = vld [vmem:[%s634 + $0xa8] sm:$0xf]
        %v1749 = vld [vmem:[%s634 + $0xac] sm:$0xf]
        %v1750 = vld [vmem:[%s634 + $0xb4] sm:$0xf]
        %v1751 = vld [vmem:[%s634 + $0xb8] sm:$0xf]
        %1784 = vrot.lane.b32.xlu0 %v1720, 12
        %v1785 = vpop.permute.xlu0 %1784
        %1786 = vrot.lane.b32.xlu0 %v1721, 12
        %v1787 = vpop.permute.xlu0 %1786
        %1788 = vrot.lane.b32.xlu0 %v1722, 12
        %v1789 = vpop.permute.xlu0 %1788
        %1790 = vrot.lane.b32.xlu0 %v1723, 12
        %v1791 = vpop.permute.xlu0 %1790
        %1792 = vrot.lane.b32.xlu0 %v1724, 12
        %v1793 = vpop.permute.xlu0 %1792
        %1794 = vrot.lane.b32.xlu0 %v1725, 12
        %v1795 = vpop.permute.xlu0 %1794
        %1796 = vrot.lane.b32.xlu0 %v1726, 12
        %v1797 = vpop.permute.xlu0 %1796
        %1798 = vrot.lane.b32.xlu0 %v1727, 12
        %v1799 = vpop.permute.xlu0 %1798
        %1800 = vrot.lane.b32.xlu0 %v1728, 12
        %v1801 = vpop.permute.xlu0 %1800
        %1802 = vrot.lane.b32.xlu0 %v1729, 12
        %v1803 = vpop.permute.xlu0 %1802
        %1804 = vrot.lane.b32.xlu0 %v1730, 12
        %v1805 = vpop.permute.xlu0 %1804
        %1806 = vrot.lane.b32.xlu0 %v1731, 12
        %v1807 = vpop.permute.xlu0 %1806
        %1808 = vrot.lane.b32.xlu0 %v1732, 12
        %v1809 = vpop.permute.xlu0 %1808
        %1810 = vrot.lane.b32.xlu0 %v1733, 12
        %v1811 = vpop.permute.xlu0 %1810
        %1812 = vrot.lane.b32.xlu0 %v1734, 12
        %v1813 = vpop.permute.xlu0 %1812
        %1814 = vrot.lane.b32.xlu0 %v1735, 12
        %v1815 = vpop.permute.xlu0 %1814
        %1816 = vrot.lane.b32.xlu0 %v1736, 12
        %v1817 = vpop.permute.xlu0 %1816
        %1818 = vrot.lane.b32.xlu0 %v1737, 12
        %v1819 = vpop.permute.xlu0 %1818
        %1820 = vrot.lane.b32.xlu0 %v1738, 12
        %v1821 = vpop.permute.xlu0 %1820
        %1822 = vrot.lane.b32.xlu0 %v1739, 12
        %v1823 = vpop.permute.xlu0 %1822
        %1824 = vrot.lane.b32.xlu0 %v1740, 12
        %v1825 = vpop.permute.xlu0 %1824
        %1826 = vrot.lane.b32.xlu0 %v1741, 12
        %v1827 = vpop.permute.xlu0 %1826
        %1828 = vrot.lane.b32.xlu0 %v1742, 12
        %v1829 = vpop.permute.xlu0 %1828
        %1830 = vrot.lane.b32.xlu0 %v1743, 12
        %v1831 = vpop.permute.xlu0 %1830
        %1832 = vrot.lane.b32.xlu0 %v1744, 12
        %v1833 = vpop.permute.xlu0 %1832
        %1834 = vrot.lane.b32.xlu0 %v1745, 12
        %v1835 = vpop.permute.xlu0 %1834
        %1836 = vrot.lane.b32.xlu0 %v1746, 12
        %v1837 = vpop.permute.xlu0 %1836
        %1838 = vrot.lane.b32.xlu0 %v1747, 12
        %v1839 = vpop.permute.xlu0 %1838
        %1840 = vrot.lane.b32.xlu0 %v1748, 12
        %v1841 = vpop.permute.xlu0 %1840
        %1842 = vrot.lane.b32.xlu0 %v1749, 12
        %v1843 = vpop.permute.xlu0 %1842
        %1844 = vrot.lane.b32.xlu0 %v1750, 12
        %v1845 = vpop.permute.xlu0 %1844
        %1846 = vrot.lane.b32.xlu0 %v1751, 12
        %v1847 = vpop.permute.xlu0 %1846
        %vm1880 = vcmask 126048
        %1881 = vst.msk [vmem:[#allocation3] sm:$0xf] %vm1880, %v1785
        %1882 = vst.msk [vmem:[#allocation3 + $0x4] sm:$0xf] %vm1880, %v1787
        %1883 = vst.msk [vmem:[#allocation3 + $0x8] sm:$0xf] %vm1880, %v1789
        %1884 = vst.msk [vmem:[#allocation3 + $0xc] sm:$0xf] %vm1880, %v1791
        %1885 = vst.msk [vmem:[#allocation3 + $0x10] sm:$0xf] %vm1880, %v1793
        %1886 = vst.msk [vmem:[#allocation3 + $0x14] sm:$0xf] %vm1880, %v1795
        %1887 = vst.msk [vmem:[#allocation3 + $0x18] sm:$0xf] %vm1880, %v1797
        %1888 = vst.msk [vmem:[#allocation3 + $0x1c] sm:$0xf] %vm1880, %v1799
        %1889 = vst.msk [vmem:[#allocation3 + $0x20] sm:$0xf] %vm1880, %v1801
        %1890 = vst.msk [vmem:[#allocation3 + $0x24] sm:$0xf] %vm1880, %v1803
        %1891 = vst.msk [vmem:[#allocation3 + $0x28] sm:$0xf] %vm1880, %v1805
        %1892 = vst.msk [vmem:[#allocation3 + $0x2c] sm:$0xf] %vm1880, %v1807
        %1893 = vst.msk [vmem:[#allocation3 + $0x30] sm:$0xf] %vm1880, %v1809
        %1894 = vst.msk [vmem:[#allocation3 + $0x34] sm:$0xf] %vm1880, %v1811
        %1895 = vst.msk [vmem:[#allocation3 + $0x38] sm:$0xf] %vm1880, %v1813
        %1896 = vst.msk [vmem:[#allocation3 + $0x3c] sm:$0xf] %vm1880, %v1815
        %1897 = vst.msk [vmem:[#allocation3 + $0x40] sm:$0xf] %vm1880, %v1817
        %1898 = vst.msk [vmem:[#allocation3 + $0x44] sm:$0xf] %vm1880, %v1819
        %1899 = vst.msk [vmem:[#allocation3 + $0x48] sm:$0xf] %vm1880, %v1821
        %1900 = vst.msk [vmem:[#allocation3 + $0x4c] sm:$0xf] %vm1880, %v1823
        %1901 = vst.msk [vmem:[#allocation3 + $0x50] sm:$0xf] %vm1880, %v1825
        %1902 = vst.msk [vmem:[#allocation3 + $0x54] sm:$0xf] %vm1880, %v1827
        %1903 = vst.msk [vmem:[#allocation3 + $0x58] sm:$0xf] %vm1880, %v1829
        %1904 = vst.msk [vmem:[#allocation3 + $0x5c] sm:$0xf] %vm1880, %v1831
        %1905 = vst.msk [vmem:[#allocation3 + $0x60] sm:$0xf] %vm1880, %v1833
        %1906 = vst.msk [vmem:[#allocation3 + $0x64] sm:$0xf] %vm1880, %v1835
        %1907 = vst.msk [vmem:[#allocation3 + $0x68] sm:$0xf] %vm1880, %v1837
        %1908 = vst.msk [vmem:[#allocation3 + $0x6c] sm:$0xf] %vm1880, %v1839
        %1909 = vst.msk [vmem:[#allocation3 + $0x70] sm:$0xf] %vm1880, %v1841
        %1910 = vst.msk [vmem:[#allocation3 + $0x74] sm:$0xf] %vm1880, %v1843
        %1911 = vst.msk [vmem:[#allocation3 + $0x78] sm:$0xf] %vm1880, %v1845
        %1912 = vst.msk [vmem:[#allocation3 + $0x7c] sm:$0xf] %vm1880, %v1847
        %v1913 = vld [vmem:[%s634] sm:$0xf]
        %v1914 = vld [vmem:[%s634 + $0x4] sm:$0xf]
        %v1915 = vld [vmem:[%s634 + $0x8] sm:$0x1]
        %v1916 = vld [vmem:[%s634 + $0xc] sm:$0xf]
        %v1917 = vld [vmem:[%s634 + $0x10] sm:$0xf]
        %v1918 = vld [vmem:[%s634 + $0x14] sm:$0x1]
        %v1919 = vld [vmem:[%s634 + $0x18] sm:$0xf]
        %v1920 = vld [vmem:[%s634 + $0x1c] sm:$0xf]
        %v1921 = vld [vmem:[%s634 + $0x20] sm:$0x1]
        %v1922 = vld [vmem:[%s634 + $0x24] sm:$0xf]
        %v1923 = vld [vmem:[%s634 + $0x28] sm:$0xf]
        %v1924 = vld [vmem:[%s634 + $0x2c] sm:$0x1]
        %v1925 = vld [vmem:[%s634 + $0x30] sm:$0xf]
        %v1926 = vld [vmem:[%s634 + $0x34] sm:$0xf]
        %v1927 = vld [vmem:[%s634 + $0x38] sm:$0x1]
        %v1928 = vld [vmem:[%s634 + $0x3c] sm:$0xf]
        %v1929 = vld [vmem:[%s634 + $0x40] sm:$0xf]
        %v1930 = vld [vmem:[%s634 + $0x44] sm:$0x1]
        %v1931 = vld [vmem:[%s634 + $0x48] sm:$0xf]
        %v1932 = vld [vmem:[%s634 + $0x4c] sm:$0xf]
        %v1933 = vld [vmem:[%s634 + $0x50] sm:$0x1]
        %v1934 = vld [vmem:[%s634 + $0x54] sm:$0xf]
        %v1935 = vld [vmem:[%s634 + $0x58] sm:$0xf]
        %v1936 = vld [vmem:[%s634 + $0x5c] sm:$0x1]
        %v1937 = vld [vmem:[%s634 + $0x60] sm:$0xf]
        %v1938 = vld [vmem:[%s634 + $0x64] sm:$0xf]
        %v1939 = vld [vmem:[%s634 + $0x68] sm:$0x1]
        %v1940 = vld [vmem:[%s634 + $0x6c] sm:$0xf]
        %v1941 = vld [vmem:[%s634 + $0x70] sm:$0xf]
        %v1942 = vld [vmem:[%s634 + $0x74] sm:$0x1]
        %v1943 = vld [vmem:[%s634 + $0x78] sm:$0xf]
        %v1944 = vld [vmem:[%s634 + $0x7c] sm:$0xf]
        %v1945 = vld [vmem:[%s634 + $0x80] sm:$0x1]
        %v1946 = vld [vmem:[%s634 + $0x84] sm:$0xf]
        %v1947 = vld [vmem:[%s634 + $0x88] sm:$0xf]
        %v1948 = vld [vmem:[%s634 + $0x8c] sm:$0x1]
        %v1949 = vld [vmem:[%s634 + $0x90] sm:$0xf]
        %v1950 = vld [vmem:[%s634 + $0x94] sm:$0xf]
        %v1951 = vld [vmem:[%s634 + $0x98] sm:$0x1]
        %v1952 = vld [vmem:[%s634 + $0x9c] sm:$0xf]
        %v1953 = vld [vmem:[%s634 + $0xa0] sm:$0xf]
        %v1954 = vld [vmem:[%s634 + $0xa4] sm:$0x1]
        %v1955 = vld [vmem:[%s634 + $0xa8] sm:$0xf]
        %v1956 = vld [vmem:[%s634 + $0xac] sm:$0xf]
        %v1957 = vld [vmem:[%s634 + $0xb0] sm:$0x1]
        %v1958 = vld [vmem:[%s634 + $0xb4] sm:$0xf]
        %v1959 = vld [vmem:[%s634 + $0xb8] sm:$0xf]
        %v1960 = vld [vmem:[%s634 + $0xbc] sm:$0x1]
        %v1962 = vshrl.u32 %v1913, 16
        %v1964 = vrot.slane %v1962, 4
        %v1965 = vshll.u32 %v1913, 16
        %v1967 = vrot.slane %v1965, 5
        %v1968 = vor.u32 %v1964, %v1967
        %v1969 = vrot.slane %v1968, 4
        %v1971 = vshll.u32 %v1914, 16
        %v1973 = vrot.slane %v1971, 5
        %v1974 = vsel %vm866, %v1969, %v1973
        %v1975 = vshrl.u32 %v1914, 16
        %v1977 = vrot.slane %v1975, 4
        %v1978 = vor.u32 %v1977, %v1973
        %v1979 = vrot.slane %v1978, 4
        %v1981 = vshll.u32 %v1915, 16
        %v1983 = vrot.slane %v1981, 5
        %v1984 = vsel %vm866, %v1979, %v1983
        %v1986 = vshrl.u32 %v1916, 16
        %v1988 = vrot.slane %v1986, 4
        %v1989 = vshll.u32 %v1916, 16
        %v1991 = vrot.slane %v1989, 5
        %v1992 = vor.u32 %v1988, %v1991
        %v1993 = vrot.slane %v1992, 4
        %v1995 = vshll.u32 %v1917, 16
        %v1997 = vrot.slane %v1995, 5
        %v1998 = vsel %vm866, %v1993, %v1997
        %v1999 = vshrl.u32 %v1917, 16
        %v2001 = vrot.slane %v1999, 4
        %v2002 = vor.u32 %v2001, %v1997
        %v2003 = vrot.slane %v2002, 4
        %v2005 = vshll.u32 %v1918, 16
        %v2007 = vrot.slane %v2005, 5
        %v2008 = vsel %vm866, %v2003, %v2007
        %v2010 = vshrl.u32 %v1919, 16
        %v2012 = vrot.slane %v2010, 4
        %v2013 = vshll.u32 %v1919, 16
        %v2015 = vrot.slane %v2013, 5
        %v2016 = vor.u32 %v2012, %v2015
        %v2017 = vrot.slane %v2016, 4
        %v2019 = vshll.u32 %v1920, 16
        %v2021 = vrot.slane %v2019, 5
        %v2022 = vsel %vm866, %v2017, %v2021
        %v2023 = vshrl.u32 %v1920, 16
        %v2025 = vrot.slane %v2023, 4
        %v2026 = vor.u32 %v2025, %v2021
        %v2027 = vrot.slane %v2026, 4
        %v2029 = vshll.u32 %v1921, 16
        %v2031 = vrot.slane %v2029, 5
        %v2032 = vsel %vm866, %v2027, %v2031
        %v2034 = vshrl.u32 %v1922, 16
        %v2036 = vrot.slane %v2034, 4
        %v2037 = vshll.u32 %v1922, 16
        %v2039 = vrot.slane %v2037, 5
        %v2040 = vor.u32 %v2036, %v2039
        %v2041 = vrot.slane %v2040, 4
        %v2043 = vshll.u32 %v1923, 16
        %v2045 = vrot.slane %v2043, 5
        %v2046 = vsel %vm866, %v2041, %v2045
        %v2047 = vshrl.u32 %v1923, 16
        %v2049 = vrot.slane %v2047, 4
        %v2050 = vor.u32 %v2049, %v2045
        %v2051 = vrot.slane %v2050, 4
        %v2053 = vshll.u32 %v1924, 16
        %v2055 = vrot.slane %v2053, 5
        %v2056 = vsel %vm866, %v2051, %v2055
        %v2058 = vshrl.u32 %v1925, 16
        %v2060 = vrot.slane %v2058, 4
        %v2061 = vshll.u32 %v1925, 16
        %v2063 = vrot.slane %v2061, 5
        %v2064 = vor.u32 %v2060, %v2063
        %v2065 = vrot.slane %v2064, 4
        %v2067 = vshll.u32 %v1926, 16
        %v2069 = vrot.slane %v2067, 5
        %v2070 = vsel %vm866, %v2065, %v2069
        %v2071 = vshrl.u32 %v1926, 16
        %v2073 = vrot.slane %v2071, 4
        %v2074 = vor.u32 %v2073, %v2069
        %v2075 = vrot.slane %v2074, 4
        %v2077 = vshll.u32 %v1927, 16
        %v2079 = vrot.slane %v2077, 5
        %v2080 = vsel %vm866, %v2075, %v2079
        %v2082 = vshrl.u32 %v1928, 16
        %v2084 = vrot.slane %v2082, 4
        %v2085 = vshll.u32 %v1928, 16
        %v2087 = vrot.slane %v2085, 5
        %v2088 = vor.u32 %v2084, %v2087
        %v2089 = vrot.slane %v2088, 4
        %v2091 = vshll.u32 %v1929, 16
        %v2093 = vrot.slane %v2091, 5
        %v2094 = vsel %vm866, %v2089, %v2093
        %v2095 = vshrl.u32 %v1929, 16
        %v2097 = vrot.slane %v2095, 4
        %v2098 = vor.u32 %v2097, %v2093
        %v2099 = vrot.slane %v2098, 4
        %v2101 = vshll.u32 %v1930, 16
        %v2103 = vrot.slane %v2101, 5
        %v2104 = vsel %vm866, %v2099, %v2103
        %v2106 = vshrl.u32 %v1931, 16
        %v2108 = vrot.slane %v2106, 4
        %v2109 = vshll.u32 %v1931, 16
        %v2111 = vrot.slane %v2109, 5
        %v2112 = vor.u32 %v2108, %v2111
        %v2113 = vrot.slane %v2112, 4
        %v2115 = vshll.u32 %v1932, 16
        %v2117 = vrot.slane %v2115, 5
        %v2118 = vsel %vm866, %v2113, %v2117
        %v2119 = vshrl.u32 %v1932, 16
        %v2121 = vrot.slane %v2119, 4
        %v2122 = vor.u32 %v2121, %v2117
        %v2123 = vrot.slane %v2122, 4
        %v2125 = vshll.u32 %v1933, 16
        %v2127 = vrot.slane %v2125, 5
        %v2128 = vsel %vm866, %v2123, %v2127
        %v2130 = vshrl.u32 %v1934, 16
        %v2132 = vrot.slane %v2130, 4
        %v2133 = vshll.u32 %v1934, 16
        %v2135 = vrot.slane %v2133, 5
        %v2136 = vor.u32 %v2132, %v2135
        %v2137 = vrot.slane %v2136, 4
        %v2139 = vshll.u32 %v1935, 16
        %v2141 = vrot.slane %v2139, 5
        %v2142 = vsel %vm866, %v2137, %v2141
        %v2143 = vshrl.u32 %v1935, 16
        %v2145 = vrot.slane %v2143, 4
        %v2146 = vor.u32 %v2145, %v2141
        %v2147 = vrot.slane %v2146, 4
        %v2149 = vshll.u32 %v1936, 16
        %v2151 = vrot.slane %v2149, 5
        %v2152 = vsel %vm866, %v2147, %v2151
        %v2154 = vshrl.u32 %v1937, 16
        %v2156 = vrot.slane %v2154, 4
        %v2157 = vshll.u32 %v1937, 16
        %v2159 = vrot.slane %v2157, 5
        %v2160 = vor.u32 %v2156, %v2159
        %v2161 = vrot.slane %v2160, 4
        %v2163 = vshll.u32 %v1938, 16
        %v2165 = vrot.slane %v2163, 5
        %v2166 = vsel %vm866, %v2161, %v2165
        %v2167 = vshrl.u32 %v1938, 16
        %v2169 = vrot.slane %v2167, 4
        %v2170 = vor.u32 %v2169, %v2165
        %v2171 = vrot.slane %v2170, 4
        %v2173 = vshll.u32 %v1939, 16
        %v2175 = vrot.slane %v2173, 5
        %v2176 = vsel %vm866, %v2171, %v2175
        %v2178 = vshrl.u32 %v1940, 16
        %v2180 = vrot.slane %v2178, 4
        %v2181 = vshll.u32 %v1940, 16
        %v2183 = vrot.slane %v2181, 5
        %v2184 = vor.u32 %v2180, %v2183
        %v2185 = vrot.slane %v2184, 4
        %v2187 = vshll.u32 %v1941, 16
        %v2189 = vrot.slane %v2187, 5
        %v2190 = vsel %vm866, %v2185, %v2189
        %v2191 = vshrl.u32 %v1941, 16
        %v2193 = vrot.slane %v2191, 4
        %v2194 = vor.u32 %v2193, %v2189
        %v2195 = vrot.slane %v2194, 4
        %v2197 = vshll.u32 %v1942, 16
        %v2199 = vrot.slane %v2197, 5
        %v2200 = vsel %vm866, %v2195, %v2199
        %v2202 = vshrl.u32 %v1943, 16
        %v2204 = vrot.slane %v2202, 4
        %v2205 = vshll.u32 %v1943, 16
        %v2207 = vrot.slane %v2205, 5
        %v2208 = vor.u32 %v2204, %v2207
        %v2209 = vrot.slane %v2208, 4
        %v2211 = vshll.u32 %v1944, 16
        %v2213 = vrot.slane %v2211, 5
        %v2214 = vsel %vm866, %v2209, %v2213
        %v2215 = vshrl.u32 %v1944, 16
        %v2217 = vrot.slane %v2215, 4
        %v2218 = vor.u32 %v2217, %v2213
        %v2219 = vrot.slane %v2218, 4
        %v2221 = vshll.u32 %v1945, 16
        %v2223 = vrot.slane %v2221, 5
        %v2224 = vsel %vm866, %v2219, %v2223
        %v2226 = vshrl.u32 %v1946, 16
        %v2228 = vrot.slane %v2226, 4
        %v2229 = vshll.u32 %v1946, 16
        %v2231 = vrot.slane %v2229, 5
        %v2232 = vor.u32 %v2228, %v2231
        %v2233 = vrot.slane %v2232, 4
        %v2235 = vshll.u32 %v1947, 16
        %v2237 = vrot.slane %v2235, 5
        %v2238 = vsel %vm866, %v2233, %v2237
        %v2239 = vshrl.u32 %v1947, 16
        %v2241 = vrot.slane %v2239, 4
        %v2242 = vor.u32 %v2241, %v2237
        %v2243 = vrot.slane %v2242, 4
        %v2245 = vshll.u32 %v1948, 16
        %v2247 = vrot.slane %v2245, 5
        %v2248 = vsel %vm866, %v2243, %v2247
        %v2250 = vshrl.u32 %v1949, 16
        %v2252 = vrot.slane %v2250, 4
        %v2253 = vshll.u32 %v1949, 16
        %v2255 = vrot.slane %v2253, 5
        %v2256 = vor.u32 %v2252, %v2255
        %v2257 = vrot.slane %v2256, 4
        %v2259 = vshll.u32 %v1950, 16
        %v2261 = vrot.slane %v2259, 5
        %v2262 = vsel %vm866, %v2257, %v2261
        %v2263 = vshrl.u32 %v1950, 16
        %v2265 = vrot.slane %v2263, 4
        %v2266 = vor.u32 %v2265, %v2261
        %v2267 = vrot.slane %v2266, 4
        %v2269 = vshll.u32 %v1951, 16
        %v2271 = vrot.slane %v2269, 5
        %v2272 = vsel %vm866, %v2267, %v2271
        %v2274 = vshrl.u32 %v1952, 16
        %v2276 = vrot.slane %v2274, 4
        %v2277 = vshll.u32 %v1952, 16
        %v2279 = vrot.slane %v2277, 5
        %v2280 = vor.u32 %v2276, %v2279
        %v2281 = vrot.slane %v2280, 4
        %v2283 = vshll.u32 %v1953, 16
        %v2285 = vrot.slane %v2283, 5
        %v2286 = vsel %vm866, %v2281, %v2285
        %v2287 = vshrl.u32 %v1953, 16
        %v2289 = vrot.slane %v2287, 4
        %v2290 = vor.u32 %v2289, %v2285
        %v2291 = vrot.slane %v2290, 4
        %v2293 = vshll.u32 %v1954, 16
        %v2295 = vrot.slane %v2293, 5
        %v2296 = vsel %vm866, %v2291, %v2295
        %v2298 = vshrl.u32 %v1955, 16
        %v2300 = vrot.slane %v2298, 4
        %v2301 = vshll.u32 %v1955, 16
        %v2303 = vrot.slane %v2301, 5
        %v2304 = vor.u32 %v2300, %v2303
        %v2305 = vrot.slane %v2304, 4
        %v2307 = vshll.u32 %v1956, 16
        %v2309 = vrot.slane %v2307, 5
        %v2310 = vsel %vm866, %v2305, %v2309
        %v2311 = vshrl.u32 %v1956, 16
        %v2313 = vrot.slane %v2311, 4
        %v2314 = vor.u32 %v2313, %v2309
        %v2315 = vrot.slane %v2314, 4
        %v2317 = vshll.u32 %v1957, 16
        %v2319 = vrot.slane %v2317, 5
        %v2320 = vsel %vm866, %v2315, %v2319
        %v2322 = vshrl.u32 %v1958, 16
        %v2324 = vrot.slane %v2322, 4
        %v2325 = vshll.u32 %v1958, 16
        %v2327 = vrot.slane %v2325, 5
        %v2328 = vor.u32 %v2324, %v2327
        %v2329 = vrot.slane %v2328, 4
        %v2331 = vshll.u32 %v1959, 16
        %v2333 = vrot.slane %v2331, 5
        %v2334 = vsel %vm866, %v2329, %v2333
        %v2335 = vshrl.u32 %v1959, 16
        %v2337 = vrot.slane %v2335, 4
        %v2338 = vor.u32 %v2337, %v2333
        %v2339 = vrot.slane %v2338, 4
        %v2341 = vshll.u32 %v1960, 16
        %v2343 = vrot.slane %v2341, 5
        %v2344 = vsel %vm866, %v2339, %v2343
        %2345 = vrot.lane.b32.xlu0 %v1974, 16
        %v2346 = vpop.permute.xlu0 %2345
        %2347 = vrot.lane.b32.xlu0 %v1984, 16
        %v2348 = vpop.permute.xlu0 %2347
        %2349 = vrot.lane.b32.xlu0 %v1998, 16
        %v2350 = vpop.permute.xlu0 %2349
        %2351 = vrot.lane.b32.xlu0 %v2008, 16
        %v2352 = vpop.permute.xlu0 %2351
        %2353 = vrot.lane.b32.xlu0 %v2022, 16
        %v2354 = vpop.permute.xlu0 %2353
        %2355 = vrot.lane.b32.xlu0 %v2032, 16
        %v2356 = vpop.permute.xlu0 %2355
        %2357 = vrot.lane.b32.xlu0 %v2046, 16
        %v2358 = vpop.permute.xlu0 %2357
        %2359 = vrot.lane.b32.xlu0 %v2056, 16
        %v2360 = vpop.permute.xlu0 %2359
        %2361 = vrot.lane.b32.xlu0 %v2070, 16
        %v2362 = vpop.permute.xlu0 %2361
        %2363 = vrot.lane.b32.xlu0 %v2080, 16
        %v2364 = vpop.permute.xlu0 %2363
        %2365 = vrot.lane.b32.xlu0 %v2094, 16
        %v2366 = vpop.permute.xlu0 %2365
        %2367 = vrot.lane.b32.xlu0 %v2104, 16
        %v2368 = vpop.permute.xlu0 %2367
        %2369 = vrot.lane.b32.xlu0 %v2118, 16
        %v2370 = vpop.permute.xlu0 %2369
        %2371 = vrot.lane.b32.xlu0 %v2128, 16
        %v2372 = vpop.permute.xlu0 %2371
        %2373 = vrot.lane.b32.xlu0 %v2142, 16
        %v2374 = vpop.permute.xlu0 %2373
        %2375 = vrot.lane.b32.xlu0 %v2152, 16
        %v2376 = vpop.permute.xlu0 %2375
        %2377 = vrot.lane.b32.xlu0 %v2166, 16
        %v2378 = vpop.permute.xlu0 %2377
        %2379 = vrot.lane.b32.xlu0 %v2176, 16
        %v2380 = vpop.permute.xlu0 %2379
        %2381 = vrot.lane.b32.xlu0 %v2190, 16
        %v2382 = vpop.permute.xlu0 %2381
        %2383 = vrot.lane.b32.xlu0 %v2200, 16
        %v2384 = vpop.permute.xlu0 %2383
        %2385 = vrot.lane.b32.xlu0 %v2214, 16
        %v2386 = vpop.permute.xlu0 %2385
        %2387 = vrot.lane.b32.xlu0 %v2224, 16
        %v2388 = vpop.permute.xlu0 %2387
        %2389 = vrot.lane.b32.xlu0 %v2238, 16
        %v2390 = vpop.permute.xlu0 %2389
        %2391 = vrot.lane.b32.xlu0 %v2248, 16
        %v2392 = vpop.permute.xlu0 %2391
        %2393 = vrot.lane.b32.xlu0 %v2262, 16
        %v2394 = vpop.permute.xlu0 %2393
        %2395 = vrot.lane.b32.xlu0 %v2272, 16
        %v2396 = vpop.permute.xlu0 %2395
        %2397 = vrot.lane.b32.xlu0 %v2286, 16
        %v2398 = vpop.permute.xlu0 %2397
        %2399 = vrot.lane.b32.xlu0 %v2296, 16
        %v2400 = vpop.permute.xlu0 %2399
        %2401 = vrot.lane.b32.xlu0 %v2310, 16
        %v2402 = vpop.permute.xlu0 %2401
        %2403 = vrot.lane.b32.xlu0 %v2320, 16
        %v2404 = vpop.permute.xlu0 %2403
        %2405 = vrot.lane.b32.xlu0 %v2334, 16
        %v2406 = vpop.permute.xlu0 %2405
        %2407 = vrot.lane.b32.xlu0 %v2344, 16
        %v2408 = vpop.permute.xlu0 %2407
        %vm2441 = vcmask 158848
        %2442 = vst.msk [vmem:[#allocation3] sm:$0xf] %vm2441, %v2346
        %2443 = vst.msk [vmem:[#allocation3 + $0x4] sm:$0xf] %vm2441, %v2348
        %2444 = vst.msk [vmem:[#allocation3 + $0x8] sm:$0xf] %vm2441, %v2350
        %2445 = vst.msk [vmem:[#allocation3 + $0xc] sm:$0xf] %vm2441, %v2352
        %2446 = vst.msk [vmem:[#allocation3 + $0x10] sm:$0xf] %vm2441, %v2354
        %2447 = vst.msk [vmem:[#allocation3 + $0x14] sm:$0xf] %vm2441, %v2356
        %2448 = vst.msk [vmem:[#allocation3 + $0x18] sm:$0xf] %vm2441, %v2358
        %2449 = vst.msk [vmem:[#allocation3 + $0x1c] sm:$0xf] %vm2441, %v2360
        %2450 = vst.msk [vmem:[#allocation3 + $0x20] sm:$0xf] %vm2441, %v2362
        %2451 = vst.msk [vmem:[#allocation3 + $0x24] sm:$0xf] %vm2441, %v2364
        %2452 = vst.msk [vmem:[#allocation3 + $0x28] sm:$0xf] %vm2441, %v2366
        %2453 = vst.msk [vmem:[#allocation3 + $0x2c] sm:$0xf] %vm2441, %v2368
        %2454 = vst.msk [vmem:[#allocation3 + $0x30] sm:$0xf] %vm2441, %v2370
        %2455 = vst.msk [vmem:[#allocation3 + $0x34] sm:$0xf] %vm2441, %v2372
        %2456 = vst.msk [vmem:[#allocation3 + $0x38] sm:$0xf] %vm2441, %v2374
        %2457 = vst.msk [vmem:[#allocation3 + $0x3c] sm:$0xf] %vm2441, %v2376
        %2458 = vst.msk [vmem:[#allocation3 + $0x40] sm:$0xf] %vm2441, %v2378
        %2459 = vst.msk [vmem:[#allocation3 + $0x44] sm:$0xf] %vm2441, %v2380
        %2460 = vst.msk [vmem:[#allocation3 + $0x48] sm:$0xf] %vm2441, %v2382
        %2461 = vst.msk [vmem:[#allocation3 + $0x4c] sm:$0xf] %vm2441, %v2384
        %2462 = vst.msk [vmem:[#allocation3 + $0x50] sm:$0xf] %vm2441, %v2386
        %2463 = vst.msk [vmem:[#allocation3 + $0x54] sm:$0xf] %vm2441, %v2388
        %2464 = vst.msk [vmem:[#allocation3 + $0x58] sm:$0xf] %vm2441, %v2390
        %2465 = vst.msk [vmem:[#allocation3 + $0x5c] sm:$0xf] %vm2441, %v2392
        %2466 = vst.msk [vmem:[#allocation3 + $0x60] sm:$0xf] %vm2441, %v2394
        %2467 = vst.msk [vmem:[#allocation3 + $0x64] sm:$0xf] %vm2441, %v2396
        %2468 = vst.msk [vmem:[#allocation3 + $0x68] sm:$0xf] %vm2441, %v2398
        %2469 = vst.msk [vmem:[#allocation3 + $0x6c] sm:$0xf] %vm2441, %v2400
        %2470 = vst.msk [vmem:[#allocation3 + $0x70] sm:$0xf] %vm2441, %v2402
        %2471 = vst.msk [vmem:[#allocation3 + $0x74] sm:$0xf] %vm2441, %v2404
        %2472 = vst.msk [vmem:[#allocation3 + $0x78] sm:$0xf] %vm2441, %v2406
        %2473 = vst.msk [vmem:[#allocation3 + $0x7c] sm:$0xf] %vm2441, %v2408
        %v2474 = vld [vmem:[%s634] sm:$0xe]
        %v2475 = vld [vmem:[%s634 + $0x4] sm:$0xf]
        %v2476 = vld [vmem:[%s634 + $0x8] sm:$0x1]
        %v2477 = vld [vmem:[%s634 + $0xc] sm:$0xe]
        %v2478 = vld [vmem:[%s634 + $0x10] sm:$0xf]
        %v2479 = vld [vmem:[%s634 + $0x14] sm:$0x1]
        %v2480 = vld [vmem:[%s634 + $0x18] sm:$0xe]
        %v2481 = vld [vmem:[%s634 + $0x1c] sm:$0xf]
        %v2482 = vld [vmem:[%s634 + $0x20] sm:$0x1]
        %v2483 = vld [vmem:[%s634 + $0x24] sm:$0xe]
        %v2484 = vld [vmem:[%s634 + $0x28] sm:$0xf]
        %v2485 = vld [vmem:[%s634 + $0x2c] sm:$0x1]
        %v2486 = vld [vmem:[%s634 + $0x30] sm:$0xe]
        %v2487 = vld [vmem:[%s634 + $0x34] sm:$0xf]
        %v2488 = vld [vmem:[%s634 + $0x38] sm:$0x1]
        %v2489 = vld [vmem:[%s634 + $0x3c] sm:$0xe]
        %v2490 = vld [vmem:[%s634 + $0x40] sm:$0xf]
        %v2491 = vld [vmem:[%s634 + $0x44] sm:$0x1]
        %v2492 = vld [vmem:[%s634 + $0x48] sm:$0xe]
        %v2493 = vld [vmem:[%s634 + $0x4c] sm:$0xf]
        %v2494 = vld [vmem:[%s634 + $0x50] sm:$0x1]
        %v2495 = vld [vmem:[%s634 + $0x54] sm:$0xe]
        %v2496 = vld [vmem:[%s634 + $0x58] sm:$0xf]
        %v2497 = vld [vmem:[%s634 + $0x5c] sm:$0x1]
        %v2498 = vld [vmem:[%s634 + $0x60] sm:$0xe]
        %v2499 = vld [vmem:[%s634 + $0x64] sm:$0xf]
        %v2500 = vld [vmem:[%s634 + $0x68] sm:$0x1]
        %v2501 = vld [vmem:[%s634 + $0x6c] sm:$0xe]
        %v2502 = vld [vmem:[%s634 + $0x70] sm:$0xf]
        %v2503 = vld [vmem:[%s634 + $0x74] sm:$0x1]
        %v2504 = vld [vmem:[%s634 + $0x78] sm:$0xe]
        %v2505 = vld [vmem:[%s634 + $0x7c] sm:$0xf]
        %v2506 = vld [vmem:[%s634 + $0x80] sm:$0x1]
        %v2507 = vld [vmem:[%s634 + $0x84] sm:$0xe]
        %v2508 = vld [vmem:[%s634 + $0x88] sm:$0xf]
        %v2509 = vld [vmem:[%s634 + $0x8c] sm:$0x1]
        %v2510 = vld [vmem:[%s634 + $0x90] sm:$0xe]
        %v2511 = vld [vmem:[%s634 + $0x94] sm:$0xf]
        %v2512 = vld [vmem:[%s634 + $0x98] sm:$0x1]
        %v2513 = vld [vmem:[%s634 + $0x9c] sm:$0xe]
        %v2514 = vld [vmem:[%s634 + $0xa0] sm:$0xf]
        %v2515 = vld [vmem:[%s634 + $0xa4] sm:$0x1]
        %v2516 = vld [vmem:[%s634 + $0xa8] sm:$0xe]
        %v2517 = vld [vmem:[%s634 + $0xac] sm:$0xf]
        %v2518 = vld [vmem:[%s634 + $0xb0] sm:$0x1]
        %v2519 = vld [vmem:[%s634 + $0xb4] sm:$0xe]
        %v2520 = vld [vmem:[%s634 + $0xb8] sm:$0xf]
        %v2521 = vld [vmem:[%s634 + $0xbc] sm:$0x1]
        %v2570 = vrot.slane %v2474, 5
        %v2571 = vrot.slane %v2570, 4
        %v2572 = vrot.slane %v2475, 5
        %v2573 = vsel %vm1478, %v2571, %v2572
        %v2574 = vrot.slane %v2572, 4
        %v2575 = vrot.slane %v2476, 5
        %v2576 = vsel %vm1478, %v2574, %v2575
        %v2577 = vrot.slane %v2477, 5
        %v2578 = vrot.slane %v2577, 4
        %v2579 = vrot.slane %v2478, 5
        %v2580 = vsel %vm1478, %v2578, %v2579
        %v2581 = vrot.slane %v2579, 4
        %v2582 = vrot.slane %v2479, 5
        %v2583 = vsel %vm1478, %v2581, %v2582
        %v2584 = vrot.slane %v2480, 5
        %v2585 = vrot.slane %v2584, 4
        %v2586 = vrot.slane %v2481, 5
        %v2587 = vsel %vm1478, %v2585, %v2586
        %v2588 = vrot.slane %v2586, 4
        %v2589 = vrot.slane %v2482, 5
        %v2590 = vsel %vm1478, %v2588, %v2589
        %v2591 = vrot.slane %v2483, 5
        %v2592 = vrot.slane %v2591, 4
        %v2593 = vrot.slane %v2484, 5
        %v2594 = vsel %vm1478, %v2592, %v2593
        %v2595 = vrot.slane %v2593, 4
        %v2596 = vrot.slane %v2485, 5
        %v2597 = vsel %vm1478, %v2595, %v2596
        %v2598 = vrot.slane %v2486, 5
        %v2599 = vrot.slane %v2598, 4
        %v2600 = vrot.slane %v2487, 5
        %v2601 = vsel %vm1478, %v2599, %v2600
        %v2602 = vrot.slane %v2600, 4
        %v2603 = vrot.slane %v2488, 5
        %v2604 = vsel %vm1478, %v2602, %v2603
        %v2605 = vrot.slane %v2489, 5
        %v2606 = vrot.slane %v2605, 4
        %v2607 = vrot.slane %v2490, 5
        %v2608 = vsel %vm1478, %v2606, %v2607
        %v2609 = vrot.slane %v2607, 4
        %v2610 = vrot.slane %v2491, 5
        %v2611 = vsel %vm1478, %v2609, %v2610
        %v2612 = vrot.slane %v2492, 5
        %v2613 = vrot.slane %v2612, 4
        %v2614 = vrot.slane %v2493, 5
        %v2615 = vsel %vm1478, %v2613, %v2614
        %v2616 = vrot.slane %v2614, 4
        %v2617 = vrot.slane %v2494, 5
        %v2618 = vsel %vm1478, %v2616, %v2617
        %v2619 = vrot.slane %v2495, 5
        %v2620 = vrot.slane %v2619, 4
        %v2621 = vrot.slane %v2496, 5
        %v2622 = vsel %vm1478, %v2620, %v2621
        %v2623 = vrot.slane %v2621, 4
        %v2624 = vrot.slane %v2497, 5
        %v2625 = vsel %vm1478, %v2623, %v2624
        %v2626 = vrot.slane %v2498, 5
        %v2627 = vrot.slane %v2626, 4
        %v2628 = vrot.slane %v2499, 5
        %v2629 = vsel %vm1478, %v2627, %v2628
        %v2630 = vrot.slane %v2628, 4
        %v2631 = vrot.slane %v2500, 5
        %v2632 = vsel %vm1478, %v2630, %v2631
        %v2633 = vrot.slane %v2501, 5
        %v2634 = vrot.slane %v2633, 4
        %v2635 = vrot.slane %v2502, 5
        %v2636 = vsel %vm1478, %v2634, %v2635
        %v2637 = vrot.slane %v2635, 4
        %v2638 = vrot.slane %v2503, 5
        %v2639 = vsel %vm1478, %v2637, %v2638
        %v2640 = vrot.slane %v2504, 5
        %v2641 = vrot.slane %v2640, 4
        %v2642 = vrot.slane %v2505, 5
        %v2643 = vsel %vm1478, %v2641, %v2642
        %v2644 = vrot.slane %v2642, 4
        %v2645 = vrot.slane %v2506, 5
        %v2646 = vsel %vm1478, %v2644, %v2645
        %v2647 = vrot.slane %v2507, 5
        %v2648 = vrot.slane %v2647, 4
        %v2649 = vrot.slane %v2508, 5
        %v2650 = vsel %vm1478, %v2648, %v2649
        %v2651 = vrot.slane %v2649, 4
        %v2652 = vrot.slane %v2509, 5
        %v2653 = vsel %vm1478, %v2651, %v2652
        %v2654 = vrot.slane %v2510, 5
        %v2655 = vrot.slane %v2654, 4
        %v2656 = vrot.slane %v2511, 5
        %v2657 = vsel %vm1478, %v2655, %v2656
        %v2658 = vrot.slane %v2656, 4
        %v2659 = vrot.slane %v2512, 5
        %v2660 = vsel %vm1478, %v2658, %v2659
        %v2661 = vrot.slane %v2513, 5
        %v2662 = vrot.slane %v2661, 4
        %v2663 = vrot.slane %v2514, 5
        %v2664 = vsel %vm1478, %v2662, %v2663
        %v2665 = vrot.slane %v2663, 4
        %v2666 = vrot.slane %v2515, 5
        %v2667 = vsel %vm1478, %v2665, %v2666
        %v2668 = vrot.slane %v2516, 5
        %v2669 = vrot.slane %v2668, 4
        %v2670 = vrot.slane %v2517, 5
        %v2671 = vsel %vm1478, %v2669, %v2670
        %v2672 = vrot.slane %v2670, 4
        %v2673 = vrot.slane %v2518, 5
        %v2674 = vsel %vm1478, %v2672, %v2673
        %v2675 = vrot.slane %v2519, 5
        %v2676 = vrot.slane %v2675, 4
        %v2677 = vrot.slane %v2520, 5
        %v2678 = vsel %vm1478, %v2676, %v2677
        %v2679 = vrot.slane %v2677, 4
        %v2680 = vrot.slane %v2521, 5
        %v2681 = vsel %vm1478, %v2679, %v2680
        %2682 = vrot.lane.b32.xlu0 %v2573, 20
        %v2683 = vpop.permute.xlu0 %2682
        %2684 = vrot.lane.b32.xlu0 %v2576, 20
        %v2685 = vpop.permute.xlu0 %2684
        %2686 = vrot.lane.b32.xlu0 %v2580, 20
        %v2687 = vpop.permute.xlu0 %2686
        %2688 = vrot.lane.b32.xlu0 %v2583, 20
        %v2689 = vpop.permute.xlu0 %2688
        %2690 = vrot.lane.b32.xlu0 %v2587, 20
        %v2691 = vpop.permute.xlu0 %2690
        %2692 = vrot.lane.b32.xlu0 %v2590, 20
        %v2693 = vpop.permute.xlu0 %2692
        %2694 = vrot.lane.b32.xlu0 %v2594, 20
        %v2695 = vpop.permute.xlu0 %2694
        %2696 = vrot.lane.b32.xlu0 %v2597, 20
        %v2697 = vpop.permute.xlu0 %2696
        %2698 = vrot.lane.b32.xlu0 %v2601, 20
        %v2699 = vpop.permute.xlu0 %2698
        %2700 = vrot.lane.b32.xlu0 %v2604, 20
        %v2701 = vpop.permute.xlu0 %2700
        %2702 = vrot.lane.b32.xlu0 %v2608, 20
        %v2703 = vpop.permute.xlu0 %2702
        %2704 = vrot.lane.b32.xlu0 %v2611, 20
        %v2705 = vpop.permute.xlu0 %2704
        %2706 = vrot.lane.b32.xlu0 %v2615, 20
        %v2707 = vpop.permute.xlu0 %2706
        %2708 = vrot.lane.b32.xlu0 %v2618, 20
        %v2709 = vpop.permute.xlu0 %2708
        %2710 = vrot.lane.b32.xlu0 %v2622, 20
        %v2711 = vpop.permute.xlu0 %2710
        %2712 = vrot.lane.b32.xlu0 %v2625, 20
        %v2713 = vpop.permute.xlu0 %2712
        %2714 = vrot.lane.b32.xlu0 %v2629, 20
        %v2715 = vpop.permute.xlu0 %2714
        %2716 = vrot.lane.b32.xlu0 %v2632, 20
        %v2717 = vpop.permute.xlu0 %2716
        %2718 = vrot.lane.b32.xlu0 %v2636, 20
        %v2719 = vpop.permute.xlu0 %2718
        %2720 = vrot.lane.b32.xlu0 %v2639, 20
        %v2721 = vpop.permute.xlu0 %2720
        %2722 = vrot.lane.b32.xlu0 %v2643, 20
        %v2723 = vpop.permute.xlu0 %2722
        %2724 = vrot.lane.b32.xlu0 %v2646, 20
        %v2725 = vpop.permute.xlu0 %2724
        %2726 = vrot.lane.b32.xlu0 %v2650, 20
        %v2727 = vpop.permute.xlu0 %2726
        %2728 = vrot.lane.b32.xlu0 %v2653, 20
        %v2729 = vpop.permute.xlu0 %2728
        %2730 = vrot.lane.b32.xlu0 %v2657, 20
        %v2731 = vpop.permute.xlu0 %2730
        %2732 = vrot.lane.b32.xlu0 %v2660, 20
        %v2733 = vpop.permute.xlu0 %2732
        %2734 = vrot.lane.b32.xlu0 %v2664, 20
        %v2735 = vpop.permute.xlu0 %2734
        %2736 = vrot.lane.b32.xlu0 %v2667, 20
        %v2737 = vpop.permute.xlu0 %2736
        %2738 = vrot.lane.b32.xlu0 %v2671, 20
        %v2739 = vpop.permute.xlu0 %2738
        %2740 = vrot.lane.b32.xlu0 %v2674, 20
        %v2741 = vpop.permute.xlu0 %2740
        %2742 = vrot.lane.b32.xlu0 %v2678, 20
        %v2743 = vpop.permute.xlu0 %2742
        %2744 = vrot.lane.b32.xlu0 %v2681, 20
        %v2745 = vpop.permute.xlu0 %2744
        %vm2778 = vcmask 191648
        %2779 = vst.msk [vmem:[#allocation3] sm:$0xf] %vm2778, %v2683
        %2780 = vst.msk [vmem:[#allocation3 + $0x4] sm:$0xf] %vm2778, %v2685
        %2781 = vst.msk [vmem:[#allocation3 + $0x8] sm:$0xf] %vm2778, %v2687
        %2782 = vst.msk [vmem:[#allocation3 + $0xc] sm:$0xf] %vm2778, %v2689
        %2783 = vst.msk [vmem:[#allocation3 + $0x10] sm:$0xf] %vm2778, %v2691
        %2784 = vst.msk [vmem:[#allocation3 + $0x14] sm:$0xf] %vm2778, %v2693
        %2785 = vst.msk [vmem:[#allocation3 + $0x18] sm:$0xf] %vm2778, %v2695
        %2786 = vst.msk [vmem:[#allocation3 + $0x1c] sm:$0xf] %vm2778, %v2697
        %2787 = vst.msk [vmem:[#allocation3 + $0x20] sm:$0xf] %vm2778, %v2699
        %2788 = vst.msk [vmem:[#allocation3 + $0x24] sm:$0xf] %vm2778, %v2701
        %2789 = vst.msk [vmem:[#allocation3 + $0x28] sm:$0xf] %vm2778, %v2703
        %2790 = vst.msk [vmem:[#allocation3 + $0x2c] sm:$0xf] %vm2778, %v2705
        %2791 = vst.msk [vmem:[#allocation3 + $0x30] sm:$0xf] %vm2778, %v2707
        %2792 = vst.msk [vmem:[#allocation3 + $0x34] sm:$0xf] %vm2778, %v2709
        %2793 = vst.msk [vmem:[#allocation3 + $0x38] sm:$0xf] %vm2778, %v2711
        %2794 = vst.msk [vmem:[#allocation3 + $0x3c] sm:$0xf] %vm2778, %v2713
        %2795 = vst.msk [vmem:[#allocation3 + $0x40] sm:$0xf] %vm2778, %v2715
        %2796 = vst.msk [vmem:[#allocation3 + $0x44] sm:$0xf] %vm2778, %v2717
        %2797 = vst.msk [vmem:[#allocation3 + $0x48] sm:$0xf] %vm2778, %v2719
        %2798 = vst.msk [vmem:[#allocation3 + $0x4c] sm:$0xf] %vm2778, %v2721
        %2799 = vst.msk [vmem:[#allocation3 + $0x50] sm:$0xf] %vm2778, %v2723
        %2800 = vst.msk [vmem:[#allocation3 + $0x54] sm:$0xf] %vm2778, %v2725
        %2801 = vst.msk [vmem:[#allocation3 + $0x58] sm:$0xf] %vm2778, %v2727
        %2802 = vst.msk [vmem:[#allocation3 + $0x5c] sm:$0xf] %vm2778, %v2729
        %2803 = vst.msk [vmem:[#allocation3 + $0x60] sm:$0xf] %vm2778, %v2731
        %2804 = vst.msk [vmem:[#allocation3 + $0x64] sm:$0xf] %vm2778, %v2733
        %2805 = vst.msk [vmem:[#allocation3 + $0x68] sm:$0xf] %vm2778, %v2735
        %2806 = vst.msk [vmem:[#allocation3 + $0x6c] sm:$0xf] %vm2778, %v2737
        %2807 = vst.msk [vmem:[#allocation3 + $0x70] sm:$0xf] %vm2778, %v2739
        %2808 = vst.msk [vmem:[#allocation3 + $0x74] sm:$0xf] %vm2778, %v2741
        %2809 = vst.msk [vmem:[#allocation3 + $0x78] sm:$0xf] %vm2778, %v2743
        %2810 = vst.msk [vmem:[#allocation3 + $0x7c] sm:$0xf] %vm2778, %v2745
        %s2811 = scalar_lea.vmem [#allocation2], 24
        %v2812 = vld [vmem:[%s2811] sm:$0xf]
        %v2813 = vld [vmem:[%s2811 + $0x4] sm:$0xf]
        %v2814 = vld [vmem:[%s2811 + $0xc] sm:$0xf]
        %v2815 = vld [vmem:[%s2811 + $0x10] sm:$0xf]
        %v2816 = vld [vmem:[%s2811 + $0x18] sm:$0xf]
        %v2817 = vld [vmem:[%s2811 + $0x1c] sm:$0xf]
        %v2818 = vld [vmem:[%s2811 + $0x24] sm:$0xf]
        %v2819 = vld [vmem:[%s2811 + $0x28] sm:$0xf]
        %v2820 = vld [vmem:[%s2811 + $0x30] sm:$0xf]
        %v2821 = vld [vmem:[%s2811 + $0x34] sm:$0xf]
        %v2822 = vld [vmem:[%s2811 + $0x3c] sm:$0xf]
        %v2823 = vld [vmem:[%s2811 + $0x40] sm:$0xf]
        %v2824 = vld [vmem:[%s2811 + $0x48] sm:$0xf]
        %v2825 = vld [vmem:[%s2811 + $0x4c] sm:$0xf]
        %v2826 = vld [vmem:[%s2811 + $0x54] sm:$0xf]
        %v2827 = vld [vmem:[%s2811 + $0x58] sm:$0xf]
        %v2828 = vld [vmem:[%s2811 + $0x60] sm:$0xf]
        %v2829 = vld [vmem:[%s2811 + $0x64] sm:$0xf]
        %v2830 = vld [vmem:[%s2811 + $0x6c] sm:$0xf]
        %v2831 = vld [vmem:[%s2811 + $0x70] sm:$0xf]
        %v2832 = vld [vmem:[%s2811 + $0x78] sm:$0xf]
        %v2833 = vld [vmem:[%s2811 + $0x7c] sm:$0xf]
        %v2834 = vld [vmem:[%s2811 + $0x84] sm:$0xf]
        %v2835 = vld [vmem:[%s2811 + $0x88] sm:$0xf]
        %v2836 = vld [vmem:[%s2811 + $0x90] sm:$0xf]
        %v2837 = vld [vmem:[%s2811 + $0x94] sm:$0xf]
        %v2838 = vld [vmem:[%s2811 + $0x9c] sm:$0xf]
        %v2839 = vld [vmem:[%s2811 + $0xa0] sm:$0xf]
        %v2840 = vld [vmem:[%s2811 + $0xa8] sm:$0xf]
        %v2841 = vld [vmem:[%s2811 + $0xac] sm:$0xf]
        %v2842 = vld [vmem:[%s2811 + $0xb4] sm:$0xf]
        %v2843 = vld [vmem:[%s2811 + $0xb8] sm:$0xf]
        %2876 = vrot.lane.b32.xlu0 %v2812, 24
        %v2877 = vpop.permute.xlu0 %2876
        %2878 = vrot.lane.b32.xlu0 %v2813, 24
        %v2879 = vpop.permute.xlu0 %2878
        %2880 = vrot.lane.b32.xlu0 %v2814, 24
        %v2881 = vpop.permute.xlu0 %2880
        %2882 = vrot.lane.b32.xlu0 %v2815, 24
        %v2883 = vpop.permute.xlu0 %2882
        %2884 = vrot.lane.b32.xlu0 %v2816, 24
        %v2885 = vpop.permute.xlu0 %2884
        %2886 = vrot.lane.b32.xlu0 %v2817, 24
        %v2887 = vpop.permute.xlu0 %2886
        %2888 = vrot.lane.b32.xlu0 %v2818, 24
        %v2889 = vpop.permute.xlu0 %2888
        %2890 = vrot.lane.b32.xlu0 %v2819, 24
        %v2891 = vpop.permute.xlu0 %2890
        %2892 = vrot.lane.b32.xlu0 %v2820, 24
        %v2893 = vpop.permute.xlu0 %2892
        %2894 = vrot.lane.b32.xlu0 %v2821, 24
        %v2895 = vpop.permute.xlu0 %2894
        %2896 = vrot.lane.b32.xlu0 %v2822, 24
        %v2897 = vpop.permute.xlu0 %2896
        %2898 = vrot.lane.b32.xlu0 %v2823, 24
        %v2899 = vpop.permute.xlu0 %2898
        %2900 = vrot.lane.b32.xlu0 %v2824, 24
        %v2901 = vpop.permute.xlu0 %2900
        %2902 = vrot.lane.b32.xlu0 %v2825, 24
        %v2903 = vpop.permute.xlu0 %2902
        %2904 = vrot.lane.b32.xlu0 %v2826, 24
        %v2905 = vpop.permute.xlu0 %2904
        %2906 = vrot.lane.b32.xlu0 %v2827, 24
        %v2907 = vpop.permute.xlu0 %2906
        %2908 = vrot.lane.b32.xlu0 %v2828, 24
        %v2909 = vpop.permute.xlu0 %2908
        %2910 = vrot.lane.b32.xlu0 %v2829, 24
        %v2911 = vpop.permute.xlu0 %2910
        %2912 = vrot.lane.b32.xlu0 %v2830, 24
        %v2913 = vpop.permute.xlu0 %2912
        %2914 = vrot.lane.b32.xlu0 %v2831, 24
        %v2915 = vpop.permute.xlu0 %2914
        %2916 = vrot.lane.b32.xlu0 %v2832, 24
        %v2917 = vpop.permute.xlu0 %2916
        %2918 = vrot.lane.b32.xlu0 %v2833, 24
        %v2919 = vpop.permute.xlu0 %2918
        %2920 = vrot.lane.b32.xlu0 %v2834, 24
        %v2921 = vpop.permute.xlu0 %2920
        %2922 = vrot.lane.b32.xlu0 %v2835, 24
        %v2923 = vpop.permute.xlu0 %2922
        %2924 = vrot.lane.b32.xlu0 %v2836, 24
        %v2925 = vpop.permute.xlu0 %2924
        %2926 = vrot.lane.b32.xlu0 %v2837, 24
        %v2927 = vpop.permute.xlu0 %2926
        %2928 = vrot.lane.b32.xlu0 %v2838, 24
        %v2929 = vpop.permute.xlu0 %2928
        %2930 = vrot.lane.b32.xlu0 %v2839, 24
        %v2931 = vpop.permute.xlu0 %2930
        %2932 = vrot.lane.b32.xlu0 %v2840, 24
        %v2933 = vpop.permute.xlu0 %2932
        %2934 = vrot.lane.b32.xlu0 %v2841, 24
        %v2935 = vpop.permute.xlu0 %2934
        %2936 = vrot.lane.b32.xlu0 %v2842, 24
        %v2937 = vpop.permute.xlu0 %2936
        %2938 = vrot.lane.b32.xlu0 %v2843, 24
        %v2939 = vpop.permute.xlu0 %2938
        %vm2972 = vcmask 224448
        %2973 = vst.msk [vmem:[#allocation3] sm:$0xf] %vm2972, %v2877
        %2974 = vst.msk [vmem:[#allocation3 + $0x4] sm:$0xf] %vm2972, %v2879
        %2975 = vst.msk [vmem:[#allocation3 + $0x8] sm:$0xf] %vm2972, %v2881
        %2976 = vst.msk [vmem:[#allocation3 + $0xc] sm:$0xf] %vm2972, %v2883
        %2977 = vst.msk [vmem:[#allocation3 + $0x10] sm:$0xf] %vm2972, %v2885
        %2978 = vst.msk [vmem:[#allocation3 + $0x14] sm:$0xf] %vm2972, %v2887
        %2979 = vst.msk [vmem:[#allocation3 + $0x18] sm:$0xf] %vm2972, %v2889
        %2980 = vst.msk [vmem:[#allocation3 + $0x1c] sm:$0xf] %vm2972, %v2891
        %2981 = vst.msk [vmem:[#allocation3 + $0x20] sm:$0xf] %vm2972, %v2893
        %2982 = vst.msk [vmem:[#allocation3 + $0x24] sm:$0xf] %vm2972, %v2895
        %2983 = vst.msk [vmem:[#allocation3 + $0x28] sm:$0xf] %vm2972, %v2897
        %2984 = vst.msk [vmem:[#allocation3 + $0x2c] sm:$0xf] %vm2972, %v2899
        %2985 = vst.msk [vmem:[#allocation3 + $0x30] sm:$0xf] %vm2972, %v2901
        %2986 = vst.msk [vmem:[#allocation3 + $0x34] sm:$0xf] %vm2972, %v2903
        %2987 = vst.msk [vmem:[#allocation3 + $0x38] sm:$0xf] %vm2972, %v2905
        %2988 = vst.msk [vmem:[#allocation3 + $0x3c] sm:$0xf] %vm2972, %v2907
        %2989 = vst.msk [vmem:[#allocation3 + $0x40] sm:$0xf] %vm2972, %v2909
        %2990 = vst.msk [vmem:[#allocation3 + $0x44] sm:$0xf] %vm2972, %v2911
        %2991 = vst.msk [vmem:[#allocation3 + $0x48] sm:$0xf] %vm2972, %v2913
        %2992 = vst.msk [vmem:[#allocation3 + $0x4c] sm:$0xf] %vm2972, %v2915
        %2993 = vst.msk [vmem:[#allocation3 + $0x50] sm:$0xf] %vm2972, %v2917
        %2994 = vst.msk [vmem:[#allocation3 + $0x54] sm:$0xf] %vm2972, %v2919
        %2995 = vst.msk [vmem:[#allocation3 + $0x58] sm:$0xf] %vm2972, %v2921
        %2996 = vst.msk [vmem:[#allocation3 + $0x5c] sm:$0xf] %vm2972, %v2923
        %2997 = vst.msk [vmem:[#allocation3 + $0x60] sm:$0xf] %vm2972, %v2925
        %2998 = vst.msk [vmem:[#allocation3 + $0x64] sm:$0xf] %vm2972, %v2927
        %2999 = vst.msk [vmem:[#allocation3 + $0x68] sm:$0xf] %vm2972, %v2929
        %3000 = vst.msk [vmem:[#allocation3 + $0x6c] sm:$0xf] %vm2972, %v2931
        %3001 = vst.msk [vmem:[#allocation3 + $0x70] sm:$0xf] %vm2972, %v2933
        %3002 = vst.msk [vmem:[#allocation3 + $0x74] sm:$0xf] %vm2972, %v2935
        %3003 = vst.msk [vmem:[#allocation3 + $0x78] sm:$0xf] %vm2972, %v2937
        %3004 = vst.msk [vmem:[#allocation3 + $0x7c] sm:$0xf] %vm2972, %v2939
        %v3005 = vld [vmem:[%s2811] sm:$0xf]
        %v3006 = vld [vmem:[%s2811 + $0x4] sm:$0xf]
        %v3007 = vld [vmem:[%s2811 + $0x8] sm:$0x1]
        %v3008 = vld [vmem:[%s2811 + $0xc] sm:$0xf]
        %v3009 = vld [vmem:[%s2811 + $0x10] sm:$0xf]
        %v3010 = vld [vmem:[%s2811 + $0x14] sm:$0x1]
        %v3011 = vld [vmem:[%s2811 + $0x18] sm:$0xf]
        %v3012 = vld [vmem:[%s2811 + $0x1c] sm:$0xf]
        %v3013 = vld [vmem:[%s2811 + $0x20] sm:$0x1]
        %v3014 = vld [vmem:[%s2811 + $0x24] sm:$0xf]
        %v3015 = vld [vmem:[%s2811 + $0x28] sm:$0xf]
        %v3016 = vld [vmem:[%s2811 + $0x2c] sm:$0x1]
        %v3017 = vld [vmem:[%s2811 + $0x30] sm:$0xf]
        %v3018 = vld [vmem:[%s2811 + $0x34] sm:$0xf]
        %v3019 = vld [vmem:[%s2811 + $0x38] sm:$0x1]
        %v3020 = vld [vmem:[%s2811 + $0x3c] sm:$0xf]
        %v3021 = vld [vmem:[%s2811 + $0x40] sm:$0xf]
        %v3022 = vld [vmem:[%s2811 + $0x44] sm:$0x1]
        %v3023 = vld [vmem:[%s2811 + $0x48] sm:$0xf]
        %v3024 = vld [vmem:[%s2811 + $0x4c] sm:$0xf]
        %v3025 = vld [vmem:[%s2811 + $0x50] sm:$0x1]
        %v3026 = vld [vmem:[%s2811 + $0x54] sm:$0xf]
        %v3027 = vld [vmem:[%s2811 + $0x58] sm:$0xf]
        %v3028 = vld [vmem:[%s2811 + $0x5c] sm:$0x1]
        %v3029 = vld [vmem:[%s2811 + $0x60] sm:$0xf]
        %v3030 = vld [vmem:[%s2811 + $0x64] sm:$0xf]
        %v3031 = vld [vmem:[%s2811 + $0x68] sm:$0x1]
        %v3032 = vld [vmem:[%s2811 + $0x6c] sm:$0xf]
        %v3033 = vld [vmem:[%s2811 + $0x70] sm:$0xf]
        %v3034 = vld [vmem:[%s2811 + $0x74] sm:$0x1]
        %v3035 = vld [vmem:[%s2811 + $0x78] sm:$0xf]
        %v3036 = vld [vmem:[%s2811 + $0x7c] sm:$0xf]
        %v3037 = vld [vmem:[%s2811 + $0x80] sm:$0x1]
        %v3038 = vld [vmem:[%s2811 + $0x84] sm:$0xf]
        %v3039 = vld [vmem:[%s2811 + $0x88] sm:$0xf]
        %v3040 = vld [vmem:[%s2811 + $0x8c] sm:$0x1]
        %v3041 = vld [vmem:[%s2811 + $0x90] sm:$0xf]
        %v3042 = vld [vmem:[%s2811 + $0x94] sm:$0xf]
        %v3043 = vld [vmem:[%s2811 + $0x98] sm:$0x1]
        %v3044 = vld [vmem:[%s2811 + $0x9c] sm:$0xf]
        %v3045 = vld [vmem:[%s2811 + $0xa0] sm:$0xf]
        %v3046 = vld [vmem:[%s2811 + $0xa4] sm:$0x1]
        %v3047 = vld [vmem:[%s2811 + $0xa8] sm:$0xf]
        %v3048 = vld [vmem:[%s2811 + $0xac] sm:$0xf]
        %v3049 = vld [vmem:[%s2811 + $0xb0] sm:$0x1]
        %v3050 = vld [vmem:[%s2811 + $0xb4] sm:$0xf]
        %v3051 = vld [vmem:[%s2811 + $0xb8] sm:$0xf]
        %v3052 = vld [vmem:[%s2811 + $0xbc] sm:$0x1]
        %v3054 = vshrl.u32 %v3005, 16
        %v3056 = vrot.slane %v3054, 4
        %v3057 = vshll.u32 %v3005, 16
        %v3059 = vrot.slane %v3057, 5
        %v3060 = vor.u32 %v3056, %v3059
        %v3061 = vrot.slane %v3060, 4
        %v3063 = vshll.u32 %v3006, 16
        %v3065 = vrot.slane %v3063, 5
        %v3066 = vsel %vm866, %v3061, %v3065
        %v3067 = vshrl.u32 %v3006, 16
        %v3069 = vrot.slane %v3067, 4
        %v3070 = vor.u32 %v3069, %v3065
        %v3071 = vrot.slane %v3070, 4
        %v3073 = vshll.u32 %v3007, 16
        %v3075 = vrot.slane %v3073, 5
        %v3076 = vsel %vm866, %v3071, %v3075
        %v3078 = vshrl.u32 %v3008, 16
        %v3080 = vrot.slane %v3078, 4
        %v3081 = vshll.u32 %v3008, 16
        %v3083 = vrot.slane %v3081, 5
        %v3084 = vor.u32 %v3080, %v3083
        %v3085 = vrot.slane %v3084, 4
        %v3087 = vshll.u32 %v3009, 16
        %v3089 = vrot.slane %v3087, 5
        %v3090 = vsel %vm866, %v3085, %v3089
        %v3091 = vshrl.u32 %v3009, 16
        %v3093 = vrot.slane %v3091, 4
        %v3094 = vor.u32 %v3093, %v3089
        %v3095 = vrot.slane %v3094, 4
        %v3097 = vshll.u32 %v3010, 16
        %v3099 = vrot.slane %v3097, 5
        %v3100 = vsel %vm866, %v3095, %v3099
        %v3102 = vshrl.u32 %v3011, 16
        %v3104 = vrot.slane %v3102, 4
        %v3105 = vshll.u32 %v3011, 16
        %v3107 = vrot.slane %v3105, 5
        %v3108 = vor.u32 %v3104, %v3107
        %v3109 = vrot.slane %v3108, 4
        %v3111 = vshll.u32 %v3012, 16
        %v3113 = vrot.slane %v3111, 5
        %v3114 = vsel %vm866, %v3109, %v3113
        %v3115 = vshrl.u32 %v3012, 16
        %v3117 = vrot.slane %v3115, 4
        %v3118 = vor.u32 %v3117, %v3113
        %v3119 = vrot.slane %v3118, 4
        %v3121 = vshll.u32 %v3013, 16
        %v3123 = vrot.slane %v3121, 5
        %v3124 = vsel %vm866, %v3119, %v3123
        %v3126 = vshrl.u32 %v3014, 16
        %v3128 = vrot.slane %v3126, 4
        %v3129 = vshll.u32 %v3014, 16
        %v3131 = vrot.slane %v3129, 5
        %v3132 = vor.u32 %v3128, %v3131
        %v3133 = vrot.slane %v3132, 4
        %v3135 = vshll.u32 %v3015, 16
        %v3137 = vrot.slane %v3135, 5
        %v3138 = vsel %vm866, %v3133, %v3137
        %v3139 = vshrl.u32 %v3015, 16
        %v3141 = vrot.slane %v3139, 4
        %v3142 = vor.u32 %v3141, %v3137
        %v3143 = vrot.slane %v3142, 4
        %v3145 = vshll.u32 %v3016, 16
        %v3147 = vrot.slane %v3145, 5
        %v3148 = vsel %vm866, %v3143, %v3147
        %v3150 = vshrl.u32 %v3017, 16
        %v3152 = vrot.slane %v3150, 4
        %v3153 = vshll.u32 %v3017, 16
        %v3155 = vrot.slane %v3153, 5
        %v3156 = vor.u32 %v3152, %v3155
        %v3157 = vrot.slane %v3156, 4
        %v3159 = vshll.u32 %v3018, 16
        %v3161 = vrot.slane %v3159, 5
        %v3162 = vsel %vm866, %v3157, %v3161
        %v3163 = vshrl.u32 %v3018, 16
        %v3165 = vrot.slane %v3163, 4
        %v3166 = vor.u32 %v3165, %v3161
        %v3167 = vrot.slane %v3166, 4
        %v3169 = vshll.u32 %v3019, 16
        %v3171 = vrot.slane %v3169, 5
        %v3172 = vsel %vm866, %v3167, %v3171
        %v3174 = vshrl.u32 %v3020, 16
        %v3176 = vrot.slane %v3174, 4
        %v3177 = vshll.u32 %v3020, 16
        %v3179 = vrot.slane %v3177, 5
        %v3180 = vor.u32 %v3176, %v3179
        %v3181 = vrot.slane %v3180, 4
        %v3183 = vshll.u32 %v3021, 16
        %v3185 = vrot.slane %v3183, 5
        %v3186 = vsel %vm866, %v3181, %v3185
        %v3187 = vshrl.u32 %v3021, 16
        %v3189 = vrot.slane %v3187, 4
        %v3190 = vor.u32 %v3189, %v3185
        %v3191 = vrot.slane %v3190, 4
        %v3193 = vshll.u32 %v3022, 16
        %v3195 = vrot.slane %v3193, 5
        %v3196 = vsel %vm866, %v3191, %v3195
        %v3198 = vshrl.u32 %v3023, 16
        %v3200 = vrot.slane %v3198, 4
        %v3201 = vshll.u32 %v3023, 16
        %v3203 = vrot.slane %v3201, 5
        %v3204 = vor.u32 %v3200, %v3203
        %v3205 = vrot.slane %v3204, 4
        %v3207 = vshll.u32 %v3024, 16
        %v3209 = vrot.slane %v3207, 5
        %v3210 = vsel %vm866, %v3205, %v3209
        %v3211 = vshrl.u32 %v3024, 16
        %v3213 = vrot.slane %v3211, 4
        %v3214 = vor.u32 %v3213, %v3209
        %v3215 = vrot.slane %v3214, 4
        %v3217 = vshll.u32 %v3025, 16
        %v3219 = vrot.slane %v3217, 5
        %v3220 = vsel %vm866, %v3215, %v3219
        %v3222 = vshrl.u32 %v3026, 16
        %v3224 = vrot.slane %v3222, 4
        %v3225 = vshll.u32 %v3026, 16
        %v3227 = vrot.slane %v3225, 5
        %v3228 = vor.u32 %v3224, %v3227
        %v3229 = vrot.slane %v3228, 4
        %v3231 = vshll.u32 %v3027, 16
        %v3233 = vrot.slane %v3231, 5
        %v3234 = vsel %vm866, %v3229, %v3233
        %v3235 = vshrl.u32 %v3027, 16
        %v3237 = vrot.slane %v3235, 4
        %v3238 = vor.u32 %v3237, %v3233
        %v3239 = vrot.slane %v3238, 4
        %v3241 = vshll.u32 %v3028, 16
        %v3243 = vrot.slane %v3241, 5
        %v3244 = vsel %vm866, %v3239, %v3243
        %v3246 = vshrl.u32 %v3029, 16
        %v3248 = vrot.slane %v3246, 4
        %v3249 = vshll.u32 %v3029, 16
        %v3251 = vrot.slane %v3249, 5
        %v3252 = vor.u32 %v3248, %v3251
        %v3253 = vrot.slane %v3252, 4
        %v3255 = vshll.u32 %v3030, 16
        %v3257 = vrot.slane %v3255, 5
        %v3258 = vsel %vm866, %v3253, %v3257
        %v3259 = vshrl.u32 %v3030, 16
        %v3261 = vrot.slane %v3259, 4
        %v3262 = vor.u32 %v3261, %v3257
        %v3263 = vrot.slane %v3262, 4
        %v3265 = vshll.u32 %v3031, 16
        %v3267 = vrot.slane %v3265, 5
        %v3268 = vsel %vm866, %v3263, %v3267
        %v3270 = vshrl.u32 %v3032, 16
        %v3272 = vrot.slane %v3270, 4
        %v3273 = vshll.u32 %v3032, 16
        %v3275 = vrot.slane %v3273, 5
        %v3276 = vor.u32 %v3272, %v3275
        %v3277 = vrot.slane %v3276, 4
        %v3279 = vshll.u32 %v3033, 16
        %v3281 = vrot.slane %v3279, 5
        %v3282 = vsel %vm866, %v3277, %v3281
        %v3283 = vshrl.u32 %v3033, 16
        %v3285 = vrot.slane %v3283, 4
        %v3286 = vor.u32 %v3285, %v3281
        %v3287 = vrot.slane %v3286, 4
        %v3289 = vshll.u32 %v3034, 16
        %v3291 = vrot.slane %v3289, 5
        %v3292 = vsel %vm866, %v3287, %v3291
        %v3294 = vshrl.u32 %v3035, 16
        %v3296 = vrot.slane %v3294, 4
        %v3297 = vshll.u32 %v3035, 16
        %v3299 = vrot.slane %v3297, 5
        %v3300 = vor.u32 %v3296, %v3299
        %v3301 = vrot.slane %v3300, 4
        %v3303 = vshll.u32 %v3036, 16
        %v3305 = vrot.slane %v3303, 5
        %v3306 = vsel %vm866, %v3301, %v3305
        %v3307 = vshrl.u32 %v3036, 16
        %v3309 = vrot.slane %v3307, 4
        %v3310 = vor.u32 %v3309, %v3305
        %v3311 = vrot.slane %v3310, 4
        %v3313 = vshll.u32 %v3037, 16
        %v3315 = vrot.slane %v3313, 5
        %v3316 = vsel %vm866, %v3311, %v3315
        %v3318 = vshrl.u32 %v3038, 16
        %v3320 = vrot.slane %v3318, 4
        %v3321 = vshll.u32 %v3038, 16
        %v3323 = vrot.slane %v3321, 5
        %v3324 = vor.u32 %v3320, %v3323
        %v3325 = vrot.slane %v3324, 4
        %v3327 = vshll.u32 %v3039, 16
        %v3329 = vrot.slane %v3327, 5
        %v3330 = vsel %vm866, %v3325, %v3329
        %v3331 = vshrl.u32 %v3039, 16
        %v3333 = vrot.slane %v3331, 4
        %v3334 = vor.u32 %v3333, %v3329
        %v3335 = vrot.slane %v3334, 4
        %v3337 = vshll.u32 %v3040, 16
        %v3339 = vrot.slane %v3337, 5
        %v3340 = vsel %vm866, %v3335, %v3339
        %v3342 = vshrl.u32 %v3041, 16
        %v3344 = vrot.slane %v3342, 4
        %v3345 = vshll.u32 %v3041, 16
        %v3347 = vrot.slane %v3345, 5
        %v3348 = vor.u32 %v3344, %v3347
        %v3349 = vrot.slane %v3348, 4
        %v3351 = vshll.u32 %v3042, 16
        %v3353 = vrot.slane %v3351, 5
        %v3354 = vsel %vm866, %v3349, %v3353
        %v3355 = vshrl.u32 %v3042, 16
        %v3357 = vrot.slane %v3355, 4
        %v3358 = vor.u32 %v3357, %v3353
        %v3359 = vrot.slane %v3358, 4
        %v3361 = vshll.u32 %v3043, 16
        %v3363 = vrot.slane %v3361, 5
        %v3364 = vsel %vm866, %v3359, %v3363
        %v3366 = vshrl.u32 %v3044, 16
        %v3368 = vrot.slane %v3366, 4
        %v3369 = vshll.u32 %v3044, 16
        %v3371 = vrot.slane %v3369, 5
        %v3372 = vor.u32 %v3368, %v3371
        %v3373 = vrot.slane %v3372, 4
        %v3375 = vshll.u32 %v3045, 16
        %v3377 = vrot.slane %v3375, 5
        %v3378 = vsel %vm866, %v3373, %v3377
        %v3379 = vshrl.u32 %v3045, 16
        %v3381 = vrot.slane %v3379, 4
        %v3382 = vor.u32 %v3381, %v3377
        %v3383 = vrot.slane %v3382, 4
        %v3385 = vshll.u32 %v3046, 16
        %v3387 = vrot.slane %v3385, 5
        %v3388 = vsel %vm866, %v3383, %v3387
        %v3390 = vshrl.u32 %v3047, 16
        %v3392 = vrot.slane %v3390, 4
        %v3393 = vshll.u32 %v3047, 16
        %v3395 = vrot.slane %v3393, 5
        %v3396 = vor.u32 %v3392, %v3395
        %v3397 = vrot.slane %v3396, 4
        %v3399 = vshll.u32 %v3048, 16
        %v3401 = vrot.slane %v3399, 5
        %v3402 = vsel %vm866, %v3397, %v3401
        %v3403 = vshrl.u32 %v3048, 16
        %v3405 = vrot.slane %v3403, 4
        %v3406 = vor.u32 %v3405, %v3401
        %v3407 = vrot.slane %v3406, 4
        %v3409 = vshll.u32 %v3049, 16
        %v3411 = vrot.slane %v3409, 5
        %v3412 = vsel %vm866, %v3407, %v3411
        %v3414 = vshrl.u32 %v3050, 16
        %v3416 = vrot.slane %v3414, 4
        %v3417 = vshll.u32 %v3050, 16
        %v3419 = vrot.slane %v3417, 5
        %v3420 = vor.u32 %v3416, %v3419
        %v3421 = vrot.slane %v3420, 4
        %v3423 = vshll.u32 %v3051, 16
        %v3425 = vrot.slane %v3423, 5
        %v3426 = vsel %vm866, %v3421, %v3425
        %v3427 = vshrl.u32 %v3051, 16
        %v3429 = vrot.slane %v3427, 4
        %v3430 = vor.u32 %v3429, %v3425
        %v3431 = vrot.slane %v3430, 4
        %v3433 = vshll.u32 %v3052, 16
        %v3435 = vrot.slane %v3433, 5
        %v3436 = vsel %vm866, %v3431, %v3435
        %3437 = vrot.lane.b32.xlu0 %v3066, 28
        %v3438 = vpop.permute.xlu0 %3437
        %3439 = vrot.lane.b32.xlu0 %v3076, 28
        %v3440 = vpop.permute.xlu0 %3439
        %3441 = vrot.lane.b32.xlu0 %v3090, 28
        %v3442 = vpop.permute.xlu0 %3441
        %3443 = vrot.lane.b32.xlu0 %v3100, 28
        %v3444 = vpop.permute.xlu0 %3443
        %3445 = vrot.lane.b32.xlu0 %v3114, 28
        %v3446 = vpop.permute.xlu0 %3445
        %3447 = vrot.lane.b32.xlu0 %v3124, 28
        %v3448 = vpop.permute.xlu0 %3447
        %3449 = vrot.lane.b32.xlu0 %v3138, 28
        %v3450 = vpop.permute.xlu0 %3449
        %3451 = vrot.lane.b32.xlu0 %v3148, 28
        %v3452 = vpop.permute.xlu0 %3451
        %3453 = vrot.lane.b32.xlu0 %v3162, 28
        %v3454 = vpop.permute.xlu0 %3453
        %3455 = vrot.lane.b32.xlu0 %v3172, 28
        %v3456 = vpop.permute.xlu0 %3455
        %3457 = vrot.lane.b32.xlu0 %v3186, 28
        %v3458 = vpop.permute.xlu0 %3457
        %3459 = vrot.lane.b32.xlu0 %v3196, 28
        %v3460 = vpop.permute.xlu0 %3459
        %3461 = vrot.lane.b32.xlu0 %v3210, 28
        %v3462 = vpop.permute.xlu0 %3461
        %3463 = vrot.lane.b32.xlu0 %v3220, 28
        %v3464 = vpop.permute.xlu0 %3463
        %3465 = vrot.lane.b32.xlu0 %v3234, 28
        %v3466 = vpop.permute.xlu0 %3465
        %3467 = vrot.lane.b32.xlu0 %v3244, 28
        %v3468 = vpop.permute.xlu0 %3467
        %3469 = vrot.lane.b32.xlu0 %v3258, 28
        %v3470 = vpop.permute.xlu0 %3469
        %3471 = vrot.lane.b32.xlu0 %v3268, 28
        %v3472 = vpop.permute.xlu0 %3471
        %3473 = vrot.lane.b32.xlu0 %v3282, 28
        %v3474 = vpop.permute.xlu0 %3473
        %3475 = vrot.lane.b32.xlu0 %v3292, 28
        %v3476 = vpop.permute.xlu0 %3475
        %3477 = vrot.lane.b32.xlu0 %v3306, 28
        %v3478 = vpop.permute.xlu0 %3477
        %3479 = vrot.lane.b32.xlu0 %v3316, 28
        %v3480 = vpop.permute.xlu0 %3479
        %3481 = vrot.lane.b32.xlu0 %v3330, 28
        %v3482 = vpop.permute.xlu0 %3481
        %3483 = vrot.lane.b32.xlu0 %v3340, 28
        %v3484 = vpop.permute.xlu0 %3483
        %3485 = vrot.lane.b32.xlu0 %v3354, 28
        %v3486 = vpop.permute.xlu0 %3485
        %3487 = vrot.lane.b32.xlu0 %v3364, 28
        %v3488 = vpop.permute.xlu0 %3487
        %3489 = vrot.lane.b32.xlu0 %v3378, 28
        %v3490 = vpop.permute.xlu0 %3489
        %3491 = vrot.lane.b32.xlu0 %v3388, 28
        %v3492 = vpop.permute.xlu0 %3491
        %3493 = vrot.lane.b32.xlu0 %v3402, 28
        %v3494 = vpop.permute.xlu0 %3493
        %3495 = vrot.lane.b32.xlu0 %v3412, 28
        %v3496 = vpop.permute.xlu0 %3495
        %3497 = vrot.lane.b32.xlu0 %v3426, 28
        %v3498 = vpop.permute.xlu0 %3497
        %3499 = vrot.lane.b32.xlu0 %v3436, 28
        %v3500 = vpop.permute.xlu0 %3499
        %vm3533 = vcmask 257248
        %3534 = vst.msk [vmem:[#allocation3] sm:$0xf] %vm3533, %v3438
        %3535 = vst.msk [vmem:[#allocation3 + $0x4] sm:$0xf] %vm3533, %v3440
        %3536 = vst.msk [vmem:[#allocation3 + $0x8] sm:$0xf] %vm3533, %v3442
        %3537 = vst.msk [vmem:[#allocation3 + $0xc] sm:$0xf] %vm3533, %v3444
        %3538 = vst.msk [vmem:[#allocation3 + $0x10] sm:$0xf] %vm3533, %v3446
        %3539 = vst.msk [vmem:[#allocation3 + $0x14] sm:$0xf] %vm3533, %v3448
        %3540 = vst.msk [vmem:[#allocation3 + $0x18] sm:$0xf] %vm3533, %v3450
        %3541 = vst.msk [vmem:[#allocation3 + $0x1c] sm:$0xf] %vm3533, %v3452
        %3542 = vst.msk [vmem:[#allocation3 + $0x20] sm:$0xf] %vm3533, %v3454
        %3543 = vst.msk [vmem:[#allocation3 + $0x24] sm:$0xf] %vm3533, %v3456
        %3544 = vst.msk [vmem:[#allocation3 + $0x28] sm:$0xf] %vm3533, %v3458
        %3545 = vst.msk [vmem:[#allocation3 + $0x2c] sm:$0xf] %vm3533, %v3460
        %3546 = vst.msk [vmem:[#allocation3 + $0x30] sm:$0xf] %vm3533, %v3462
        %3547 = vst.msk [vmem:[#allocation3 + $0x34] sm:$0xf] %vm3533, %v3464
        %3548 = vst.msk [vmem:[#allocation3 + $0x38] sm:$0xf] %vm3533, %v3466
        %3549 = vst.msk [vmem:[#allocation3 + $0x3c] sm:$0xf] %vm3533, %v3468
        %3550 = vst.msk [vmem:[#allocation3 + $0x40] sm:$0xf] %vm3533, %v3470
        %3551 = vst.msk [vmem:[#allocation3 + $0x44] sm:$0xf] %vm3533, %v3472
        %3552 = vst.msk [vmem:[#allocation3 + $0x48] sm:$0xf] %vm3533, %v3474
        %3553 = vst.msk [vmem:[#allocation3 + $0x4c] sm:$0xf] %vm3533, %v3476
        %3554 = vst.msk [vmem:[#allocation3 + $0x50] sm:$0xf] %vm3533, %v3478
        %3555 = vst.msk [vmem:[#allocation3 + $0x54] sm:$0xf] %vm3533, %v3480
        %3556 = vst.msk [vmem:[#allocation3 + $0x58] sm:$0xf] %vm3533, %v3482
        %3557 = vst.msk [vmem:[#allocation3 + $0x5c] sm:$0xf] %vm3533, %v3484
        %3558 = vst.msk [vmem:[#allocation3 + $0x60] sm:$0xf] %vm3533, %v3486
        %3559 = vst.msk [vmem:[#allocation3 + $0x64] sm:$0xf] %vm3533, %v3488
        %3560 = vst.msk [vmem:[#allocation3 + $0x68] sm:$0xf] %vm3533, %v3490
        %3561 = vst.msk [vmem:[#allocation3 + $0x6c] sm:$0xf] %vm3533, %v3492
        %3562 = vst.msk [vmem:[#allocation3 + $0x70] sm:$0xf] %vm3533, %v3494
        %3563 = vst.msk [vmem:[#allocation3 + $0x74] sm:$0xf] %vm3533, %v3496
        %3564 = vst.msk [vmem:[#allocation3 + $0x78] sm:$0xf] %vm3533, %v3498
        %3565 = vst.msk [vmem:[#allocation3 + $0x7c] sm:$0xf] %vm3533, %v3500
        %v3566 = vld [vmem:[%s2811] sm:$0xe]
        %v3567 = vld [vmem:[%s2811 + $0x4] sm:$0xf]
        %v3568 = vld [vmem:[%s2811 + $0x8] sm:$0x1]
        %v3569 = vld [vmem:[%s2811 + $0xc] sm:$0xe]
        %v3570 = vld [vmem:[%s2811 + $0x10] sm:$0xf]
        %v3571 = vld [vmem:[%s2811 + $0x14] sm:$0x1]
        %v3572 = vld [vmem:[%s2811 + $0x18] sm:$0xe]
        %v3573 = vld [vmem:[%s2811 + $0x1c] sm:$0xf]
        %v3574 = vld [vmem:[%s2811 + $0x20] sm:$0x1]
        %v3575 = vld [vmem:[%s2811 + $0x24] sm:$0xe]
        %v3576 = vld [vmem:[%s2811 + $0x28] sm:$0xf]
        %v3577 = vld [vmem:[%s2811 + $0x2c] sm:$0x1]
        %v3578 = vld [vmem:[%s2811 + $0x30] sm:$0xe]
        %v3579 = vld [vmem:[%s2811 + $0x34] sm:$0xf]
        %v3580 = vld [vmem:[%s2811 + $0x38] sm:$0x1]
        %v3581 = vld [vmem:[%s2811 + $0x3c] sm:$0xe]
        %v3582 = vld [vmem:[%s2811 + $0x40] sm:$0xf]
        %v3583 = vld [vmem:[%s2811 + $0x44] sm:$0x1]
        %v3584 = vld [vmem:[%s2811 + $0x48] sm:$0xe]
        %v3585 = vld [vmem:[%s2811 + $0x4c] sm:$0xf]
        %v3586 = vld [vmem:[%s2811 + $0x50] sm:$0x1]
        %v3587 = vld [vmem:[%s2811 + $0x54] sm:$0xe]
        %v3588 = vld [vmem:[%s2811 + $0x58] sm:$0xf]
        %v3589 = vld [vmem:[%s2811 + $0x5c] sm:$0x1]
        %v3590 = vld [vmem:[%s2811 + $0x60] sm:$0xe]
        %v3591 = vld [vmem:[%s2811 + $0x64] sm:$0xf]
        %v3592 = vld [vmem:[%s2811 + $0x68] sm:$0x1]
        %v3593 = vld [vmem:[%s2811 + $0x6c] sm:$0xe]
        %v3594 = vld [vmem:[%s2811 + $0x70] sm:$0xf]
        %v3595 = vld [vmem:[%s2811 + $0x74] sm:$0x1]
        %v3596 = vld [vmem:[%s2811 + $0x78] sm:$0xe]
        %v3597 = vld [vmem:[%s2811 + $0x7c] sm:$0xf]
        %v3598 = vld [vmem:[%s2811 + $0x80] sm:$0x1]
        %v3599 = vld [vmem:[%s2811 + $0x84] sm:$0xe]
        %v3600 = vld [vmem:[%s2811 + $0x88] sm:$0xf]
        %v3601 = vld [vmem:[%s2811 + $0x8c] sm:$0x1]
        %v3602 = vld [vmem:[%s2811 + $0x90] sm:$0xe]
        %v3603 = vld [vmem:[%s2811 + $0x94] sm:$0xf]
        %v3604 = vld [vmem:[%s2811 + $0x98] sm:$0x1]
        %v3605 = vld [vmem:[%s2811 + $0x9c] sm:$0xe]
        %v3606 = vld [vmem:[%s2811 + $0xa0] sm:$0xf]
        %v3607 = vld [vmem:[%s2811 + $0xa4] sm:$0x1]
        %v3608 = vld [vmem:[%s2811 + $0xa8] sm:$0xe]
        %v3609 = vld [vmem:[%s2811 + $0xac] sm:$0xf]
        %v3610 = vld [vmem:[%s2811 + $0xb0] sm:$0x1]
        %v3611 = vld [vmem:[%s2811 + $0xb4] sm:$0xe]
        %v3612 = vld [vmem:[%s2811 + $0xb8] sm:$0xf]
        %v3613 = vld [vmem:[%s2811 + $0xbc] sm:$0x1]
        %v3662 = vrot.slane %v3566, 5
        %v3663 = vrot.slane %v3662, 4
        %v3664 = vrot.slane %v3567, 5
        %v3665 = vsel %vm1478, %v3663, %v3664
        %v3666 = vrot.slane %v3664, 4
        %v3667 = vrot.slane %v3568, 5
        %v3668 = vsel %vm1478, %v3666, %v3667
        %v3669 = vrot.slane %v3569, 5
        %v3670 = vrot.slane %v3669, 4
        %v3671 = vrot.slane %v3570, 5
        %v3672 = vsel %vm1478, %v3670, %v3671
        %v3673 = vrot.slane %v3671, 4
        %v3674 = vrot.slane %v3571, 5
        %v3675 = vsel %vm1478, %v3673, %v3674
        %v3676 = vrot.slane %v3572, 5
        %v3677 = vrot.slane %v3676, 4
        %v3678 = vrot.slane %v3573, 5
        %v3679 = vsel %vm1478, %v3677, %v3678
        %v3680 = vrot.slane %v3678, 4
        %v3681 = vrot.slane %v3574, 5
        %v3682 = vsel %vm1478, %v3680, %v3681
        %v3683 = vrot.slane %v3575, 5
        %v3684 = vrot.slane %v3683, 4
        %v3685 = vrot.slane %v3576, 5
        %v3686 = vsel %vm1478, %v3684, %v3685
        %v3687 = vrot.slane %v3685, 4
        %v3688 = vrot.slane %v3577, 5
        %v3689 = vsel %vm1478, %v3687, %v3688
        %v3690 = vrot.slane %v3578, 5
        %v3691 = vrot.slane %v3690, 4
        %v3692 = vrot.slane %v3579, 5
        %v3693 = vsel %vm1478, %v3691, %v3692
        %v3694 = vrot.slane %v3692, 4
        %v3695 = vrot.slane %v3580, 5
        %v3696 = vsel %vm1478, %v3694, %v3695
        %v3697 = vrot.slane %v3581, 5
        %v3698 = vrot.slane %v3697, 4
        %v3699 = vrot.slane %v3582, 5
        %v3700 = vsel %vm1478, %v3698, %v3699
        %v3701 = vrot.slane %v3699, 4
        %v3702 = vrot.slane %v3583, 5
        %v3703 = vsel %vm1478, %v3701, %v3702
        %v3704 = vrot.slane %v3584, 5
        %v3705 = vrot.slane %v3704, 4
        %v3706 = vrot.slane %v3585, 5
        %v3707 = vsel %vm1478, %v3705, %v3706
        %v3708 = vrot.slane %v3706, 4
        %v3709 = vrot.slane %v3586, 5
        %v3710 = vsel %vm1478, %v3708, %v3709
        %v3711 = vrot.slane %v3587, 5
        %v3712 = vrot.slane %v3711, 4
        %v3713 = vrot.slane %v3588, 5
        %v3714 = vsel %vm1478, %v3712, %v3713
        %v3715 = vrot.slane %v3713, 4
        %v3716 = vrot.slane %v3589, 5
        %v3717 = vsel %vm1478, %v3715, %v3716
        %v3718 = vrot.slane %v3590, 5
        %v3719 = vrot.slane %v3718, 4
        %v3720 = vrot.slane %v3591, 5
        %v3721 = vsel %vm1478, %v3719, %v3720
        %v3722 = vrot.slane %v3720, 4
        %v3723 = vrot.slane %v3592, 5
        %v3724 = vsel %vm1478, %v3722, %v3723
        %v3725 = vrot.slane %v3593, 5
        %v3726 = vrot.slane %v3725, 4
        %v3727 = vrot.slane %v3594, 5
        %v3728 = vsel %vm1478, %v3726, %v3727
        %v3729 = vrot.slane %v3727, 4
        %v3730 = vrot.slane %v3595, 5
        %v3731 = vsel %vm1478, %v3729, %v3730
        %v3732 = vrot.slane %v3596, 5
        %v3733 = vrot.slane %v3732, 4
        %v3734 = vrot.slane %v3597, 5
        %v3735 = vsel %vm1478, %v3733, %v3734
        %v3736 = vrot.slane %v3734, 4
        %v3737 = vrot.slane %v3598, 5
        %v3738 = vsel %vm1478, %v3736, %v3737
        %v3739 = vrot.slane %v3599, 5
        %v3740 = vrot.slane %v3739, 4
        %v3741 = vrot.slane %v3600, 5
        %v3742 = vsel %vm1478, %v3740, %v3741
        %v3743 = vrot.slane %v3741, 4
        %v3744 = vrot.slane %v3601, 5
        %v3745 = vsel %vm1478, %v3743, %v3744
        %v3746 = vrot.slane %v3602, 5
        %v3747 = vrot.slane %v3746, 4
        %v3748 = vrot.slane %v3603, 5
        %v3749 = vsel %vm1478, %v3747, %v3748
        %v3750 = vrot.slane %v3748, 4
        %v3751 = vrot.slane %v3604, 5
        %v3752 = vsel %vm1478, %v3750, %v3751
        %v3753 = vrot.slane %v3605, 5
        %v3754 = vrot.slane %v3753, 4
        %v3755 = vrot.slane %v3606, 5
        %v3756 = vsel %vm1478, %v3754, %v3755
        %v3757 = vrot.slane %v3755, 4
        %v3758 = vrot.slane %v3607, 5
        %v3759 = vsel %vm1478, %v3757, %v3758
        %v3760 = vrot.slane %v3608, 5
        %v3761 = vrot.slane %v3760, 4
        %v3762 = vrot.slane %v3609, 5
        %v3763 = vsel %vm1478, %v3761, %v3762
        %v3764 = vrot.slane %v3762, 4
        %v3765 = vrot.slane %v3610, 5
        %v3766 = vsel %vm1478, %v3764, %v3765
        %v3767 = vrot.slane %v3611, 5
        %v3768 = vrot.slane %v3767, 4
        %v3769 = vrot.slane %v3612, 5
        %v3770 = vsel %vm1478, %v3768, %v3769
        %v3771 = vrot.slane %v3769, 4
        %v3772 = vrot.slane %v3613, 5
        %v3773 = vsel %vm1478, %v3771, %v3772
        %3774 = vrot.lane.b32.xlu0 %v3665, 32
        %v3775 = vpop.permute.xlu0 %3774
        %3776 = vrot.lane.b32.xlu0 %v3668, 32
        %v3777 = vpop.permute.xlu0 %3776
        %3778 = vrot.lane.b32.xlu0 %v3672, 32
        %v3779 = vpop.permute.xlu0 %3778
        %3780 = vrot.lane.b32.xlu0 %v3675, 32
        %v3781 = vpop.permute.xlu0 %3780
        %3782 = vrot.lane.b32.xlu0 %v3679, 32
        %v3783 = vpop.permute.xlu0 %3782
        %3784 = vrot.lane.b32.xlu0 %v3682, 32
        %v3785 = vpop.permute.xlu0 %3784
        %3786 = vrot.lane.b32.xlu0 %v3686, 32
        %v3787 = vpop.permute.xlu0 %3786
        %3788 = vrot.lane.b32.xlu0 %v3689, 32
        %v3789 = vpop.permute.xlu0 %3788
        %3790 = vrot.lane.b32.xlu0 %v3693, 32
        %v3791 = vpop.permute.xlu0 %3790
        %3792 = vrot.lane.b32.xlu0 %v3696, 32
        %v3793 = vpop.permute.xlu0 %3792
        %3794 = vrot.lane.b32.xlu0 %v3700, 32
        %v3795 = vpop.permute.xlu0 %3794
        %3796 = vrot.lane.b32.xlu0 %v3703, 32
        %v3797 = vpop.permute.xlu0 %3796
        %3798 = vrot.lane.b32.xlu0 %v3707, 32
        %v3799 = vpop.permute.xlu0 %3798
        %3800 = vrot.lane.b32.xlu0 %v3710, 32
        %v3801 = vpop.permute.xlu0 %3800
        %3802 = vrot.lane.b32.xlu0 %v3714, 32
        %v3803 = vpop.permute.xlu0 %3802
        %3804 = vrot.lane.b32.xlu0 %v3717, 32
        %v3805 = vpop.permute.xlu0 %3804
        %3806 = vrot.lane.b32.xlu0 %v3721, 32
        %v3807 = vpop.permute.xlu0 %3806
        %3808 = vrot.lane.b32.xlu0 %v3724, 32
        %v3809 = vpop.permute.xlu0 %3808
        %3810 = vrot.lane.b32.xlu0 %v3728, 32
        %v3811 = vpop.permute.xlu0 %3810
        %3812 = vrot.lane.b32.xlu0 %v3731, 32
        %v3813 = vpop.permute.xlu0 %3812
        %3814 = vrot.lane.b32.xlu0 %v3735, 32
        %v3815 = vpop.permute.xlu0 %3814
        %3816 = vrot.lane.b32.xlu0 %v3738, 32
        %v3817 = vpop.permute.xlu0 %3816
        %3818 = vrot.lane.b32.xlu0 %v3742, 32
        %v3819 = vpop.permute.xlu0 %3818
        %3820 = vrot.lane.b32.xlu0 %v3745, 32
        %v3821 = vpop.permute.xlu0 %3820
        %3822 = vrot.lane.b32.xlu0 %v3749, 32
        %v3823 = vpop.permute.xlu0 %3822
        %3824 = vrot.lane.b32.xlu0 %v3752, 32
        %v3825 = vpop.permute.xlu0 %3824
        %3826 = vrot.lane.b32.xlu0 %v3756, 32
        %v3827 = vpop.permute.xlu0 %3826
        %3828 = vrot.lane.b32.xlu0 %v3759, 32
        %v3829 = vpop.permute.xlu0 %3828
        %3830 = vrot.lane.b32.xlu0 %v3763, 32
        %v3831 = vpop.permute.xlu0 %3830
        %3832 = vrot.lane.b32.xlu0 %v3766, 32
        %v3833 = vpop.permute.xlu0 %3832
        %3834 = vrot.lane.b32.xlu0 %v3770, 32
        %v3835 = vpop.permute.xlu0 %3834
        %3836 = vrot.lane.b32.xlu0 %v3773, 32
        %v3837 = vpop.permute.xlu0 %3836
        %vm3870 = vcmask 290048
        %3871 = vst.msk [vmem:[#allocation3] sm:$0xf] %vm3870, %v3775
        %3872 = vst.msk [vmem:[#allocation3 + $0x4] sm:$0xf] %vm3870, %v3777
        %3873 = vst.msk [vmem:[#allocation3 + $0x8] sm:$0xf] %vm3870, %v3779
        %3874 = vst.msk [vmem:[#allocation3 + $0xc] sm:$0xf] %vm3870, %v3781
        %3875 = vst.msk [vmem:[#allocation3 + $0x10] sm:$0xf] %vm3870, %v3783
        %3876 = vst.msk [vmem:[#allocation3 + $0x14] sm:$0xf] %vm3870, %v3785
        %3877 = vst.msk [vmem:[#allocation3 + $0x18] sm:$0xf] %vm3870, %v3787
        %3878 = vst.msk [vmem:[#allocation3 + $0x1c] sm:$0xf] %vm3870, %v3789
        %3879 = vst.msk [vmem:[#allocation3 + $0x20] sm:$0xf] %vm3870, %v3791
        %3880 = vst.msk [vmem:[#allocation3 + $0x24] sm:$0xf] %vm3870, %v3793
        %3881 = vst.msk [vmem:[#allocation3 + $0x28] sm:$0xf] %vm3870, %v3795
        %3882 = vst.msk [vmem:[#allocation3 + $0x2c] sm:$0xf] %vm3870, %v3797
        %3883 = vst.msk [vmem:[#allocation3 + $0x30] sm:$0xf] %vm3870, %v3799
        %3884 = vst.msk [vmem:[#allocation3 + $0x34] sm:$0xf] %vm3870, %v3801
        %3885 = vst.msk [vmem:[#allocation3 + $0x38] sm:$0xf] %vm3870, %v3803
        %3886 = vst.msk [vmem:[#allocation3 + $0x3c] sm:$0xf] %vm3870, %v3805
        %3887 = vst.msk [vmem:[#allocation3 + $0x40] sm:$0xf] %vm3870, %v3807
        %3888 = vst.msk [vmem:[#allocation3 + $0x44] sm:$0xf] %vm3870, %v3809
        %3889 = vst.msk [vmem:[#allocation3 + $0x48] sm:$0xf] %vm3870, %v3811
        %3890 = vst.msk [vmem:[#allocation3 + $0x4c] sm:$0xf] %vm3870, %v3813
        %3891 = vst.msk [vmem:[#allocation3 + $0x50] sm:$0xf] %vm3870, %v3815
        %3892 = vst.msk [vmem:[#allocation3 + $0x54] sm:$0xf] %vm3870, %v3817
        %3893 = vst.msk [vmem:[#allocation3 + $0x58] sm:$0xf] %vm3870, %v3819
        %3894 = vst.msk [vmem:[#allocation3 + $0x5c] sm:$0xf] %vm3870, %v3821
        %3895 = vst.msk [vmem:[#allocation3 + $0x60] sm:$0xf] %vm3870, %v3823
        %3896 = vst.msk [vmem:[#allocation3 + $0x64] sm:$0xf] %vm3870, %v3825
        %3897 = vst.msk [vmem:[#allocation3 + $0x68] sm:$0xf] %vm3870, %v3827
        %3898 = vst.msk [vmem:[#allocation3 + $0x6c] sm:$0xf] %vm3870, %v3829
        %3899 = vst.msk [vmem:[#allocation3 + $0x70] sm:$0xf] %vm3870, %v3831
        %3900 = vst.msk [vmem:[#allocation3 + $0x74] sm:$0xf] %vm3870, %v3833
        %3901 = vst.msk [vmem:[#allocation3 + $0x78] sm:$0xf] %vm3870, %v3835
        %3902 = vst.msk [vmem:[#allocation3 + $0x7c] sm:$0xf] %vm3870, %v3837
        %v3903 = vld [vmem:[#allocation3] sm:$0xf]
        %v3904 = vld [vmem:[#allocation3 + $0x4] sm:$0xf]
        %v3905 = vld [vmem:[#allocation3 + $0x8] sm:$0xf]
        %v3906 = vld [vmem:[#allocation3 + $0xc] sm:$0xf]
        %v3907 = vld [vmem:[#allocation3 + $0x10] sm:$0xf]
        %v3908 = vld [vmem:[#allocation3 + $0x14] sm:$0xf]
        %v3909 = vld [vmem:[#allocation3 + $0x18] sm:$0xf]
        %v3910 = vld [vmem:[#allocation3 + $0x1c] sm:$0xf]
        %v3911 = vld [vmem:[#allocation3 + $0x20] sm:$0xf]
        %v3912 = vld [vmem:[#allocation3 + $0x24] sm:$0xf]
        %v3913 = vld [vmem:[#allocation3 + $0x28] sm:$0xf]
        %v3914 = vld [vmem:[#allocation3 + $0x2c] sm:$0xf]
        %v3915 = vld [vmem:[#allocation3 + $0x30] sm:$0xf]
        %v3916 = vld [vmem:[#allocation3 + $0x34] sm:$0xf]
        %v3917 = vld [vmem:[#allocation3 + $0x38] sm:$0xf]
        %v3918 = vld [vmem:[#allocation3 + $0x3c] sm:$0xf]
        %v3919 = vld [vmem:[#allocation3 + $0x40] sm:$0xf]
        %v3920 = vld [vmem:[#allocation3 + $0x44] sm:$0xf]
        %v3921 = vld [vmem:[#allocation3 + $0x48] sm:$0xf]
        %v3922 = vld [vmem:[#allocation3 + $0x4c] sm:$0xf]
        %v3923 = vld [vmem:[#allocation3 + $0x50] sm:$0xf]
        %v3924 = vld [vmem:[#allocation3 + $0x54] sm:$0xf]
        %v3925 = vld [vmem:[#allocation3 + $0x58] sm:$0xf]
        %v3926 = vld [vmem:[#allocation3 + $0x5c] sm:$0xf]
        %v3927 = vld [vmem:[#allocation3 + $0x60] sm:$0xf]
        %v3928 = vld [vmem:[#allocation3 + $0x64] sm:$0xf]
        %v3929 = vld [vmem:[#allocation3 + $0x68] sm:$0xf]
        %v3930 = vld [vmem:[#allocation3 + $0x6c] sm:$0xf]
        %v3931 = vld [vmem:[#allocation3 + $0x70] sm:$0xf]
        %v3932 = vld [vmem:[#allocation3 + $0x74] sm:$0xf]
        %v3933 = vld [vmem:[#allocation3 + $0x78] sm:$0xf]
        %v3934 = vld [vmem:[#allocation3 + $0x7c] sm:$0xf]
        %v3935 = vld [vmem:[%s1] sm:$0xf]
        %v3936 = vld [vmem:[%s1 + $0x4] sm:$0xf]
        %v3937 = vld [vmem:[%s1 + $0x8] sm:$0xf]
        %v3938 = vld [vmem:[%s1 + $0xc] sm:$0xf]
        %v3939 = vld [vmem:[%s1 + $0x10] sm:$0x3]
        %v3940 = vld [vmem:[%s2] sm:$0x1]
        %v3942 = vperm.slane %v3940, 0
        %v3976 = vunpack.c.l.b16 %v3903
        %v3977 = vunpack.c.l.b16 %v3904
        %v3978 = vunpack.c.l.b16 %v3905
        %v3979 = vunpack.c.l.b16 %v3906
        %v3980 = vunpack.c.l.b16 %v3907
        %v3981 = vunpack.c.l.b16 %v3908
        %v3982 = vunpack.c.l.b16 %v3909
        %v3983 = vunpack.c.l.b16 %v3910
        %v3984 = vunpack.c.l.b16 %v3911
        %v3985 = vunpack.c.l.b16 %v3912
        %v3986 = vunpack.c.l.b16 %v3913
        %v3987 = vunpack.c.l.b16 %v3914
        %v3988 = vunpack.c.l.b16 %v3915
        %v3989 = vunpack.c.l.b16 %v3916
        %v3990 = vunpack.c.l.b16 %v3917
        %v3991 = vunpack.c.l.b16 %v3918
        %v3992 = vunpack.c.l.b16 %v3919
        %v3993 = vunpack.c.l.b16 %v3920
        %v3994 = vunpack.c.l.b16 %v3921
        %v3995 = vunpack.c.l.b16 %v3922
        %v3996 = vunpack.c.l.b16 %v3923
        %v3997 = vunpack.c.l.b16 %v3924
        %v3998 = vunpack.c.l.b16 %v3925
        %v3999 = vunpack.c.l.b16 %v3926
        %v4000 = vunpack.c.l.b16 %v3927
        %v4001 = vunpack.c.l.b16 %v3928
        %v4002 = vunpack.c.l.b16 %v3929
        %v4003 = vunpack.c.l.b16 %v3930
        %v4004 = vunpack.c.l.b16 %v3931
        %v4005 = vunpack.c.l.b16 %v3932
        %v4006 = vunpack.c.l.b16 %v3933
        %v4007 = vunpack.c.l.b16 %v3934
        %v4008 = vpack.c.b16 %v3977, %v3976
        %v4009 = vpack.c.b16 %v3979, %v3978
        %v4010 = vpack.c.b16 %v3981, %v3980
        %v4011 = vpack.c.b16 %v3983, %v3982
        %v4012 = vpack.c.b16 %v3985, %v3984
        %v4013 = vpack.c.b16 %v3987, %v3986
        %v4014 = vpack.c.b16 %v3989, %v3988
        %v4015 = vpack.c.b16 %v3991, %v3990
        %v4016 = vpack.c.b16 %v3993, %v3992
        %v4017 = vpack.c.b16 %v3995, %v3994
        %v4018 = vpack.c.b16 %v3997, %v3996
        %v4019 = vpack.c.b16 %v3999, %v3998
        %v4020 = vpack.c.b16 %v4001, %v4000
        %v4021 = vpack.c.b16 %v4003, %v4002
        %v4022 = vpack.c.b16 %v4005, %v4004
        %v4023 = vpack.c.b16 %v4007, %v4006
        %v4029 = vunpack.c.l.b16 %v3935
        %v4030 = vunpack.c.l.b16 %v3936
        %v4031 = vunpack.c.l.b16 %v3937
        %v4032 = vunpack.c.l.b16 %v3938
        %v4033 = vunpack.c.l.b16 %v3939
        %v4034 = vpack.c.b16 %v4030, %v4029
        %v4035 = vpack.c.b16 %v4032, %v4031
        %v4036 = vpack.c.b16 %v4033, %v4033
        %vm4039 = vcmask 293888
        %v4041 = vsel %vm4039, %v4008, 0
        %v4044 = vsel %vm4039, %v4009, 0
        %v4047 = vsel %vm4039, %v4010, 0
        %v4050 = vsel %vm4039, %v4011, 0
        %v4053 = vsel %vm4039, %v4012, 0
        %v4056 = vsel %vm4039, %v4013, 0
        %v4059 = vsel %vm4039, %v4014, 0
        %v4062 = vsel %vm4039, %v4015, 0
        %v4065 = vsel %vm4039, %v4016, 0
        %v4068 = vsel %vm4039, %v4017, 0
        %v4071 = vsel %vm4039, %v4018, 0
        %v4074 = vsel %vm4039, %v4019, 0
        %v4077 = vsel %vm4039, %v4020, 0
        %v4080 = vsel %vm4039, %v4021, 0
        %v4083 = vsel %vm4039, %v4022, 0
        %v4086 = vsel %vm4039, %v4023, 0
        %vm4088 = vcmask 1041408
        %v4090 = vsel %vm4088, %v4036, 0
        %4092 = vmatpush.bf16.msra.mxu0 0
        %4093 = vmatpush.bf16.msra.mxu0 0
        %4094 = vmatpush.bf16.msra.mxu0 0
        %4095 = vmatpush.bf16.msra.mxu0 0
        %4096 = vmatpush.bf16.msra.mxu0 0
        %4097 = vmatpush.bf16.msra.mxu0 %v4090
        %4098 = vmatpush.bf16.msra.mxu0 %v4035
        %4099 = vmatpush.bf16.msra.mxu0 %v4034
        %4100 = vmatmul.bf16.gmra.mxu0 %v4041
        %v4101 = vpop.f32.mrf.mxu0
        %v4102 = vadd.f32 %v3942, %v4101
        %v4103 = vpop.f32.mrf.mxu0
        %v4104 = vadd.f32 %v3942, %v4103
        %4105 = vmatmul.bf16.gmra.mxu0 %v4044
        %v4106 = vpop.f32.mrf.mxu0
        %v4107 = vadd.f32 %v3942, %v4106
        %v4108 = vpop.f32.mrf.mxu0
        %v4109 = vadd.f32 %v3942, %v4108
        %4110 = vmatmul.bf16.gmra.mxu0 %v4047
        %v4111 = vpop.f32.mrf.mxu0
        %v4112 = vadd.f32 %v3942, %v4111
        %v4113 = vpop.f32.mrf.mxu0
        %v4114 = vadd.f32 %v3942, %v4113
        %4115 = vmatmul.bf16.gmra.mxu0 %v4050
        %v4116 = vpop.f32.mrf.mxu0
        %v4117 = vadd.f32 %v3942, %v4116
        %v4118 = vpop.f32.mrf.mxu0
        %v4119 = vadd.f32 %v3942, %v4118
        %4120 = vmatmul.bf16.gmra.mxu0 %v4053
        %v4121 = vpop.f32.mrf.mxu0
        %v4122 = vadd.f32 %v3942, %v4121
        %v4123 = vpop.f32.mrf.mxu0
        %v4124 = vadd.f32 %v3942, %v4123
        %4125 = vmatmul.bf16.gmra.mxu0 %v4056
        %v4126 = vpop.f32.mrf.mxu0
        %v4127 = vadd.f32 %v3942, %v4126
        %v4128 = vpop.f32.mrf.mxu0
        %v4129 = vadd.f32 %v3942, %v4128
        %4130 = vmatmul.bf16.gmra.mxu0 %v4059
        %v4131 = vpop.f32.mrf.mxu0
        %v4132 = vadd.f32 %v3942, %v4131
        %v4133 = vpop.f32.mrf.mxu0
        %v4134 = vadd.f32 %v3942, %v4133
        %4135 = vmatmul.bf16.gmra.mxu0 %v4062
        %v4136 = vpop.f32.mrf.mxu0
        %v4137 = vadd.f32 %v3942, %v4136
        %v4138 = vpop.f32.mrf.mxu0
        %v4139 = vadd.f32 %v3942, %v4138
        %4140 = vmatmul.bf16.gmra.mxu0 %v4065
        %v4141 = vpop.f32.mrf.mxu0
        %v4142 = vadd.f32 %v3942, %v4141
        %v4143 = vpop.f32.mrf.mxu0
        %v4144 = vadd.f32 %v3942, %v4143
        %4145 = vmatmul.bf16.gmra.mxu0 %v4068
        %v4146 = vpop.f32.mrf.mxu0
        %v4147 = vadd.f32 %v3942, %v4146
        %v4148 = vpop.f32.mrf.mxu0
        %v4149 = vadd.f32 %v3942, %v4148
        %4150 = vmatmul.bf16.gmra.mxu0 %v4071
        %v4151 = vpop.f32.mrf.mxu0
        %v4152 = vadd.f32 %v3942, %v4151
        %v4153 = vpop.f32.mrf.mxu0
        %v4154 = vadd.f32 %v3942, %v4153
        %4155 = vmatmul.bf16.gmra.mxu0 %v4074
        %v4156 = vpop.f32.mrf.mxu0
        %v4157 = vadd.f32 %v3942, %v4156
        %v4158 = vpop.f32.mrf.mxu0
        %v4159 = vadd.f32 %v3942, %v4158
        %4160 = vmatmul.bf16.gmra.mxu0 %v4077
        %v4161 = vpop.f32.mrf.mxu0
        %v4162 = vadd.f32 %v3942, %v4161
        %v4163 = vpop.f32.mrf.mxu0
        %v4164 = vadd.f32 %v3942, %v4163
        %4165 = vmatmul.bf16.gmra.mxu0 %v4080
        %v4166 = vpop.f32.mrf.mxu0
        %v4167 = vadd.f32 %v3942, %v4166
        %v4168 = vpop.f32.mrf.mxu0
        %v4169 = vadd.f32 %v3942, %v4168
        %4170 = vmatmul.bf16.gmra.mxu0 %v4083
        %v4171 = vpop.f32.mrf.mxu0
        %v4172 = vadd.f32 %v3942, %v4171
        %v4173 = vpop.f32.mrf.mxu0
        %v4174 = vadd.f32 %v3942, %v4173
        %4175 = vmatmul.bf16.gmra.mxu0 %v4086
        %v4176 = vpop.f32.mrf.mxu0
        %v4177 = vadd.f32 %v3942, %v4176
        %v4178 = vpop.f32.mrf.mxu0
        %v4179 = vadd.f32 %v3942, %v4178
        %4180 = vdwg.mxu0
        %v4181 = vmax.f32 %v4102, 0.0
        %v4182 = vmax.f32 %v4104, 0.0
        %v4183 = vmax.f32 %v4107, 0.0
        %v4184 = vmax.f32 %v4109, 0.0
        %v4185 = vmax.f32 %v4112, 0.0
        %v4186 = vmax.f32 %v4114, 0.0
        %v4187 = vmax.f32 %v4117, 0.0
        %v4188 = vmax.f32 %v4119, 0.0
        %v4189 = vmax.f32 %v4122, 0.0
        %v4190 = vmax.f32 %v4124, 0.0
        %v4191 = vmax.f32 %v4127, 0.0
        %v4192 = vmax.f32 %v4129, 0.0
        %v4193 = vmax.f32 %v4132, 0.0
        %v4194 = vmax.f32 %v4134, 0.0
        %v4195 = vmax.f32 %v4137, 0.0
        %v4196 = vmax.f32 %v4139, 0.0
        %v4197 = vmax.f32 %v4142, 0.0
        %v4198 = vmax.f32 %v4144, 0.0
        %v4199 = vmax.f32 %v4147, 0.0
        %v4200 = vmax.f32 %v4149, 0.0
        %v4201 = vmax.f32 %v4152, 0.0
        %v4202 = vmax.f32 %v4154, 0.0
        %v4203 = vmax.f32 %v4157, 0.0
        %v4204 = vmax.f32 %v4159, 0.0
        %v4205 = vmax.f32 %v4162, 0.0
        %v4206 = vmax.f32 %v4164, 0.0
        %v4207 = vmax.f32 %v4167, 0.0
        %v4208 = vmax.f32 %v4169, 0.0
        %v4209 = vmax.f32 %v4172, 0.0
        %v4210 = vmax.f32 %v4174, 0.0
        %v4211 = vmax.f32 %v4177, 0.0
        %v4212 = vmax.f32 %v4179, 0.0
        %vm4213 = vcmask 261120
        %v4214 = vsel %vm4213, %v4181, 0.0
        %v4215 = vsel %vm4213, %v4182, 0.0
        %v4216 = vadd.f32 %v4214, %v4215
        %v4217 = vsel %vm4213, %v4183, 0.0
        %v4218 = vadd.f32 %v4216, %v4217
        %v4219 = vsel %vm4213, %v4184, 0.0
        %v4220 = vadd.f32 %v4218, %v4219
        %v4221 = vsel %vm4213, %v4185, 0.0
        %v4222 = vadd.f32 %v4220, %v4221
        %v4223 = vsel %vm4213, %v4186, 0.0
        %v4224 = vadd.f32 %v4222, %v4223
        %v4225 = vsel %vm4213, %v4187, 0.0
        %v4226 = vadd.f32 %v4224, %v4225
        %v4227 = vsel %vm4213, %v4188, 0.0
        %v4228 = vadd.f32 %v4226, %v4227
        %v4229 = vsel %vm4213, %v4189, 0.0
        %v4230 = vadd.f32 %v4228, %v4229
        %v4231 = vsel %vm4213, %v4190, 0.0
        %v4232 = vadd.f32 %v4230, %v4231
        %v4233 = vsel %vm4213, %v4191, 0.0
        %v4234 = vadd.f32 %v4232, %v4233
        %v4235 = vsel %vm4213, %v4192, 0.0
        %v4236 = vadd.f32 %v4234, %v4235
        %v4237 = vsel %vm4213, %v4193, 0.0
        %v4238 = vadd.f32 %v4236, %v4237
        %v4239 = vsel %vm4213, %v4194, 0.0
        %v4240 = vadd.f32 %v4238, %v4239
        %v4241 = vsel %vm4213, %v4195, 0.0
        %v4242 = vadd.f32 %v4240, %v4241
        %v4243 = vsel %vm4213, %v4196, 0.0
        %v4244 = vadd.f32 %v4242, %v4243
        %v4245 = vsel %vm4213, %v4197, 0.0
        %v4246 = vadd.f32 %v4244, %v4245
        %v4247 = vsel %vm4213, %v4198, 0.0
        %v4248 = vadd.f32 %v4246, %v4247
        %v4249 = vsel %vm4213, %v4199, 0.0
        %v4250 = vadd.f32 %v4248, %v4249
        %v4251 = vsel %vm4213, %v4200, 0.0
        %v4252 = vadd.f32 %v4250, %v4251
        %v4253 = vsel %vm4213, %v4201, 0.0
        %v4254 = vadd.f32 %v4252, %v4253
        %v4255 = vsel %vm4213, %v4202, 0.0
        %v4256 = vadd.f32 %v4254, %v4255
        %v4257 = vsel %vm4213, %v4203, 0.0
        %v4258 = vadd.f32 %v4256, %v4257
        %v4259 = vsel %vm4213, %v4204, 0.0
        %v4260 = vadd.f32 %v4258, %v4259
        %v4261 = vsel %vm4213, %v4205, 0.0
        %v4262 = vadd.f32 %v4260, %v4261
        %v4263 = vsel %vm4213, %v4206, 0.0
        %v4264 = vadd.f32 %v4262, %v4263
        %v4265 = vsel %vm4213, %v4207, 0.0
        %v4266 = vadd.f32 %v4264, %v4265
        %v4267 = vsel %vm4213, %v4208, 0.0
        %v4268 = vadd.f32 %v4266, %v4267
        %v4269 = vsel %vm4213, %v4209, 0.0
        %v4270 = vadd.f32 %v4268, %v4269
        %v4271 = vsel %vm4213, %v4210, 0.0
        %v4272 = vadd.f32 %v4270, %v4271
        %v4273 = vsel %vm4213, %v4211, 0.0
        %v4274 = vadd.f32 %v4272, %v4273
        %v4275 = vsel %vm4213, %v4212, 0.0
        %v4276 = vadd.f32 %v4274, %v4275
        %v4277 = vrot.slane %v4276, 4
        %v4278 = vadd.f32 %v4276, %v4277
        %v4279 = vrot.slane %v4278, 2
        %v4280 = vadd.f32 %v4278, %v4279
        %v4281 = vrot.slane %v4280, 1
        %v4282 = vadd.f32 %v4280, %v4281
        %v4283 = vmul.f32 %v4282, 0.00390625
        %v4284 = vpack.c.bf16 %v4283, %v4283
        %v4285 = vld [vmem:[%s3] sm:$0xf]
        %v4286 = vld [vmem:[%s3 + $0x4] sm:$0xf]
        %v4287 = vld [vmem:[%s3 + $0x8] sm:$0xf]
        %v4288 = vld [vmem:[%s3 + $0xc] sm:$0xf]
        %v4289 = vld [vmem:[%s4] sm:$0x1]
        %v4294 = vunpack.c.l.b16 %v4285
        %v4295 = vunpack.c.l.b16 %v4286
        %v4296 = vunpack.c.l.b16 %v4287
        %v4297 = vunpack.c.l.b16 %v4288
        %v4298 = vpack.c.b16 %v4295, %v4294
        %v4299 = vpack.c.b16 %v4297, %v4296
        %v4303 = vsel %vm4213, %v4284, 0
        %4305 = vmatpush.bf16.msra.mxu0 0
        %4306 = vmatpush.bf16.msra.mxu0 0
        %4307 = vmatpush.bf16.msra.mxu0 0
        %4308 = vmatpush.bf16.msra.mxu0 0
        %4309 = vmatpush.bf16.msra.mxu0 0
        %4310 = vmatpush.bf16.msra.mxu0 0
        %4311 = vmatpush.bf16.msra.mxu0 %v4299
        %4312 = vmatpush.bf16.msra.mxu0 %v4298
        %4313 = vmatmul.bf16.gmra.mxu0 %v4303
        %v4314 = vpop.f32.mrf.mxu0
        %v4315 = vadd.f32 %v4289, %v4314
        %v4316 = vpop.f32.mrf.mxu0
        %4317 = vdwg.mxu0
        %4318 = vst [vmem:[%s216] sm:$0x1] %v4315
        %s4319 = sand.u32 %s137, 1
        %s4320 = scalar_lea.sflag [#allocation5], %s4319
        %s4321 = sand.u32 %s137, 1
        %s4322 = scalar_lea.vmem [#allocation4], %s4321
        // Predicated region
        $region41: #{tpu_custom_call.1} parent=39 // pred_check
          %p4323 = pneg %p147
        $region42: #{tpu_custom_call.1} parent=39 // pred_check_branch
          %4325 = sbr.rel (%p4323) target = $region44
        $region43: #{tpu_custom_call.1} parent=39 // pred_region
          %4327 = vsyncadd %s4320, 0
          %s4328 = scalar_lea.hbm %s5, %s19
          %s4330 = sshll.u32 %s4322, 4
          %s4331 = int_to_ptr.vmem [resolvable:$true] %s4330
          %s4332 = sshll.u32 %s4328, 4
          %s4333 = int_to_ptr.hbm [resolvable:$true] %s4332
          %4335 = dma.vmem_to_hbm [thread:$0]  %s4331, 16, %s4333, %s4320
        $region44: #{tpu_custom_call.1} parent=39 // pred_fallthru
          _
      $region40: #{tpu_custom_call.1} parent=5 // pred_fallthru
        _
      %p4336 = scmp.le.s32.totalorder 2, %s14
      // Predicated region
      $region45: #{tpu_custom_call.1} parent=5 // pred_check
        %p4337 = pneg %p4336
      $region46: #{tpu_custom_call.1} parent=5 // pred_check_branch
        %4339 = sbr.rel (%p4337) target = $region48
      $region47: #{tpu_custom_call.1} parent=5 // pred_region
        %s4340 = ssub.s32 %s14, 2
        // Predicated region
        $region49: #{tpu_custom_call.1} parent=47 // pred_check
          %p4341 = pneg %p153
        $region50: #{tpu_custom_call.1} parent=47 // pred_check_branch
          %4343 = sbr.rel (%p4341) target = $region52
        $region51: #{tpu_custom_call.1} parent=47 // pred_region
          %s4344 = sand.u32 %s138, 1
          %s4345 = scalar_lea.sflag [#allocation5], %s4344
          %s4346 = sand.u32 %s138, 1
          %s4347 = scalar_lea.vmem [#allocation4], %s4346
          %4349 = dma.done %s4345, 16
        $region52: #{tpu_custom_call.1} parent=47 // pred_fallthru
          _
      $region48: #{tpu_custom_call.1} parent=5 // pred_fallthru
        _
    $region6: #{tpu_custom_call.1} parent=1 // loop_footer
      %s18 = sadd.s32 1, %s14
    $region7: #{tpu_custom_call.1} parent=1 // loop_footer_branch
      %13 = sbr.rel target = $region3
    $region8: #{tpu_custom_call.1} parent=1 // loop_exit
      _
    %4350 = vsyncpa [#allocation5], 1
    %s4351 = scalar_lea.sflag [#allocation5], 1
    %4352 = vsyncpa %s4351, 1

</llo_original>
